<compile_context>
chip_gen: v5e
topology: v5e:2x2
jax: 0.10.0
libtpu: 0.0.40
codegen_flags: <defaults>
</compile_context>

<pallas_src>
import functools

import jax
import jax.numpy as jnp
from jax.experimental import pallas as pl
from jax.experimental.pallas import tpu as pltpu

LANES = 128


def conv_bn_silu_kernel(x_ref, w_ref, scale_ref, shift_ref, o_ref, xpad_ref, *,
                        KH, KW, PH, PW):
    """One grid step = one batch tile (NB images), one MXU matmul.

    x_ref:     (NB, H, W, Cin)           unpadded input tile (VMEM)
    w_ref:     (KH*KW*Cin, Cpad)         im2col weight, bf16, lane-padded
    scale_ref: (1, Cpad)                 folded BN scale (f32)
    shift_ref: (1, Cpad)                 folded BN shift (f32)
    o_ref:     (NB, Ho, Wo, Cpad)        lane-dense output tile
    xpad_ref:  (NB, H+2*PH, W+2*PW, Cin) f32 VMEM scratch holding the halo
    """
    NB, H, W, Cin = x_ref.shape
    Ho, Wo, Cpad = o_ref.shape[1], o_ref.shape[2], o_ref.shape[3]

    # Materialize the zero halo in VMEM only (no HBM round-trip for padding).
    xpad_ref[...] = jnp.zeros_like(xpad_ref)
    xpad_ref[:, PH:PH + H, PW:PW + W, :] = x_ref[...].astype(xpad_ref.dtype)

    # im2col: concatenate the KH*KW shifted views along the lane axis to build
    # a single (M, K) operand for one MXU matmul (K = KH*KW*Cin).
    taps = []
    for kh in range(KH):
        for kw in range(KW):
            taps.append(xpad_ref[:, kh:kh + Ho, kw:kw + Wo, :])
    patches = jnp.concatenate(taps, axis=-1)                    # (NB,Ho,Wo,K)
    patches = patches.reshape(NB * Ho * Wo, KH * KW * Cin)
    patches = patches.astype(w_ref.dtype)                       # bf16 operands

    acc = jnp.dot(patches, w_ref[...], preferred_element_type=jnp.float32)

    # Fused BN (eval-mode folded per-channel affine) + SiLU, in f32, lane-dense.
    y = acc * scale_ref[...] + shift_ref[...]
    y = y * jax.nn.sigmoid(y)

    o_ref[...] = y.reshape(NB, Ho, Wo, Cpad).astype(o_ref.dtype)


def conv_block_forward(x_nchw, weight_oihw, gamma, beta, running_mean,
                       running_var, *, padding=1, eps=1e-5, batch_block=None):
    """PyTorch-convention NCHW/OIHW in, NCHW out. Conv(stride=1)+BN(eval)+SiLU."""
    N, Cin, H, W = x_nchw.shape
    Cout, _, KH, KW = weight_oihw.shape
    PH = PW = padding
    Hp, Wp = H + 2 * PH, W + 2 * PW
    Ho, Wo = Hp - KH + 1, Wp - KW + 1

    NB = N if batch_block is None else batch_block
    assert N % NB == 0, "batch_block must divide N"

    K = KH * KW * Cin
    Cpad = ((Cout + LANES - 1) // LANES) * LANES   # lane-dense output channels

    # NCHW -> NHWC (unpadded; the halo is created in VMEM inside the kernel).
    x = jnp.transpose(x_nchw, (0, 2, 3, 1))

    # OIHW -> (KH*KW*Cin, Cout): row order (kh, kw, cin) matches the in-kernel
    # tap concatenation order. bf16 for the MXU, zero-padded to Cpad lanes.
    w = jnp.transpose(weight_oihw, (2, 3, 1, 0)).reshape(K, Cout)
    w = jnp.pad(w.astype(jnp.bfloat16), ((0, 0), (0, Cpad - Cout)))

    # Fold BN (eval mode) into a per-channel affine, padded to Cpad (pads -> 0).
    inv_std = 1.0 / jnp.sqrt(running_var.astype(jnp.float32) + eps)
    scale = gamma.astype(jnp.float32) * inv_std
    shift = beta.astype(jnp.float32) - running_mean.astype(jnp.float32) * scale
    scale = jnp.pad(scale, (0, Cpad - Cout)).reshape(1, Cpad)
    shift = jnp.pad(shift, (0, Cpad - Cout)).reshape(1, Cpad)

    kernel = functools.partial(conv_bn_silu_kernel, KH=KH, KW=KW, PH=PH, PW=PW)

    out_pad = pl.pallas_call(
        kernel,
        out_shape=jax.ShapeDtypeStruct((N, Ho, Wo, Cpad), x_nchw.dtype),
        grid=(N // NB,),
        in_specs=[
            pl.BlockSpec((NB, H, W, Cin), lambda b: (b, 0, 0, 0)),
            pl.BlockSpec((K, Cpad), lambda b: (0, 0)),
            pl.BlockSpec((1, Cpad), lambda b: (0, 0)),
            pl.BlockSpec((1, Cpad), lambda b: (0, 0)),
        ],
        out_specs=pl.BlockSpec((NB, Ho, Wo, Cpad), lambda b: (b, 0, 0, 0)),
        scratch_shapes=[pltpu.VMEM((NB, Hp, Wp, Cin), jnp.float32)],
        compiler_params=pltpu.CompilerParams(
            dimension_semantics=("parallel",)),
    )(x, w, scale, shift)

    # Drop the lane padding and return in PyTorch's NCHW convention.
    out = out_pad[..., :Cout]
    return jnp.transpose(out, (0, 3, 1, 2))


def reference_forward(x_nchw, weight_oihw, gamma, beta, running_mean,
                      running_var, *, padding=1, eps=1e-5):
    """Pure-JAX reference (same bf16 operand rounding / f32 accumulation)."""
    y = jax.lax.conv_general_dilated(
        x_nchw.astype(jnp.bfloat16), weight_oihw.astype(jnp.bfloat16),
        window_strides=(1, 1),
        padding=[(padding, padding), (padding, padding)],
        dimension_numbers=("NCHW", "OIHW", "NCHW"),
        preferred_element_type=jnp.float32,
    )
    inv_std = 1.0 / jnp.sqrt(running_var + eps)
    scale = (gamma * inv_std)[None, :, None, None]
    shift = (beta - running_mean * gamma * inv_std)[None, :, None, None]
    y = y * scale + shift
    return y * jax.nn.sigmoid(y)


if __name__ == "__main__":
    # ConvBlock(in_channels=4, out_channels=8, kernel_size=3, padding=1,
    #           use_batch_norm=True)  => conv has no bias.
    N, Cin, H, W = 2, 4, 16, 16
    Cout, KH, KW = 8, 3, 3

    key = jax.random.PRNGKey(0)
    kx, kw, kg, kb, km, kv = jax.random.split(key, 6)

    x = jax.random.normal(kx, (N, Cin, H, W), dtype=jnp.float32)
    weight = 0.1 * jax.random.normal(kw, (Cout, Cin, KH, KW), dtype=jnp.float32)
    gamma = 1.0 + 0.1 * jax.random.normal(kg, (Cout,), dtype=jnp.float32)
    beta = 0.1 * jax.random.normal(kb, (Cout,), dtype=jnp.float32)
    running_mean = 0.1 * jax.random.normal(km, (Cout,), dtype=jnp.float32)
    running_var = 0.5 + jax.random.uniform(kv, (Cout,), dtype=jnp.float32)

    out = conv_block_forward(x, weight, gamma, beta, running_mean, running_var)
    out = jax.block_until_ready(out)

    ref = reference_forward(x, weight, gamma, beta, running_mean, running_var)
    ref = jax.block_until_ready(ref)

    assert out.shape == (N, Cout, H, W), out.shape
    max_err = float(jnp.max(jnp.abs(out - ref)))
    assert jnp.allclose(out, ref, atol=2e-3, rtol=2e-3), max_err
    print("KERNEL_OK")
</pallas_src>

<mosaic_0001>
module attributes {stable_mosaic.version = 11 : i64} {
  func.func @conv_bn_silu_kernel(%arg0: i32, %arg1: memref<2x16x16x4xf32, #tpu.memory_space<vmem>>, %arg2: memref<36x128xbf16, #tpu.memory_space<vmem>>, %arg3: memref<1x128xf32, #tpu.memory_space<vmem>>, %arg4: memref<1x128xf32, #tpu.memory_space<vmem>>, %arg5: memref<2x16x16x128xf32, #tpu.memory_space<vmem>>, %arg6: memref<2x18x18x4xf32, #tpu.memory_space<vmem>>) attributes {dimension_semantics = [#tpu.dimension_semantics<parallel>], iteration_bounds = array<i64: 1>, scalar_prefetch = 0 : i64, scratch_operands = 1 : i64, tpu.core_type = #tpu.core_type<tc>, window_params = [{transform_indices = @transform_0, window_bounds = array<i64: 2, 16, 16, 4>}, {pipeline_mode = #tpu.pipeline_mode<synchronous>, transform_indices = @transform_1, window_bounds = array<i64: 36, 128>}, {pipeline_mode = #tpu.pipeline_mode<synchronous>, transform_indices = @transform_2, window_bounds = array<i64: 1, 128>}, {pipeline_mode = #tpu.pipeline_mode<synchronous>, transform_indices = @transform_3, window_bounds = array<i64: 1, 128>}, {transform_indices = @transform_4, window_bounds = array<i64: 2, 16, 16, 128>}]} {
    %cst = arith.constant 0.000000e+00 : f32
    %0 = vector.broadcast %cst : f32 to vector<2x18x18x4xf32>
    %c0 = arith.constant 0 : index
    %c0_0 = arith.constant 0 : index
    %c0_1 = arith.constant 0 : index
    %c0_2 = arith.constant 0 : index
    %1 = vector.load %arg6[%c0, %c0_0, %c0_1, %c0_2] : memref<2x18x18x4xf32, #tpu.memory_space<vmem>>, vector<2x18x18x4xf32>
    tpu.vector_store %arg6[%c0, %c0_0, %c0_1, %c0_2], %0 {strides = array<i32>} : memref<2x18x18x4xf32, #tpu.memory_space<vmem>>, vector<2x18x18x4xf32>,
    %c0_3 = arith.constant 0 : index
    %c0_4 = arith.constant 0 : index
    %c0_5 = arith.constant 0 : index
    %c0_6 = arith.constant 0 : index
    %2 = vector.load %arg1[%c0_3, %c0_4, %c0_5, %c0_6] : memref<2x16x16x4xf32, #tpu.memory_space<vmem>>, vector<2x16x16x4xf32>
    %c0_7 = arith.constant 0 : index
    %c1 = arith.constant 1 : index
    %c1_8 = arith.constant 1 : index
    %c0_9 = arith.constant 0 : index
    %3 = vector.load %arg6[%c0_7, %c1, %c1_8, %c0_9] : memref<2x18x18x4xf32, #tpu.memory_space<vmem>>, vector<2x16x16x4xf32>
    tpu.vector_store %arg6[%c0_7, %c1, %c1_8, %c0_9], %2 {strides = array<i32>} : memref<2x18x18x4xf32, #tpu.memory_space<vmem>>, vector<2x16x16x4xf32>,
    %c0_10 = arith.constant 0 : index
    %c0_11 = arith.constant 0 : index
    %c0_12 = arith.constant 0 : index
    %c0_13 = arith.constant 0 : index
    %4 = vector.load %arg6[%c0_10, %c0_11, %c0_12, %c0_13] : memref<2x18x18x4xf32, #tpu.memory_space<vmem>>, vector<2x16x16x4xf32>
    %c0_14 = arith.constant 0 : index
    %c0_15 = arith.constant 0 : index
    %c1_16 = arith.constant 1 : index
    %c0_17 = arith.constant 0 : index
    %5 = vector.load %arg6[%c0_14, %c0_15, %c1_16, %c0_17] : memref<2x18x18x4xf32, #tpu.memory_space<vmem>>, vector<2x16x16x4xf32>
    %c0_18 = arith.constant 0 : index
    %c0_19 = arith.constant 0 : index
    %c2 = arith.constant 2 : index
    %c0_20 = arith.constant 0 : index
    %6 = vector.load %arg6[%c0_18, %c0_19, %c2, %c0_20] : memref<2x18x18x4xf32, #tpu.memory_space<vmem>>, vector<2x16x16x4xf32>
    %c0_21 = arith.constant 0 : index
    %c1_22 = arith.constant 1 : index
    %c0_23 = arith.constant 0 : index
    %c0_24 = arith.constant 0 : index
    %7 = vector.load %arg6[%c0_21, %c1_22, %c0_23, %c0_24] : memref<2x18x18x4xf32, #tpu.memory_space<vmem>>, vector<2x16x16x4xf32>
    %c0_25 = arith.constant 0 : index
    %c1_26 = arith.constant 1 : index
    %c1_27 = arith.constant 1 : index
    %c0_28 = arith.constant 0 : index
    %8 = vector.load %arg6[%c0_25, %c1_26, %c1_27, %c0_28] : memref<2x18x18x4xf32, #tpu.memory_space<vmem>>, vector<2x16x16x4xf32>
    %c0_29 = arith.constant 0 : index
    %c1_30 = arith.constant 1 : index
    %c2_31 = arith.constant 2 : index
    %c0_32 = arith.constant 0 : index
    %9 = vector.load %arg6[%c0_29, %c1_30, %c2_31, %c0_32] : memref<2x18x18x4xf32, #tpu.memory_space<vmem>>, vector<2x16x16x4xf32>
    %c0_33 = arith.constant 0 : index
    %c2_34 = arith.constant 2 : index
    %c0_35 = arith.constant 0 : index
    %c0_36 = arith.constant 0 : index
    %10 = vector.load %arg6[%c0_33, %c2_34, %c0_35, %c0_36] : memref<2x18x18x4xf32, #tpu.memory_space<vmem>>, vector<2x16x16x4xf32>
    %c0_37 = arith.constant 0 : index
    %c2_38 = arith.constant 2 : index
    %c1_39 = arith.constant 1 : index
    %c0_40 = arith.constant 0 : index
    %11 = vector.load %arg6[%c0_37, %c2_38, %c1_39, %c0_40] : memref<2x18x18x4xf32, #tpu.memory_space<vmem>>, vector<2x16x16x4xf32>
    %c0_41 = arith.constant 0 : index
    %c2_42 = arith.constant 2 : index
    %c2_43 = arith.constant 2 : index
    %c0_44 = arith.constant 0 : index
    %12 = vector.load %arg6[%c0_41, %c2_42, %c2_43, %c0_44] : memref<2x18x18x4xf32, #tpu.memory_space<vmem>>, vector<2x16x16x4xf32>
    %13 = tpu.concatenate %4, %5, %6, %7, %8, %9, %10, %11, %12 in 3 : vector<2x16x16x4xf32>, vector<2x16x16x4xf32>, vector<2x16x16x4xf32>, vector<2x16x16x4xf32>, vector<2x16x16x4xf32>, vector<2x16x16x4xf32>, vector<2x16x16x4xf32>, vector<2x16x16x4xf32>, vector<2x16x16x4xf32> -> vector<2x16x16x36xf32>
    %14 = vector.shape_cast %13 : vector<2x16x16x36xf32> to vector<512x36xf32>
    %15 = arith.truncf %14 : vector<512x36xf32> to vector<512x36xbf16>
    %c0_45 = arith.constant 0 : index
    %c0_46 = arith.constant 0 : index
    %16 = vector.load %arg2[%c0_45, %c0_46] : memref<36x128xbf16, #tpu.memory_space<vmem>>, vector<36x128xbf16>
    %cst_47 = arith.constant dense<0.000000e+00> : vector<512x128xf32>
    %17 = tpu.matmul %15, %16, %cst_47 {dimension_numbers = #tpu.dot_dimension_numbers<[1], [0], [0], [1], [0, 0, 1, 1], [], []>} : vector<512x36xbf16>, vector<36x128xbf16>, vector<512x128xf32> -> vector<512x128xf32>
    %c0_48 = arith.constant 0 : index
    %c0_49 = arith.constant 0 : index
    %18 = vector.load %arg3[%c0_48, %c0_49] : memref<1x128xf32, #tpu.memory_space<vmem>>, vector<1x128xf32>
    %19 = vector.broadcast %18 : vector<1x128xf32> to vector<512x128xf32>
    %20 = arith.mulf %17, %19 : vector<512x128xf32>
    %c0_50 = arith.constant 0 : index
    %c0_51 = arith.constant 0 : index
    %21 = vector.load %arg4[%c0_50, %c0_51] : memref<1x128xf32, #tpu.memory_space<vmem>>, vector<1x128xf32>
    %22 = vector.broadcast %21 : vector<1x128xf32> to vector<512x128xf32>
    %23 = arith.addf %20, %22 : vector<512x128xf32>
    %24 = arith.negf %23 : vector<512x128xf32>
    %25 = math.exp %24 : vector<512x128xf32>
    %cst_52 = arith.constant 1.000000e+00 : f32
    %26 = vector.broadcast %cst_52 : f32 to vector<512x128xf32>
    %27 = arith.addf %26, %25 : vector<512x128xf32>
    %28 = arith.divf %26, %27 : vector<512x128xf32>
    %29 = arith.mulf %23, %28 : vector<512x128xf32>
    %30 = vector.shape_cast %29 : vector<512x128xf32> to vector<2x16x16x128xf32>
    %c0_53 = arith.constant 0 : index
    %c0_54 = arith.constant 0 : index
    %c0_55 = arith.constant 0 : index
    %c0_56 = arith.constant 0 : index
    %31 = vector.load %arg5[%c0_53, %c0_54, %c0_55, %c0_56] : memref<2x16x16x128xf32, #tpu.memory_space<vmem>>, vector<2x16x16x128xf32>
    tpu.vector_store %arg5[%c0_53, %c0_54, %c0_55, %c0_56], %30 {strides = array<i32>} : memref<2x16x16x128xf32, #tpu.memory_space<vmem>>, vector<2x16x16x128xf32>,
    return
  }
  func.func @transform_0(%arg0: i32) -> (i32, i32, i32, i32) {
    %c0_i32 = arith.constant 0 : i32
    %c0_i32_0 = arith.constant 0 : i32
    %c0_i32_1 = arith.constant 0 : i32
    %c0_i32_2 = arith.constant 0 : i32
    return %arg0, %c0_i32, %c0_i32_0, %c0_i32_1 : i32, i32, i32, i32
  }
  func.func @transform_1(%arg0: i32) -> (i32, i32) {
    %c0_i32 = arith.constant 0 : i32
    %c0_i32_0 = arith.constant 0 : i32
    %c0_i32_1 = arith.constant 0 : i32
    return %c0_i32, %c0_i32_0 : i32, i32
  }
  func.func @transform_2(%arg0: i32) -> (i32, i32) {
    %c0_i32 = arith.constant 0 : i32
    %c0_i32_0 = arith.constant 0 : i32
    %c0_i32_1 = arith.constant 0 : i32
    return %c0_i32, %c0_i32_0 : i32, i32
  }
  func.func @transform_3(%arg0: i32) -> (i32, i32) {
    %c0_i32 = arith.constant 0 : i32
    %c0_i32_0 = arith.constant 0 : i32
    %c0_i32_1 = arith.constant 0 : i32
    return %c0_i32, %c0_i32_0 : i32, i32
  }
  func.func @transform_4(%arg0: i32) -> (i32, i32, i32, i32) {
    %c0_i32 = arith.constant 0 : i32
    %c0_i32_0 = arith.constant 0 : i32
    %c0_i32_1 = arith.constant 0 : i32
    %c0_i32_2 = arith.constant 0 : i32
    return %arg0, %c0_i32, %c0_i32_0, %c0_i32_1 : i32, i32, i32, i32
  }
}

</mosaic_0001>

<llo_original>
// kernel: tpu_custom_call.1
$region0: #{tpu_custom_call.1}
  #allocation0 [shape = 'u32[]', space=smem, size = 0x4, offset = 0x4, fixed_abs, tag = 'smem constant byte address 0x4 - core index']
  #allocation1 [shape = 'u32[72,128]{1,0:T(1,128)}', space=vmem, size = 0x9000, scoped, tag = 'internal scratch']
  #allocation2 [shape = 'f32[2,18,18,4]{3,2,1,0:T(8,128)}', space=vmem, size = 0x6c000, scoped, tag = 'scratch operand']
  %s0 = inlined_call_operand.vmem [shape: f32[2,16,16,4], index: 0, kind: input, shape index: {}]
  %s1 = inlined_call_operand.vmem [shape: bf16[36,128], index: 1, kind: input, shape index: {}]
  %s2 = inlined_call_operand.vmem [shape: f32[1,128], index: 2, kind: input, shape index: {}]
  %s3 = inlined_call_operand.vmem [shape: f32[1,128], index: 3, kind: input, shape index: {}]
  %s4 = inlined_call_operand.hbm [shape: f32[2,16,16,128], index: 4, kind: output, shape index: {}]
  %s5 = sld [smem:[#allocation0]]
  $region26: #{tpu_custom_call.1} parent=0
    _
  %s7 = ssub.s32 1, %s5
  %s8 = scalar_select 0, %s7, %s5
  $region1: #{tpu_custom_call.1} parent=0
    #allocation3 [shape = 'u8[262144]{0}', space=vmem, size = 0x40000, scoped, tag = 'output window, operand 0, single buffered']
    #allocation4 [shape = 's32[1]{0}', space=sflag, size = 0x4, scoped, tag = 'scoped memory for tpu_custom_call.1']
    %9 = vsyncpa [#allocation4], 0
    // Predicated region
    $region2: #{tpu_custom_call.1} parent=1 // pred_check
      _
    $region3: #{tpu_custom_call.1} parent=1 // pred_check_branch
      %11 = sbr.rel (0) target = $region5
    $region4: #{tpu_custom_call.1} parent=1 // pred_region
      _
    $region5: #{tpu_custom_call.1} parent=1 // pred_fallthru
      _
    // Predicated region
    $region6: #{tpu_custom_call.1} parent=1 // pred_check
      _
    $region7: #{tpu_custom_call.1} parent=1 // pred_check_branch
      %13 = sbr.rel (0) target = $region9
    $region8: #{tpu_custom_call.1} parent=1 // pred_region
      _
    $region9: #{tpu_custom_call.1} parent=1 // pred_fallthru
      _
    // Predicated region
    $region10: #{tpu_custom_call.1} parent=1 // pred_check
      _
    $region11: #{tpu_custom_call.1} parent=1 // pred_check_branch
      %15 = sbr.rel (0) target = $region13
    $region12: #{tpu_custom_call.1} parent=1 // pred_region
      _
    $region13: #{tpu_custom_call.1} parent=1 // pred_fallthru
      _
    // Predicated region
    $region14: #{tpu_custom_call.1} parent=1 // pred_check
      _
    $region15: #{tpu_custom_call.1} parent=1 // pred_check_branch
      %17 = sbr.rel (0) target = $region17
    $region16: #{tpu_custom_call.1} parent=1 // pred_region
      _
    $region17: #{tpu_custom_call.1} parent=1 // pred_fallthru
      _
    %vm19 = vcmask 31744
    %20 = vst.msk [vmem:[#allocation2] sm:$0xff] %vm19, 0.0
    %21 = vst.msk [vmem:[#allocation2 + $0x8] sm:$0xff] %vm19, 0.0
    %vm22 = vcmask 25600
    %23 = vst.msk [vmem:[#allocation2 + $0x10] sm:$0x3] %vm22, 0.0
    %24 = vst.msk [vmem:[#allocation2 + $0x18] sm:$0xff] %vm19, 0.0
    %25 = vst.msk [vmem:[#allocation2 + $0x20] sm:$0xff] %vm19, 0.0
    %26 = vst.msk [vmem:[#allocation2 + $0x28] sm:$0x3] %vm22, 0.0
    %27 = vst.msk [vmem:[#allocation2 + $0x30] sm:$0xff] %vm19, 0.0
    %28 = vst.msk [vmem:[#allocation2 + $0x38] sm:$0xff] %vm19, 0.0
    %29 = vst.msk [vmem:[#allocation2 + $0x40] sm:$0x3] %vm22, 0.0
    %30 = vst.msk [vmem:[#allocation2 + $0x48] sm:$0xff] %vm19, 0.0
    %31 = vst.msk [vmem:[#allocation2 + $0x50] sm:$0xff] %vm19, 0.0
    %32 = vst.msk [vmem:[#allocation2 + $0x58] sm:$0x3] %vm22, 0.0
    %33 = vst.msk [vmem:[#allocation2 + $0x60] sm:$0xff] %vm19, 0.0
    %34 = vst.msk [vmem:[#allocation2 + $0x68] sm:$0xff] %vm19, 0.0
    %35 = vst.msk [vmem:[#allocation2 + $0x70] sm:$0x3] %vm22, 0.0
    %36 = vst.msk [vmem:[#allocation2 + $0x78] sm:$0xff] %vm19, 0.0
    %37 = vst.msk [vmem:[#allocation2 + $0x80] sm:$0xff] %vm19, 0.0
    %38 = vst.msk [vmem:[#allocation2 + $0x88] sm:$0x3] %vm22, 0.0
    %39 = vst.msk [vmem:[#allocation2 + $0x90] sm:$0xff] %vm19, 0.0
    %40 = vst.msk [vmem:[#allocation2 + $0x98] sm:$0xff] %vm19, 0.0
    %41 = vst.msk [vmem:[#allocation2 + $0xa0] sm:$0x3] %vm22, 0.0
    %42 = vst.msk [vmem:[#allocation2 + $0xa8] sm:$0xff] %vm19, 0.0
    %43 = vst.msk [vmem:[#allocation2 + $0xb0] sm:$0xff] %vm19, 0.0
    %44 = vst.msk [vmem:[#allocation2 + $0xb8] sm:$0x3] %vm22, 0.0
    %45 = vst.msk [vmem:[#allocation2 + $0xc0] sm:$0xff] %vm19, 0.0
    %46 = vst.msk [vmem:[#allocation2 + $0xc8] sm:$0xff] %vm19, 0.0
    %47 = vst.msk [vmem:[#allocation2 + $0xd0] sm:$0x3] %vm22, 0.0
    %48 = vst.msk [vmem:[#allocation2 + $0xd8] sm:$0xff] %vm19, 0.0
    %49 = vst.msk [vmem:[#allocation2 + $0xe0] sm:$0xff] %vm19, 0.0
    %50 = vst.msk [vmem:[#allocation2 + $0xe8] sm:$0x3] %vm22, 0.0
    %51 = vst.msk [vmem:[#allocation2 + $0xf0] sm:$0xff] %vm19, 0.0
    %52 = vst.msk [vmem:[#allocation2 + $0xf8] sm:$0xff] %vm19, 0.0
    %53 = vst.msk [vmem:[#allocation2 + $0x100] sm:$0x3] %vm22, 0.0
    %54 = vst.msk [vmem:[#allocation2 + $0x108] sm:$0xff] %vm19, 0.0
    %55 = vst.msk [vmem:[#allocation2 + $0x110] sm:$0xff] %vm19, 0.0
    %56 = vst.msk [vmem:[#allocation2 + $0x118] sm:$0x3] %vm22, 0.0
    %57 = vst.msk [vmem:[#allocation2 + $0x120] sm:$0xff] %vm19, 0.0
    %58 = vst.msk [vmem:[#allocation2 + $0x128] sm:$0xff] %vm19, 0.0
    %59 = vst.msk [vmem:[#allocation2 + $0x130] sm:$0x3] %vm22, 0.0
    %60 = vst.msk [vmem:[#allocation2 + $0x138] sm:$0xff] %vm19, 0.0
    %61 = vst.msk [vmem:[#allocation2 + $0x140] sm:$0xff] %vm19, 0.0
    %62 = vst.msk [vmem:[#allocation2 + $0x148] sm:$0x3] %vm22, 0.0
    %63 = vst.msk [vmem:[#allocation2 + $0x150] sm:$0xff] %vm19, 0.0
    %64 = vst.msk [vmem:[#allocation2 + $0x158] sm:$0xff] %vm19, 0.0
    %65 = vst.msk [vmem:[#allocation2 + $0x160] sm:$0x3] %vm22, 0.0
    %66 = vst.msk [vmem:[#allocation2 + $0x168] sm:$0xff] %vm19, 0.0
    %67 = vst.msk [vmem:[#allocation2 + $0x170] sm:$0xff] %vm19, 0.0
    %68 = vst.msk [vmem:[#allocation2 + $0x178] sm:$0x3] %vm22, 0.0
    %69 = vst.msk [vmem:[#allocation2 + $0x180] sm:$0xff] %vm19, 0.0
    %70 = vst.msk [vmem:[#allocation2 + $0x188] sm:$0xff] %vm19, 0.0
    %71 = vst.msk [vmem:[#allocation2 + $0x190] sm:$0x3] %vm22, 0.0
    %72 = vst.msk [vmem:[#allocation2 + $0x198] sm:$0xff] %vm19, 0.0
    %73 = vst.msk [vmem:[#allocation2 + $0x1a0] sm:$0xff] %vm19, 0.0
    %74 = vst.msk [vmem:[#allocation2 + $0x1a8] sm:$0x3] %vm22, 0.0
    %75 = vst.msk [vmem:[#allocation2 + $0x1b0] sm:$0xff] %vm19, 0.0
    %76 = vst.msk [vmem:[#allocation2 + $0x1b8] sm:$0xff] %vm19, 0.0
    %77 = vst.msk [vmem:[#allocation2 + $0x1c0] sm:$0x3] %vm22, 0.0
    %78 = vst.msk [vmem:[#allocation2 + $0x1c8] sm:$0xff] %vm19, 0.0
    %79 = vst.msk [vmem:[#allocation2 + $0x1d0] sm:$0xff] %vm19, 0.0
    %80 = vst.msk [vmem:[#allocation2 + $0x1d8] sm:$0x3] %vm22, 0.0
    %81 = vst.msk [vmem:[#allocation2 + $0x1e0] sm:$0xff] %vm19, 0.0
    %82 = vst.msk [vmem:[#allocation2 + $0x1e8] sm:$0xff] %vm19, 0.0
    %83 = vst.msk [vmem:[#allocation2 + $0x1f0] sm:$0x3] %vm22, 0.0
    %84 = vst.msk [vmem:[#allocation2 + $0x1f8] sm:$0xff] %vm19, 0.0
    %85 = vst.msk [vmem:[#allocation2 + $0x200] sm:$0xff] %vm19, 0.0
    %86 = vst.msk [vmem:[#allocation2 + $0x208] sm:$0x3] %vm22, 0.0
    %87 = vst.msk [vmem:[#allocation2 + $0x210] sm:$0xff] %vm19, 0.0
    %88 = vst.msk [vmem:[#allocation2 + $0x218] sm:$0xff] %vm19, 0.0
    %89 = vst.msk [vmem:[#allocation2 + $0x220] sm:$0x3] %vm22, 0.0
    %90 = vst.msk [vmem:[#allocation2 + $0x228] sm:$0xff] %vm19, 0.0
    %91 = vst.msk [vmem:[#allocation2 + $0x230] sm:$0xff] %vm19, 0.0
    %92 = vst.msk [vmem:[#allocation2 + $0x238] sm:$0x3] %vm22, 0.0
    %93 = vst.msk [vmem:[#allocation2 + $0x240] sm:$0xff] %vm19, 0.0
    %94 = vst.msk [vmem:[#allocation2 + $0x248] sm:$0xff] %vm19, 0.0
    %95 = vst.msk [vmem:[#allocation2 + $0x250] sm:$0x3] %vm22, 0.0
    %96 = vst.msk [vmem:[#allocation2 + $0x258] sm:$0xff] %vm19, 0.0
    %97 = vst.msk [vmem:[#allocation2 + $0x260] sm:$0xff] %vm19, 0.0
    %98 = vst.msk [vmem:[#allocation2 + $0x268] sm:$0x3] %vm22, 0.0
    %99 = vst.msk [vmem:[#allocation2 + $0x270] sm:$0xff] %vm19, 0.0
    %100 = vst.msk [vmem:[#allocation2 + $0x278] sm:$0xff] %vm19, 0.0
    %101 = vst.msk [vmem:[#allocation2 + $0x280] sm:$0x3] %vm22, 0.0
    %102 = vst.msk [vmem:[#allocation2 + $0x288] sm:$0xff] %vm19, 0.0
    %103 = vst.msk [vmem:[#allocation2 + $0x290] sm:$0xff] %vm19, 0.0
    %104 = vst.msk [vmem:[#allocation2 + $0x298] sm:$0x3] %vm22, 0.0
    %105 = vst.msk [vmem:[#allocation2 + $0x2a0] sm:$0xff] %vm19, 0.0
    %106 = vst.msk [vmem:[#allocation2 + $0x2a8] sm:$0xff] %vm19, 0.0
    %107 = vst.msk [vmem:[#allocation2 + $0x2b0] sm:$0x3] %vm22, 0.0
    %108 = vst.msk [vmem:[#allocation2 + $0x2b8] sm:$0xff] %vm19, 0.0
    %109 = vst.msk [vmem:[#allocation2 + $0x2c0] sm:$0xff] %vm19, 0.0
    %110 = vst.msk [vmem:[#allocation2 + $0x2c8] sm:$0x3] %vm22, 0.0
    %111 = vst.msk [vmem:[#allocation2 + $0x2d0] sm:$0xff] %vm19, 0.0
    %112 = vst.msk [vmem:[#allocation2 + $0x2d8] sm:$0xff] %vm19, 0.0
    %113 = vst.msk [vmem:[#allocation2 + $0x2e0] sm:$0x3] %vm22, 0.0
    %114 = vst.msk [vmem:[#allocation2 + $0x2e8] sm:$0xff] %vm19, 0.0
    %115 = vst.msk [vmem:[#allocation2 + $0x2f0] sm:$0xff] %vm19, 0.0
    %116 = vst.msk [vmem:[#allocation2 + $0x2f8] sm:$0x3] %vm22, 0.0
    %117 = vst.msk [vmem:[#allocation2 + $0x300] sm:$0xff] %vm19, 0.0
    %118 = vst.msk [vmem:[#allocation2 + $0x308] sm:$0xff] %vm19, 0.0
    %119 = vst.msk [vmem:[#allocation2 + $0x310] sm:$0x3] %vm22, 0.0
    %120 = vst.msk [vmem:[#allocation2 + $0x318] sm:$0xff] %vm19, 0.0
    %121 = vst.msk [vmem:[#allocation2 + $0x320] sm:$0xff] %vm19, 0.0
    %122 = vst.msk [vmem:[#allocation2 + $0x328] sm:$0x3] %vm22, 0.0
    %123 = vst.msk [vmem:[#allocation2 + $0x330] sm:$0xff] %vm19, 0.0
    %124 = vst.msk [vmem:[#allocation2 + $0x338] sm:$0xff] %vm19, 0.0
    %125 = vst.msk [vmem:[#allocation2 + $0x340] sm:$0x3] %vm22, 0.0
    %126 = vst.msk [vmem:[#allocation2 + $0x348] sm:$0xff] %vm19, 0.0
    %127 = vst.msk [vmem:[#allocation2 + $0x350] sm:$0xff] %vm19, 0.0
    %128 = vst.msk [vmem:[#allocation2 + $0x358] sm:$0x3] %vm22, 0.0
    %v129 = vld [vmem:[%s0] sm:$0xff]
    %v130 = vld [vmem:[%s0 + $0x8] sm:$0xff]
    %v131 = vld [vmem:[%s0 + $0x10] sm:$0xff]
    %v132 = vld [vmem:[%s0 + $0x18] sm:$0xff]
    %v133 = vld [vmem:[%s0 + $0x20] sm:$0xff]
    %v134 = vld [vmem:[%s0 + $0x28] sm:$0xff]
    %v135 = vld [vmem:[%s0 + $0x30] sm:$0xff]
    %v136 = vld [vmem:[%s0 + $0x38] sm:$0xff]
    %v137 = vld [vmem:[%s0 + $0x40] sm:$0xff]
    %v138 = vld [vmem:[%s0 + $0x48] sm:$0xff]
    %v139 = vld [vmem:[%s0 + $0x50] sm:$0xff]
    %v140 = vld [vmem:[%s0 + $0x58] sm:$0xff]
    %v141 = vld [vmem:[%s0 + $0x60] sm:$0xff]
    %v142 = vld [vmem:[%s0 + $0x68] sm:$0xff]
    %v143 = vld [vmem:[%s0 + $0x70] sm:$0xff]
    %v144 = vld [vmem:[%s0 + $0x78] sm:$0xff]
    %v145 = vld [vmem:[%s0 + $0x80] sm:$0xff]
    %v146 = vld [vmem:[%s0 + $0x88] sm:$0xff]
    %v147 = vld [vmem:[%s0 + $0x90] sm:$0xff]
    %v148 = vld [vmem:[%s0 + $0x98] sm:$0xff]
    %v149 = vld [vmem:[%s0 + $0xa0] sm:$0xff]
    %v150 = vld [vmem:[%s0 + $0xa8] sm:$0xff]
    %v151 = vld [vmem:[%s0 + $0xb0] sm:$0xff]
    %v152 = vld [vmem:[%s0 + $0xb8] sm:$0xff]
    %v153 = vld [vmem:[%s0 + $0xc0] sm:$0xff]
    %v154 = vld [vmem:[%s0 + $0xc8] sm:$0xff]
    %v155 = vld [vmem:[%s0 + $0xd0] sm:$0xff]
    %v156 = vld [vmem:[%s0 + $0xd8] sm:$0xff]
    %v157 = vld [vmem:[%s0 + $0xe0] sm:$0xff]
    %v158 = vld [vmem:[%s0 + $0xe8] sm:$0xff]
    %v159 = vld [vmem:[%s0 + $0xf0] sm:$0xff]
    %v160 = vld [vmem:[%s0 + $0xf8] sm:$0xff]
    %v161 = vld [vmem:[%s0 + $0x100] sm:$0xff]
    %v162 = vld [vmem:[%s0 + $0x108] sm:$0xff]
    %v163 = vld [vmem:[%s0 + $0x110] sm:$0xff]
    %v164 = vld [vmem:[%s0 + $0x118] sm:$0xff]
    %v165 = vld [vmem:[%s0 + $0x120] sm:$0xff]
    %v166 = vld [vmem:[%s0 + $0x128] sm:$0xff]
    %v167 = vld [vmem:[%s0 + $0x130] sm:$0xff]
    %v168 = vld [vmem:[%s0 + $0x138] sm:$0xff]
    %v169 = vld [vmem:[%s0 + $0x140] sm:$0xff]
    %v170 = vld [vmem:[%s0 + $0x148] sm:$0xff]
    %v171 = vld [vmem:[%s0 + $0x150] sm:$0xff]
    %v172 = vld [vmem:[%s0 + $0x158] sm:$0xff]
    %v173 = vld [vmem:[%s0 + $0x160] sm:$0xff]
    %v174 = vld [vmem:[%s0 + $0x168] sm:$0xff]
    %v175 = vld [vmem:[%s0 + $0x170] sm:$0xff]
    %v176 = vld [vmem:[%s0 + $0x178] sm:$0xff]
    %v177 = vld [vmem:[%s0 + $0x180] sm:$0xff]
    %v178 = vld [vmem:[%s0 + $0x188] sm:$0xff]
    %v179 = vld [vmem:[%s0 + $0x190] sm:$0xff]
    %v180 = vld [vmem:[%s0 + $0x198] sm:$0xff]
    %v181 = vld [vmem:[%s0 + $0x1a0] sm:$0xff]
    %v182 = vld [vmem:[%s0 + $0x1a8] sm:$0xff]
    %v183 = vld [vmem:[%s0 + $0x1b0] sm:$0xff]
    %v184 = vld [vmem:[%s0 + $0x1b8] sm:$0xff]
    %v185 = vld [vmem:[%s0 + $0x1c0] sm:$0xff]
    %v186 = vld [vmem:[%s0 + $0x1c8] sm:$0xff]
    %v187 = vld [vmem:[%s0 + $0x1d0] sm:$0xff]
    %v188 = vld [vmem:[%s0 + $0x1d8] sm:$0xff]
    %v189 = vld [vmem:[%s0 + $0x1e0] sm:$0xff]
    %v190 = vld [vmem:[%s0 + $0x1e8] sm:$0xff]
    %v191 = vld [vmem:[%s0 + $0x1f0] sm:$0xff]
    %v192 = vld [vmem:[%s0 + $0x1f8] sm:$0xff]
    %s193 = scalar_lea.vmem [#allocation2], 24
    %194 = vst.msk [vmem:[%s193 + $0x1] sm:$0xff] %vm19, %v129
    %195 = vst.msk [vmem:[%s193 + $0x9] sm:$0xff] %vm19, %v130
    %196 = vst.msk [vmem:[%s193 + $0x19] sm:$0xff] %vm19, %v131
    %197 = vst.msk [vmem:[%s193 + $0x21] sm:$0xff] %vm19, %v132
    %198 = vst.msk [vmem:[%s193 + $0x31] sm:$0xff] %vm19, %v133
    %199 = vst.msk [vmem:[%s193 + $0x39] sm:$0xff] %vm19, %v134
    %200 = vst.msk [vmem:[%s193 + $0x49] sm:$0xff] %vm19, %v135
    %201 = vst.msk [vmem:[%s193 + $0x51] sm:$0xff] %vm19, %v136
    %202 = vst.msk [vmem:[%s193 + $0x61] sm:$0xff] %vm19, %v137
    %203 = vst.msk [vmem:[%s193 + $0x69] sm:$0xff] %vm19, %v138
    %204 = vst.msk [vmem:[%s193 + $0x79] sm:$0xff] %vm19, %v139
    %205 = vst.msk [vmem:[%s193 + $0x81] sm:$0xff] %vm19, %v140
    %206 = vst.msk [vmem:[%s193 + $0x91] sm:$0xff] %vm19, %v141
    %207 = vst.msk [vmem:[%s193 + $0x99] sm:$0xff] %vm19, %v142
    %208 = vst.msk [vmem:[%s193 + $0xa9] sm:$0xff] %vm19, %v143
    %209 = vst.msk [vmem:[%s193 + $0xb1] sm:$0xff] %vm19, %v144
    %210 = vst.msk [vmem:[%s193 + $0xc1] sm:$0xff] %vm19, %v145
    %211 = vst.msk [vmem:[%s193 + $0xc9] sm:$0xff] %vm19, %v146
    %212 = vst.msk [vmem:[%s193 + $0xd9] sm:$0xff] %vm19, %v147
    %213 = vst.msk [vmem:[%s193 + $0xe1] sm:$0xff] %vm19, %v148
    %214 = vst.msk [vmem:[%s193 + $0xf1] sm:$0xff] %vm19, %v149
    %215 = vst.msk [vmem:[%s193 + $0xf9] sm:$0xff] %vm19, %v150
    %216 = vst.msk [vmem:[%s193 + $0x109] sm:$0xff] %vm19, %v151
    %217 = vst.msk [vmem:[%s193 + $0x111] sm:$0xff] %vm19, %v152
    %218 = vst.msk [vmem:[%s193 + $0x121] sm:$0xff] %vm19, %v153
    %219 = vst.msk [vmem:[%s193 + $0x129] sm:$0xff] %vm19, %v154
    %220 = vst.msk [vmem:[%s193 + $0x139] sm:$0xff] %vm19, %v155
    %221 = vst.msk [vmem:[%s193 + $0x141] sm:$0xff] %vm19, %v156
    %222 = vst.msk [vmem:[%s193 + $0x151] sm:$0xff] %vm19, %v157
    %223 = vst.msk [vmem:[%s193 + $0x159] sm:$0xff] %vm19, %v158
    %224 = vst.msk [vmem:[%s193 + $0x169] sm:$0xff] %vm19, %v159
    %225 = vst.msk [vmem:[%s193 + $0x171] sm:$0xff] %vm19, %v160
    %226 = vst.msk [vmem:[%s193 + $0x1b1] sm:$0xff] %vm19, %v161
    %227 = vst.msk [vmem:[%s193 + $0x1b9] sm:$0xff] %vm19, %v162
    %228 = vst.msk [vmem:[%s193 + $0x1c9] sm:$0xff] %vm19, %v163
    %229 = vst.msk [vmem:[%s193 + $0x1d1] sm:$0xff] %vm19, %v164
    %230 = vst.msk [vmem:[%s193 + $0x1e1] sm:$0xff] %vm19, %v165
    %231 = vst.msk [vmem:[%s193 + $0x1e9] sm:$0xff] %vm19, %v166
    %232 = vst.msk [vmem:[%s193 + $0x1f9] sm:$0xff] %vm19, %v167
    %233 = vst.msk [vmem:[%s193 + $0x201] sm:$0xff] %vm19, %v168
    %234 = vst.msk [vmem:[%s193 + $0x211] sm:$0xff] %vm19, %v169
    %235 = vst.msk [vmem:[%s193 + $0x219] sm:$0xff] %vm19, %v170
    %236 = vst.msk [vmem:[%s193 + $0x229] sm:$0xff] %vm19, %v171
    %237 = vst.msk [vmem:[%s193 + $0x231] sm:$0xff] %vm19, %v172
    %238 = vst.msk [vmem:[%s193 + $0x241] sm:$0xff] %vm19, %v173
    %239 = vst.msk [vmem:[%s193 + $0x249] sm:$0xff] %vm19, %v174
    %240 = vst.msk [vmem:[%s193 + $0x259] sm:$0xff] %vm19, %v175
    %241 = vst.msk [vmem:[%s193 + $0x261] sm:$0xff] %vm19, %v176
    %242 = vst.msk [vmem:[%s193 + $0x271] sm:$0xff] %vm19, %v177
    %243 = vst.msk [vmem:[%s193 + $0x279] sm:$0xff] %vm19, %v178
    %244 = vst.msk [vmem:[%s193 + $0x289] sm:$0xff] %vm19, %v179
    %245 = vst.msk [vmem:[%s193 + $0x291] sm:$0xff] %vm19, %v180
    %246 = vst.msk [vmem:[%s193 + $0x2a1] sm:$0xff] %vm19, %v181
    %247 = vst.msk [vmem:[%s193 + $0x2a9] sm:$0xff] %vm19, %v182
    %248 = vst.msk [vmem:[%s193 + $0x2b9] sm:$0xff] %vm19, %v183
    %249 = vst.msk [vmem:[%s193 + $0x2c1] sm:$0xff] %vm19, %v184
    %250 = vst.msk [vmem:[%s193 + $0x2d1] sm:$0xff] %vm19, %v185
    %251 = vst.msk [vmem:[%s193 + $0x2d9] sm:$0xff] %vm19, %v186
    %252 = vst.msk [vmem:[%s193 + $0x2e9] sm:$0xff] %vm19, %v187
    %253 = vst.msk [vmem:[%s193 + $0x2f1] sm:$0xff] %vm19, %v188
    %254 = vst.msk [vmem:[%s193 + $0x301] sm:$0xff] %vm19, %v189
    %255 = vst.msk [vmem:[%s193 + $0x309] sm:$0xff] %vm19, %v190
    %256 = vst.msk [vmem:[%s193 + $0x319] sm:$0xff] %vm19, %v191
    %257 = vst.msk [vmem:[%s193 + $0x321] sm:$0xff] %vm19, %v192
    %v258 = vld [vmem:[#allocation2] sm:$0xff]
    %v259 = vld [vmem:[#allocation2 + $0x8] sm:$0xff]
    %v260 = vld [vmem:[#allocation2 + $0x18] sm:$0xff]
    %v261 = vld [vmem:[#allocation2 + $0x20] sm:$0xff]
    %v262 = vld [vmem:[#allocation2 + $0x30] sm:$0xff]
    %v263 = vld [vmem:[#allocation2 + $0x38] sm:$0xff]
    %v264 = vld [vmem:[#allocation2 + $0x48] sm:$0xff]
    %v265 = vld [vmem:[#allocation2 + $0x50] sm:$0xff]
    %v266 = vld [vmem:[#allocation2 + $0x60] sm:$0xff]
    %v267 = vld [vmem:[#allocation2 + $0x68] sm:$0xff]
    %v268 = vld [vmem:[#allocation2 + $0x78] sm:$0xff]
    %v269 = vld [vmem:[#allocation2 + $0x80] sm:$0xff]
    %v270 = vld [vmem:[#allocation2 + $0x90] sm:$0xff]
    %v271 = vld [vmem:[#allocation2 + $0x98] sm:$0xff]
    %v272 = vld [vmem:[#allocation2 + $0xa8] sm:$0xff]
    %v273 = vld [vmem:[#allocation2 + $0xb0] sm:$0xff]
    %v274 = vld [vmem:[#allocation2 + $0xc0] sm:$0xff]
    %v275 = vld [vmem:[#allocation2 + $0xc8] sm:$0xff]
    %v276 = vld [vmem:[#allocation2 + $0xd8] sm:$0xff]
    %v277 = vld [vmem:[#allocation2 + $0xe0] sm:$0xff]
    %v278 = vld [vmem:[#allocation2 + $0xf0] sm:$0xff]
    %v279 = vld [vmem:[#allocation2 + $0xf8] sm:$0xff]
    %v280 = vld [vmem:[#allocation2 + $0x108] sm:$0xff]
    %v281 = vld [vmem:[#allocation2 + $0x110] sm:$0xff]
    %v282 = vld [vmem:[#allocation2 + $0x120] sm:$0xff]
    %v283 = vld [vmem:[#allocation2 + $0x128] sm:$0xff]
    %v284 = vld [vmem:[#allocation2 + $0x138] sm:$0xff]
    %v285 = vld [vmem:[#allocation2 + $0x140] sm:$0xff]
    %v286 = vld [vmem:[#allocation2 + $0x150] sm:$0xff]
    %v287 = vld [vmem:[#allocation2 + $0x158] sm:$0xff]
    %v288 = vld [vmem:[#allocation2 + $0x168] sm:$0xff]
    %v289 = vld [vmem:[#allocation2 + $0x170] sm:$0xff]
    %v290 = vld [vmem:[#allocation2 + $0x1b0] sm:$0xff]
    %v291 = vld [vmem:[#allocation2 + $0x1b8] sm:$0xff]
    %v292 = vld [vmem:[#allocation2 + $0x1c8] sm:$0xff]
    %v293 = vld [vmem:[#allocation2 + $0x1d0] sm:$0xff]
    %v294 = vld [vmem:[#allocation2 + $0x1e0] sm:$0xff]
    %v295 = vld [vmem:[#allocation2 + $0x1e8] sm:$0xff]
    %v296 = vld [vmem:[#allocation2 + $0x1f8] sm:$0xff]
    %v297 = vld [vmem:[#allocation2 + $0x200] sm:$0xff]
    %v298 = vld [vmem:[#allocation2 + $0x210] sm:$0xff]
    %v299 = vld [vmem:[#allocation2 + $0x218] sm:$0xff]
    %v300 = vld [vmem:[#allocation2 + $0x228] sm:$0xff]
    %v301 = vld [vmem:[#allocation2 + $0x230] sm:$0xff]
    %v302 = vld [vmem:[#allocation2 + $0x240] sm:$0xff]
    %v303 = vld [vmem:[#allocation2 + $0x248] sm:$0xff]
    %v304 = vld [vmem:[#allocation2 + $0x258] sm:$0xff]
    %v305 = vld [vmem:[#allocation2 + $0x260] sm:$0xff]
    %v306 = vld [vmem:[#allocation2 + $0x270] sm:$0xff]
    %v307 = vld [vmem:[#allocation2 + $0x278] sm:$0xff]
    %v308 = vld [vmem:[#allocation2 + $0x288] sm:$0xff]
    %v309 = vld [vmem:[#allocation2 + $0x290] sm:$0xff]
    %v310 = vld [vmem:[#allocation2 + $0x2a0] sm:$0xff]
    %v311 = vld [vmem:[#allocation2 + $0x2a8] sm:$0xff]
    %v312 = vld [vmem:[#allocation2 + $0x2b8] sm:$0xff]
    %v313 = vld [vmem:[#allocation2 + $0x2c0] sm:$0xff]
    %v314 = vld [vmem:[#allocation2 + $0x2d0] sm:$0xff]
    %v315 = vld [vmem:[#allocation2 + $0x2d8] sm:$0xff]
    %v316 = vld [vmem:[#allocation2 + $0x2e8] sm:$0xff]
    %v317 = vld [vmem:[#allocation2 + $0x2f0] sm:$0xff]
    %v318 = vld [vmem:[#allocation2 + $0x300] sm:$0xff]
    %v319 = vld [vmem:[#allocation2 + $0x308] sm:$0xff]
    %v320 = vld [vmem:[#allocation2 + $0x318] sm:$0xff]
    %v321 = vld [vmem:[#allocation2 + $0x320] sm:$0xff]
    %v322 = vld [vmem:[#allocation2 + $0x1] sm:$0xff]
    %v323 = vld [vmem:[#allocation2 + $0x9] sm:$0xff]
    %v324 = vld [vmem:[#allocation2 + $0x19] sm:$0xff]
    %v325 = vld [vmem:[#allocation2 + $0x21] sm:$0xff]
    %v326 = vld [vmem:[#allocation2 + $0x31] sm:$0xff]
    %v327 = vld [vmem:[#allocation2 + $0x39] sm:$0xff]
    %v328 = vld [vmem:[#allocation2 + $0x49] sm:$0xff]
    %v329 = vld [vmem:[#allocation2 + $0x51] sm:$0xff]
    %v330 = vld [vmem:[#allocation2 + $0x61] sm:$0xff]
    %v331 = vld [vmem:[#allocation2 + $0x69] sm:$0xff]
    %v332 = vld [vmem:[#allocation2 + $0x79] sm:$0xff]
    %v333 = vld [vmem:[#allocation2 + $0x81] sm:$0xff]
    %v334 = vld [vmem:[#allocation2 + $0x91] sm:$0xff]
    %v335 = vld [vmem:[#allocation2 + $0x99] sm:$0xff]
    %v336 = vld [vmem:[#allocation2 + $0xa9] sm:$0xff]
    %v337 = vld [vmem:[#allocation2 + $0xb1] sm:$0xff]
    %v338 = vld [vmem:[#allocation2 + $0xc1] sm:$0xff]
    %v339 = vld [vmem:[#allocation2 + $0xc9] sm:$0xff]
    %v340 = vld [vmem:[#allocation2 + $0xd9] sm:$0xff]
    %v341 = vld [vmem:[#allocation2 + $0xe1] sm:$0xff]
    %v342 = vld [vmem:[#allocation2 + $0xf1] sm:$0xff]
    %v343 = vld [vmem:[#allocation2 + $0xf9] sm:$0xff]
    %v344 = vld [vmem:[#allocation2 + $0x109] sm:$0xff]
    %v345 = vld [vmem:[#allocation2 + $0x111] sm:$0xff]
    %v346 = vld [vmem:[#allocation2 + $0x121] sm:$0xff]
    %v347 = vld [vmem:[#allocation2 + $0x129] sm:$0xff]
    %v348 = vld [vmem:[#allocation2 + $0x139] sm:$0xff]
    %v349 = vld [vmem:[#allocation2 + $0x141] sm:$0xff]
    %v350 = vld [vmem:[#allocation2 + $0x151] sm:$0xff]
    %v351 = vld [vmem:[#allocation2 + $0x159] sm:$0xff]
    %v352 = vld [vmem:[#allocation2 + $0x169] sm:$0xff]
    %v353 = vld [vmem:[#allocation2 + $0x171] sm:$0xff]
    %v354 = vld [vmem:[#allocation2 + $0x1b1] sm:$0xff]
    %v355 = vld [vmem:[#allocation2 + $0x1b9] sm:$0xff]
    %v356 = vld [vmem:[#allocation2 + $0x1c9] sm:$0xff]
    %v357 = vld [vmem:[#allocation2 + $0x1d1] sm:$0xff]
    %v358 = vld [vmem:[#allocation2 + $0x1e1] sm:$0xff]
    %v359 = vld [vmem:[#allocation2 + $0x1e9] sm:$0xff]
    %v360 = vld [vmem:[#allocation2 + $0x1f9] sm:$0xff]
    %v361 = vld [vmem:[#allocation2 + $0x201] sm:$0xff]
    %v362 = vld [vmem:[#allocation2 + $0x211] sm:$0xff]
    %v363 = vld [vmem:[#allocation2 + $0x219] sm:$0xff]
    %v364 = vld [vmem:[#allocation2 + $0x229] sm:$0xff]
    %v365 = vld [vmem:[#allocation2 + $0x231] sm:$0xff]
    %v366 = vld [vmem:[#allocation2 + $0x241] sm:$0xff]
    %v367 = vld [vmem:[#allocation2 + $0x249] sm:$0xff]
    %v368 = vld [vmem:[#allocation2 + $0x259] sm:$0xff]
    %v369 = vld [vmem:[#allocation2 + $0x261] sm:$0xff]
    %v370 = vld [vmem:[#allocation2 + $0x271] sm:$0xff]
    %v371 = vld [vmem:[#allocation2 + $0x279] sm:$0xff]
    %v372 = vld [vmem:[#allocation2 + $0x289] sm:$0xff]
    %v373 = vld [vmem:[#allocation2 + $0x291] sm:$0xff]
    %v374 = vld [vmem:[#allocation2 + $0x2a1] sm:$0xff]
    %v375 = vld [vmem:[#allocation2 + $0x2a9] sm:$0xff]
    %v376 = vld [vmem:[#allocation2 + $0x2b9] sm:$0xff]
    %v377 = vld [vmem:[#allocation2 + $0x2c1] sm:$0xff]
    %v378 = vld [vmem:[#allocation2 + $0x2d1] sm:$0xff]
    %v379 = vld [vmem:[#allocation2 + $0x2d9] sm:$0xff]
    %v380 = vld [vmem:[#allocation2 + $0x2e9] sm:$0xff]
    %v381 = vld [vmem:[#allocation2 + $0x2f1] sm:$0xff]
    %v382 = vld [vmem:[#allocation2 + $0x301] sm:$0xff]
    %v383 = vld [vmem:[#allocation2 + $0x309] sm:$0xff]
    %v384 = vld [vmem:[#allocation2 + $0x319] sm:$0xff]
    %v385 = vld [vmem:[#allocation2 + $0x321] sm:$0xff]
    %v386 = vld [vmem:[#allocation2 + $0x2] sm:$0xff]
    %v387 = vld [vmem:[#allocation2 + $0xa] sm:$0xff]
    %v388 = vld [vmem:[#allocation2 + $0x1a] sm:$0xff]
    %v389 = vld [vmem:[#allocation2 + $0x22] sm:$0xff]
    %v390 = vld [vmem:[#allocation2 + $0x32] sm:$0xff]
    %v391 = vld [vmem:[#allocation2 + $0x3a] sm:$0xff]
    %v392 = vld [vmem:[#allocation2 + $0x4a] sm:$0xff]
    %v393 = vld [vmem:[#allocation2 + $0x52] sm:$0xff]
    %v394 = vld [vmem:[#allocation2 + $0x62] sm:$0xff]
    %v395 = vld [vmem:[#allocation2 + $0x6a] sm:$0xff]
    %v396 = vld [vmem:[#allocation2 + $0x7a] sm:$0xff]
    %v397 = vld [vmem:[#allocation2 + $0x82] sm:$0xff]
    %v398 = vld [vmem:[#allocation2 + $0x92] sm:$0xff]
    %v399 = vld [vmem:[#allocation2 + $0x9a] sm:$0xff]
    %v400 = vld [vmem:[#allocation2 + $0xaa] sm:$0xff]
    %v401 = vld [vmem:[#allocation2 + $0xb2] sm:$0xff]
    %v402 = vld [vmem:[#allocation2 + $0xc2] sm:$0xff]
    %v403 = vld [vmem:[#allocation2 + $0xca] sm:$0xff]
    %v404 = vld [vmem:[#allocation2 + $0xda] sm:$0xff]
    %v405 = vld [vmem:[#allocation2 + $0xe2] sm:$0xff]
    %v406 = vld [vmem:[#allocation2 + $0xf2] sm:$0xff]
    %v407 = vld [vmem:[#allocation2 + $0xfa] sm:$0xff]
    %v408 = vld [vmem:[#allocation2 + $0x10a] sm:$0xff]
    %v409 = vld [vmem:[#allocation2 + $0x112] sm:$0xff]
    %v410 = vld [vmem:[#allocation2 + $0x122] sm:$0xff]
    %v411 = vld [vmem:[#allocation2 + $0x12a] sm:$0xff]
    %v412 = vld [vmem:[#allocation2 + $0x13a] sm:$0xff]
    %v413 = vld [vmem:[#allocation2 + $0x142] sm:$0xff]
    %v414 = vld [vmem:[#allocation2 + $0x152] sm:$0xff]
    %v415 = vld [vmem:[#allocation2 + $0x15a] sm:$0xff]
    %v416 = vld [vmem:[#allocation2 + $0x16a] sm:$0xff]
    %v417 = vld [vmem:[#allocation2 + $0x172] sm:$0xff]
    %v418 = vld [vmem:[#allocation2 + $0x1b2] sm:$0xff]
    %v419 = vld [vmem:[#allocation2 + $0x1ba] sm:$0xff]
    %v420 = vld [vmem:[#allocation2 + $0x1ca] sm:$0xff]
    %v421 = vld [vmem:[#allocation2 + $0x1d2] sm:$0xff]
    %v422 = vld [vmem:[#allocation2 + $0x1e2] sm:$0xff]
    %v423 = vld [vmem:[#allocation2 + $0x1ea] sm:$0xff]
    %v424 = vld [vmem:[#allocation2 + $0x1fa] sm:$0xff]
    %v425 = vld [vmem:[#allocation2 + $0x202] sm:$0xff]
    %v426 = vld [vmem:[#allocation2 + $0x212] sm:$0xff]
    %v427 = vld [vmem:[#allocation2 + $0x21a] sm:$0xff]
    %v428 = vld [vmem:[#allocation2 + $0x22a] sm:$0xff]
    %v429 = vld [vmem:[#allocation2 + $0x232] sm:$0xff]
    %v430 = vld [vmem:[#allocation2 + $0x242] sm:$0xff]
    %v431 = vld [vmem:[#allocation2 + $0x24a] sm:$0xff]
    %v432 = vld [vmem:[#allocation2 + $0x25a] sm:$0xff]
    %v433 = vld [vmem:[#allocation2 + $0x262] sm:$0xff]
    %v434 = vld [vmem:[#allocation2 + $0x272] sm:$0xff]
    %v435 = vld [vmem:[#allocation2 + $0x27a] sm:$0xff]
    %v436 = vld [vmem:[#allocation2 + $0x28a] sm:$0xff]
    %v437 = vld [vmem:[#allocation2 + $0x292] sm:$0xff]
    %v438 = vld [vmem:[#allocation2 + $0x2a2] sm:$0xff]
    %v439 = vld [vmem:[#allocation2 + $0x2aa] sm:$0xff]
    %v440 = vld [vmem:[#allocation2 + $0x2ba] sm:$0xff]
    %v441 = vld [vmem:[#allocation2 + $0x2c2] sm:$0xff]
    %v442 = vld [vmem:[#allocation2 + $0x2d2] sm:$0xff]
    %v443 = vld [vmem:[#allocation2 + $0x2da] sm:$0xff]
    %v444 = vld [vmem:[#allocation2 + $0x2ea] sm:$0xff]
    %v445 = vld [vmem:[#allocation2 + $0x2f2] sm:$0xff]
    %v446 = vld [vmem:[#allocation2 + $0x302] sm:$0xff]
    %v447 = vld [vmem:[#allocation2 + $0x30a] sm:$0xff]
    %v448 = vld [vmem:[#allocation2 + $0x31a] sm:$0xff]
    %v449 = vld [vmem:[#allocation2 + $0x322] sm:$0xff]
    %v450 = vld [vmem:[%s193] sm:$0xff]
    %v451 = vld [vmem:[%s193 + $0x8] sm:$0xff]
    %v452 = vld [vmem:[%s193 + $0x18] sm:$0xff]
    %v453 = vld [vmem:[%s193 + $0x20] sm:$0xff]
    %v454 = vld [vmem:[%s193 + $0x30] sm:$0xff]
    %v455 = vld [vmem:[%s193 + $0x38] sm:$0xff]
    %v456 = vld [vmem:[%s193 + $0x48] sm:$0xff]
    %v457 = vld [vmem:[%s193 + $0x50] sm:$0xff]
    %v458 = vld [vmem:[%s193 + $0x60] sm:$0xff]
    %v459 = vld [vmem:[%s193 + $0x68] sm:$0xff]
    %v460 = vld [vmem:[%s193 + $0x78] sm:$0xff]
    %v461 = vld [vmem:[%s193 + $0x80] sm:$0xff]
    %v462 = vld [vmem:[%s193 + $0x90] sm:$0xff]
    %v463 = vld [vmem:[%s193 + $0x98] sm:$0xff]
    %v464 = vld [vmem:[%s193 + $0xa8] sm:$0xff]
    %v465 = vld [vmem:[%s193 + $0xb0] sm:$0xff]
    %v466 = vld [vmem:[%s193 + $0xc0] sm:$0xff]
    %v467 = vld [vmem:[%s193 + $0xc8] sm:$0xff]
    %v468 = vld [vmem:[%s193 + $0xd8] sm:$0xff]
    %v469 = vld [vmem:[%s193 + $0xe0] sm:$0xff]
    %v470 = vld [vmem:[%s193 + $0xf0] sm:$0xff]
    %v471 = vld [vmem:[%s193 + $0xf8] sm:$0xff]
    %v472 = vld [vmem:[%s193 + $0x108] sm:$0xff]
    %v473 = vld [vmem:[%s193 + $0x110] sm:$0xff]
    %v474 = vld [vmem:[%s193 + $0x120] sm:$0xff]
    %v475 = vld [vmem:[%s193 + $0x128] sm:$0xff]
    %v476 = vld [vmem:[%s193 + $0x138] sm:$0xff]
    %v477 = vld [vmem:[%s193 + $0x140] sm:$0xff]
    %v478 = vld [vmem:[%s193 + $0x150] sm:$0xff]
    %v479 = vld [vmem:[%s193 + $0x158] sm:$0xff]
    %v480 = vld [vmem:[%s193 + $0x168] sm:$0xff]
    %v481 = vld [vmem:[%s193 + $0x170] sm:$0xff]
    %v482 = vld [vmem:[%s193 + $0x1b0] sm:$0xff]
    %v483 = vld [vmem:[%s193 + $0x1b8] sm:$0xff]
    %v484 = vld [vmem:[%s193 + $0x1c8] sm:$0xff]
    %v485 = vld [vmem:[%s193 + $0x1d0] sm:$0xff]
    %v486 = vld [vmem:[%s193 + $0x1e0] sm:$0xff]
    %v487 = vld [vmem:[%s193 + $0x1e8] sm:$0xff]
    %v488 = vld [vmem:[%s193 + $0x1f8] sm:$0xff]
    %v489 = vld [vmem:[%s193 + $0x200] sm:$0xff]
    %v490 = vld [vmem:[%s193 + $0x210] sm:$0xff]
    %v491 = vld [vmem:[%s193 + $0x218] sm:$0xff]
    %v492 = vld [vmem:[%s193 + $0x228] sm:$0xff]
    %v493 = vld [vmem:[%s193 + $0x230] sm:$0xff]
    %v494 = vld [vmem:[%s193 + $0x240] sm:$0xff]
    %v495 = vld [vmem:[%s193 + $0x248] sm:$0xff]
    %v496 = vld [vmem:[%s193 + $0x258] sm:$0xff]
    %v497 = vld [vmem:[%s193 + $0x260] sm:$0xff]
    %v498 = vld [vmem:[%s193 + $0x270] sm:$0xff]
    %v499 = vld [vmem:[%s193 + $0x278] sm:$0xff]
    %v500 = vld [vmem:[%s193 + $0x288] sm:$0xff]
    %v501 = vld [vmem:[%s193 + $0x290] sm:$0xff]
    %v502 = vld [vmem:[%s193 + $0x2a0] sm:$0xff]
    %v503 = vld [vmem:[%s193 + $0x2a8] sm:$0xff]
    %v504 = vld [vmem:[%s193 + $0x2b8] sm:$0xff]
    %v505 = vld [vmem:[%s193 + $0x2c0] sm:$0xff]
    %v506 = vld [vmem:[%s193 + $0x2d0] sm:$0xff]
    %v507 = vld [vmem:[%s193 + $0x2d8] sm:$0xff]
    %v508 = vld [vmem:[%s193 + $0x2e8] sm:$0xff]
    %v509 = vld [vmem:[%s193 + $0x2f0] sm:$0xff]
    %v510 = vld [vmem:[%s193 + $0x300] sm:$0xff]
    %v511 = vld [vmem:[%s193 + $0x308] sm:$0xff]
    %v512 = vld [vmem:[%s193 + $0x318] sm:$0xff]
    %v513 = vld [vmem:[%s193 + $0x320] sm:$0xff]
    %v514 = vld [vmem:[%s193 + $0x1] sm:$0xff]
    %v515 = vld [vmem:[%s193 + $0x9] sm:$0xff]
    %v516 = vld [vmem:[%s193 + $0x19] sm:$0xff]
    %v517 = vld [vmem:[%s193 + $0x21] sm:$0xff]
    %v518 = vld [vmem:[%s193 + $0x31] sm:$0xff]
    %v519 = vld [vmem:[%s193 + $0x39] sm:$0xff]
    %v520 = vld [vmem:[%s193 + $0x49] sm:$0xff]
    %v521 = vld [vmem:[%s193 + $0x51] sm:$0xff]
    %v522 = vld [vmem:[%s193 + $0x61] sm:$0xff]
    %v523 = vld [vmem:[%s193 + $0x69] sm:$0xff]
    %v524 = vld [vmem:[%s193 + $0x79] sm:$0xff]
    %v525 = vld [vmem:[%s193 + $0x81] sm:$0xff]
    %v526 = vld [vmem:[%s193 + $0x91] sm:$0xff]
    %v527 = vld [vmem:[%s193 + $0x99] sm:$0xff]
    %v528 = vld [vmem:[%s193 + $0xa9] sm:$0xff]
    %v529 = vld [vmem:[%s193 + $0xb1] sm:$0xff]
    %v530 = vld [vmem:[%s193 + $0xc1] sm:$0xff]
    %v531 = vld [vmem:[%s193 + $0xc9] sm:$0xff]
    %v532 = vld [vmem:[%s193 + $0xd9] sm:$0xff]
    %v533 = vld [vmem:[%s193 + $0xe1] sm:$0xff]
    %v534 = vld [vmem:[%s193 + $0xf1] sm:$0xff]
    %v535 = vld [vmem:[%s193 + $0xf9] sm:$0xff]
    %v536 = vld [vmem:[%s193 + $0x109] sm:$0xff]
    %v537 = vld [vmem:[%s193 + $0x111] sm:$0xff]
    %v538 = vld [vmem:[%s193 + $0x121] sm:$0xff]
    %v539 = vld [vmem:[%s193 + $0x129] sm:$0xff]
    %v540 = vld [vmem:[%s193 + $0x139] sm:$0xff]
    %v541 = vld [vmem:[%s193 + $0x141] sm:$0xff]
    %v542 = vld [vmem:[%s193 + $0x151] sm:$0xff]
    %v543 = vld [vmem:[%s193 + $0x159] sm:$0xff]
    %v544 = vld [vmem:[%s193 + $0x169] sm:$0xff]
    %v545 = vld [vmem:[%s193 + $0x171] sm:$0xff]
    %v546 = vld [vmem:[%s193 + $0x1b1] sm:$0xff]
    %v547 = vld [vmem:[%s193 + $0x1b9] sm:$0xff]
    %v548 = vld [vmem:[%s193 + $0x1c9] sm:$0xff]
    %v549 = vld [vmem:[%s193 + $0x1d1] sm:$0xff]
    %v550 = vld [vmem:[%s193 + $0x1e1] sm:$0xff]
    %v551 = vld [vmem:[%s193 + $0x1e9] sm:$0xff]
    %v552 = vld [vmem:[%s193 + $0x1f9] sm:$0xff]
    %v553 = vld [vmem:[%s193 + $0x201] sm:$0xff]
    %v554 = vld [vmem:[%s193 + $0x211] sm:$0xff]
    %v555 = vld [vmem:[%s193 + $0x219] sm:$0xff]
    %v556 = vld [vmem:[%s193 + $0x229] sm:$0xff]
    %v557 = vld [vmem:[%s193 + $0x231] sm:$0xff]
    %v558 = vld [vmem:[%s193 + $0x241] sm:$0xff]
    %v559 = vld [vmem:[%s193 + $0x249] sm:$0xff]
    %v560 = vld [vmem:[%s193 + $0x259] sm:$0xff]
    %v561 = vld [vmem:[%s193 + $0x261] sm:$0xff]
    %v562 = vld [vmem:[%s193 + $0x271] sm:$0xff]
    %v563 = vld [vmem:[%s193 + $0x279] sm:$0xff]
    %v564 = vld [vmem:[%s193 + $0x289] sm:$0xff]
    %v565 = vld [vmem:[%s193 + $0x291] sm:$0xff]
    %v566 = vld [vmem:[%s193 + $0x2a1] sm:$0xff]
    %v567 = vld [vmem:[%s193 + $0x2a9] sm:$0xff]
    %v568 = vld [vmem:[%s193 + $0x2b9] sm:$0xff]
    %v569 = vld [vmem:[%s193 + $0x2c1] sm:$0xff]
    %v570 = vld [vmem:[%s193 + $0x2d1] sm:$0xff]
    %v571 = vld [vmem:[%s193 + $0x2d9] sm:$0xff]
    %v572 = vld [vmem:[%s193 + $0x2e9] sm:$0xff]
    %v573 = vld [vmem:[%s193 + $0x2f1] sm:$0xff]
    %v574 = vld [vmem:[%s193 + $0x301] sm:$0xff]
    %v575 = vld [vmem:[%s193 + $0x309] sm:$0xff]
    %v576 = vld [vmem:[%s193 + $0x319] sm:$0xff]
    %v577 = vld [vmem:[%s193 + $0x321] sm:$0xff]
    %v578 = vld [vmem:[%s193 + $0x2] sm:$0xff]
    %v579 = vld [vmem:[%s193 + $0xa] sm:$0xff]
    %v580 = vld [vmem:[%s193 + $0x1a] sm:$0xff]
    %v581 = vld [vmem:[%s193 + $0x22] sm:$0xff]
    %v582 = vld [vmem:[%s193 + $0x32] sm:$0xff]
    %v583 = vld [vmem:[%s193 + $0x3a] sm:$0xff]
    %v584 = vld [vmem:[%s193 + $0x4a] sm:$0xff]
    %v585 = vld [vmem:[%s193 + $0x52] sm:$0xff]
    %v586 = vld [vmem:[%s193 + $0x62] sm:$0xff]
    %v587 = vld [vmem:[%s193 + $0x6a] sm:$0xff]
    %v588 = vld [vmem:[%s193 + $0x7a] sm:$0xff]
    %v589 = vld [vmem:[%s193 + $0x82] sm:$0xff]
    %v590 = vld [vmem:[%s193 + $0x92] sm:$0xff]
    %v591 = vld [vmem:[%s193 + $0x9a] sm:$0xff]
    %v592 = vld [vmem:[%s193 + $0xaa] sm:$0xff]
    %v593 = vld [vmem:[%s193 + $0xb2] sm:$0xff]
    %v594 = vld [vmem:[%s193 + $0xc2] sm:$0xff]
    %v595 = vld [vmem:[%s193 + $0xca] sm:$0xff]
    %v596 = vld [vmem:[%s193 + $0xda] sm:$0xff]
    %v597 = vld [vmem:[%s193 + $0xe2] sm:$0xff]
    %v598 = vld [vmem:[%s193 + $0xf2] sm:$0xff]
    %v599 = vld [vmem:[%s193 + $0xfa] sm:$0xff]
    %v600 = vld [vmem:[%s193 + $0x10a] sm:$0xff]
    %v601 = vld [vmem:[%s193 + $0x112] sm:$0xff]
    %v602 = vld [vmem:[%s193 + $0x122] sm:$0xff]
    %v603 = vld [vmem:[%s193 + $0x12a] sm:$0xff]
    %v604 = vld [vmem:[%s193 + $0x13a] sm:$0xff]
    %v605 = vld [vmem:[%s193 + $0x142] sm:$0xff]
    %v606 = vld [vmem:[%s193 + $0x152] sm:$0xff]
    %v607 = vld [vmem:[%s193 + $0x15a] sm:$0xff]
    %v608 = vld [vmem:[%s193 + $0x16a] sm:$0xff]
    %v609 = vld [vmem:[%s193 + $0x172] sm:$0xff]
    %v610 = vld [vmem:[%s193 + $0x1b2] sm:$0xff]
    %v611 = vld [vmem:[%s193 + $0x1ba] sm:$0xff]
    %v612 = vld [vmem:[%s193 + $0x1ca] sm:$0xff]
    %v613 = vld [vmem:[%s193 + $0x1d2] sm:$0xff]
    %v614 = vld [vmem:[%s193 + $0x1e2] sm:$0xff]
    %v615 = vld [vmem:[%s193 + $0x1ea] sm:$0xff]
    %v616 = vld [vmem:[%s193 + $0x1fa] sm:$0xff]
    %v617 = vld [vmem:[%s193 + $0x202] sm:$0xff]
    %v618 = vld [vmem:[%s193 + $0x212] sm:$0xff]
    %v619 = vld [vmem:[%s193 + $0x21a] sm:$0xff]
    %v620 = vld [vmem:[%s193 + $0x22a] sm:$0xff]
    %v621 = vld [vmem:[%s193 + $0x232] sm:$0xff]
    %v622 = vld [vmem:[%s193 + $0x242] sm:$0xff]
    %v623 = vld [vmem:[%s193 + $0x24a] sm:$0xff]
    %v624 = vld [vmem:[%s193 + $0x25a] sm:$0xff]
    %v625 = vld [vmem:[%s193 + $0x262] sm:$0xff]
    %v626 = vld [vmem:[%s193 + $0x272] sm:$0xff]
    %v627 = vld [vmem:[%s193 + $0x27a] sm:$0xff]
    %v628 = vld [vmem:[%s193 + $0x28a] sm:$0xff]
    %v629 = vld [vmem:[%s193 + $0x292] sm:$0xff]
    %v630 = vld [vmem:[%s193 + $0x2a2] sm:$0xff]
    %v631 = vld [vmem:[%s193 + $0x2aa] sm:$0xff]
    %v632 = vld [vmem:[%s193 + $0x2ba] sm:$0xff]
    %v633 = vld [vmem:[%s193 + $0x2c2] sm:$0xff]
    %v634 = vld [vmem:[%s193 + $0x2d2] sm:$0xff]
    %v635 = vld [vmem:[%s193 + $0x2da] sm:$0xff]
    %v636 = vld [vmem:[%s193 + $0x2ea] sm:$0xff]
    %v637 = vld [vmem:[%s193 + $0x2f2] sm:$0xff]
    %v638 = vld [vmem:[%s193 + $0x302] sm:$0xff]
    %v639 = vld [vmem:[%s193 + $0x30a] sm:$0xff]
    %v640 = vld [vmem:[%s193 + $0x31a] sm:$0xff]
    %v641 = vld [vmem:[%s193 + $0x322] sm:$0xff]
    %s642 = scalar_lea.vmem [#allocation2], 48
    %v643 = vld [vmem:[%s642] sm:$0xff]
    %v644 = vld [vmem:[%s642 + $0x8] sm:$0xff]
    %v645 = vld [vmem:[%s642 + $0x18] sm:$0xff]
    %v646 = vld [vmem:[%s642 + $0x20] sm:$0xff]
    %v647 = vld [vmem:[%s642 + $0x30] sm:$0xff]
    %v648 = vld [vmem:[%s642 + $0x38] sm:$0xff]
    %v649 = vld [vmem:[%s642 + $0x48] sm:$0xff]
    %v650 = vld [vmem:[%s642 + $0x50] sm:$0xff]
    %v651 = vld [vmem:[%s642 + $0x60] sm:$0xff]
    %v652 = vld [vmem:[%s642 + $0x68] sm:$0xff]
    %v653 = vld [vmem:[%s642 + $0x78] sm:$0xff]
    %v654 = vld [vmem:[%s642 + $0x80] sm:$0xff]
    %v655 = vld [vmem:[%s642 + $0x90] sm:$0xff]
    %v656 = vld [vmem:[%s642 + $0x98] sm:$0xff]
    %v657 = vld [vmem:[%s642 + $0xa8] sm:$0xff]
    %v658 = vld [vmem:[%s642 + $0xb0] sm:$0xff]
    %v659 = vld [vmem:[%s642 + $0xc0] sm:$0xff]
    %v660 = vld [vmem:[%s642 + $0xc8] sm:$0xff]
    %v661 = vld [vmem:[%s642 + $0xd8] sm:$0xff]
    %v662 = vld [vmem:[%s642 + $0xe0] sm:$0xff]
    %v663 = vld [vmem:[%s642 + $0xf0] sm:$0xff]
    %v664 = vld [vmem:[%s642 + $0xf8] sm:$0xff]
    %v665 = vld [vmem:[%s642 + $0x108] sm:$0xff]
    %v666 = vld [vmem:[%s642 + $0x110] sm:$0xff]
    %v667 = vld [vmem:[%s642 + $0x120] sm:$0xff]
    %v668 = vld [vmem:[%s642 + $0x128] sm:$0xff]
    %v669 = vld [vmem:[%s642 + $0x138] sm:$0xff]
    %v670 = vld [vmem:[%s642 + $0x140] sm:$0xff]
    %v671 = vld [vmem:[%s642 + $0x150] sm:$0xff]
    %v672 = vld [vmem:[%s642 + $0x158] sm:$0xff]
    %v673 = vld [vmem:[%s642 + $0x168] sm:$0xff]
    %v674 = vld [vmem:[%s642 + $0x170] sm:$0xff]
    %v675 = vld [vmem:[%s642 + $0x1b0] sm:$0xff]
    %v676 = vld [vmem:[%s642 + $0x1b8] sm:$0xff]
    %v677 = vld [vmem:[%s642 + $0x1c8] sm:$0xff]
    %v678 = vld [vmem:[%s642 + $0x1d0] sm:$0xff]
    %v679 = vld [vmem:[%s642 + $0x1e0] sm:$0xff]
    %v680 = vld [vmem:[%s642 + $0x1e8] sm:$0xff]
    %v681 = vld [vmem:[%s642 + $0x1f8] sm:$0xff]
    %v682 = vld [vmem:[%s642 + $0x200] sm:$0xff]
    %v683 = vld [vmem:[%s642 + $0x210] sm:$0xff]
    %v684 = vld [vmem:[%s642 + $0x218] sm:$0xff]
    %v685 = vld [vmem:[%s642 + $0x228] sm:$0xff]
    %v686 = vld [vmem:[%s642 + $0x230] sm:$0xff]
    %v687 = vld [vmem:[%s642 + $0x240] sm:$0xff]
    %v688 = vld [vmem:[%s642 + $0x248] sm:$0xff]
    %v689 = vld [vmem:[%s642 + $0x258] sm:$0xff]
    %v690 = vld [vmem:[%s642 + $0x260] sm:$0xff]
    %v691 = vld [vmem:[%s642 + $0x270] sm:$0xff]
    %v692 = vld [vmem:[%s642 + $0x278] sm:$0xff]
    %v693 = vld [vmem:[%s642 + $0x288] sm:$0xff]
    %v694 = vld [vmem:[%s642 + $0x290] sm:$0xff]
    %v695 = vld [vmem:[%s642 + $0x2a0] sm:$0xff]
    %v696 = vld [vmem:[%s642 + $0x2a8] sm:$0xff]
    %v697 = vld [vmem:[%s642 + $0x2b8] sm:$0xff]
    %v698 = vld [vmem:[%s642 + $0x2c0] sm:$0xff]
    %v699 = vld [vmem:[%s642 + $0x2d0] sm:$0xff]
    %v700 = vld [vmem:[%s642 + $0x2d8] sm:$0xff]
    %v701 = vld [vmem:[%s642 + $0x2e8] sm:$0xff]
    %v702 = vld [vmem:[%s642 + $0x2f0] sm:$0xff]
    %v703 = vld [vmem:[%s642 + $0x300] sm:$0xff]
    %v704 = vld [vmem:[%s642 + $0x308] sm:$0xff]
    %v705 = vld [vmem:[%s642 + $0x318] sm:$0xff]
    %v706 = vld [vmem:[%s642 + $0x320] sm:$0xff]
    %v707 = vld [vmem:[%s642 + $0x1] sm:$0xff]
    %v708 = vld [vmem:[%s642 + $0x9] sm:$0xff]
    %v709 = vld [vmem:[%s642 + $0x19] sm:$0xff]
    %v710 = vld [vmem:[%s642 + $0x21] sm:$0xff]
    %v711 = vld [vmem:[%s642 + $0x31] sm:$0xff]
    %v712 = vld [vmem:[%s642 + $0x39] sm:$0xff]
    %v713 = vld [vmem:[%s642 + $0x49] sm:$0xff]
    %v714 = vld [vmem:[%s642 + $0x51] sm:$0xff]
    %v715 = vld [vmem:[%s642 + $0x61] sm:$0xff]
    %v716 = vld [vmem:[%s642 + $0x69] sm:$0xff]
    %v717 = vld [vmem:[%s642 + $0x79] sm:$0xff]
    %v718 = vld [vmem:[%s642 + $0x81] sm:$0xff]
    %v719 = vld [vmem:[%s642 + $0x91] sm:$0xff]
    %v720 = vld [vmem:[%s642 + $0x99] sm:$0xff]
    %v721 = vld [vmem:[%s642 + $0xa9] sm:$0xff]
    %v722 = vld [vmem:[%s642 + $0xb1] sm:$0xff]
    %v723 = vld [vmem:[%s642 + $0xc1] sm:$0xff]
    %v724 = vld [vmem:[%s642 + $0xc9] sm:$0xff]
    %v725 = vld [vmem:[%s642 + $0xd9] sm:$0xff]
    %v726 = vld [vmem:[%s642 + $0xe1] sm:$0xff]
    %v727 = vld [vmem:[%s642 + $0xf1] sm:$0xff]
    %v728 = vld [vmem:[%s642 + $0xf9] sm:$0xff]
    %v729 = vld [vmem:[%s642 + $0x109] sm:$0xff]
    %v730 = vld [vmem:[%s642 + $0x111] sm:$0xff]
    %v731 = vld [vmem:[%s642 + $0x121] sm:$0xff]
    %v732 = vld [vmem:[%s642 + $0x129] sm:$0xff]
    %v733 = vld [vmem:[%s642 + $0x139] sm:$0xff]
    %v734 = vld [vmem:[%s642 + $0x141] sm:$0xff]
    %v735 = vld [vmem:[%s642 + $0x151] sm:$0xff]
    %v736 = vld [vmem:[%s642 + $0x159] sm:$0xff]
    %v737 = vld [vmem:[%s642 + $0x169] sm:$0xff]
    %v738 = vld [vmem:[%s642 + $0x171] sm:$0xff]
    %v739 = vld [vmem:[%s642 + $0x1b1] sm:$0xff]
    %v740 = vld [vmem:[%s642 + $0x1b9] sm:$0xff]
    %v741 = vld [vmem:[%s642 + $0x1c9] sm:$0xff]
    %v742 = vld [vmem:[%s642 + $0x1d1] sm:$0xff]
    %v743 = vld [vmem:[%s642 + $0x1e1] sm:$0xff]
    %v744 = vld [vmem:[%s642 + $0x1e9] sm:$0xff]
    %v745 = vld [vmem:[%s642 + $0x1f9] sm:$0xff]
    %v746 = vld [vmem:[%s642 + $0x201] sm:$0xff]
    %v747 = vld [vmem:[%s642 + $0x211] sm:$0xff]
    %v748 = vld [vmem:[%s642 + $0x219] sm:$0xff]
    %v749 = vld [vmem:[%s642 + $0x229] sm:$0xff]
    %v750 = vld [vmem:[%s642 + $0x231] sm:$0xff]
    %v751 = vld [vmem:[%s642 + $0x241] sm:$0xff]
    %v752 = vld [vmem:[%s642 + $0x249] sm:$0xff]
    %v753 = vld [vmem:[%s642 + $0x259] sm:$0xff]
    %v754 = vld [vmem:[%s642 + $0x261] sm:$0xff]
    %v755 = vld [vmem:[%s642 + $0x271] sm:$0xff]
    %v756 = vld [vmem:[%s642 + $0x279] sm:$0xff]
    %v757 = vld [vmem:[%s642 + $0x289] sm:$0xff]
    %v758 = vld [vmem:[%s642 + $0x291] sm:$0xff]
    %v759 = vld [vmem:[%s642 + $0x2a1] sm:$0xff]
    %v760 = vld [vmem:[%s642 + $0x2a9] sm:$0xff]
    %v761 = vld [vmem:[%s642 + $0x2b9] sm:$0xff]
    %v762 = vld [vmem:[%s642 + $0x2c1] sm:$0xff]
    %v763 = vld [vmem:[%s642 + $0x2d1] sm:$0xff]
    %v764 = vld [vmem:[%s642 + $0x2d9] sm:$0xff]
    %v765 = vld [vmem:[%s642 + $0x2e9] sm:$0xff]
    %v766 = vld [vmem:[%s642 + $0x2f1] sm:$0xff]
    %v767 = vld [vmem:[%s642 + $0x301] sm:$0xff]
    %v768 = vld [vmem:[%s642 + $0x309] sm:$0xff]
    %v769 = vld [vmem:[%s642 + $0x319] sm:$0xff]
    %v770 = vld [vmem:[%s642 + $0x321] sm:$0xff]
    %v771 = vld [vmem:[%s642 + $0x2] sm:$0xff]
    %v772 = vld [vmem:[%s642 + $0xa] sm:$0xff]
    %v773 = vld [vmem:[%s642 + $0x1a] sm:$0xff]
    %v774 = vld [vmem:[%s642 + $0x22] sm:$0xff]
    %v775 = vld [vmem:[%s642 + $0x32] sm:$0xff]
    %v776 = vld [vmem:[%s642 + $0x3a] sm:$0xff]
    %v777 = vld [vmem:[%s642 + $0x4a] sm:$0xff]
    %v778 = vld [vmem:[%s642 + $0x52] sm:$0xff]
    %v779 = vld [vmem:[%s642 + $0x62] sm:$0xff]
    %v780 = vld [vmem:[%s642 + $0x6a] sm:$0xff]
    %v781 = vld [vmem:[%s642 + $0x7a] sm:$0xff]
    %v782 = vld [vmem:[%s642 + $0x82] sm:$0xff]
    %v783 = vld [vmem:[%s642 + $0x92] sm:$0xff]
    %v784 = vld [vmem:[%s642 + $0x9a] sm:$0xff]
    %v785 = vld [vmem:[%s642 + $0xaa] sm:$0xff]
    %v786 = vld [vmem:[%s642 + $0xb2] sm:$0xff]
    %v787 = vld [vmem:[%s642 + $0xc2] sm:$0xff]
    %v788 = vld [vmem:[%s642 + $0xca] sm:$0xff]
    %v789 = vld [vmem:[%s642 + $0xda] sm:$0xff]
    %v790 = vld [vmem:[%s642 + $0xe2] sm:$0xff]
    %v791 = vld [vmem:[%s642 + $0xf2] sm:$0xff]
    %v792 = vld [vmem:[%s642 + $0xfa] sm:$0xff]
    %v793 = vld [vmem:[%s642 + $0x10a] sm:$0xff]
    %v794 = vld [vmem:[%s642 + $0x112] sm:$0xff]
    %v795 = vld [vmem:[%s642 + $0x122] sm:$0xff]
    %v796 = vld [vmem:[%s642 + $0x12a] sm:$0xff]
    %v797 = vld [vmem:[%s642 + $0x13a] sm:$0xff]
    %v798 = vld [vmem:[%s642 + $0x142] sm:$0xff]
    %v799 = vld [vmem:[%s642 + $0x152] sm:$0xff]
    %v800 = vld [vmem:[%s642 + $0x15a] sm:$0xff]
    %v801 = vld [vmem:[%s642 + $0x16a] sm:$0xff]
    %v802 = vld [vmem:[%s642 + $0x172] sm:$0xff]
    %v803 = vld [vmem:[%s642 + $0x1b2] sm:$0xff]
    %v804 = vld [vmem:[%s642 + $0x1ba] sm:$0xff]
    %v805 = vld [vmem:[%s642 + $0x1ca] sm:$0xff]
    %v806 = vld [vmem:[%s642 + $0x1d2] sm:$0xff]
    %v807 = vld [vmem:[%s642 + $0x1e2] sm:$0xff]
    %v808 = vld [vmem:[%s642 + $0x1ea] sm:$0xff]
    %v809 = vld [vmem:[%s642 + $0x1fa] sm:$0xff]
    %v810 = vld [vmem:[%s642 + $0x202] sm:$0xff]
    %v811 = vld [vmem:[%s642 + $0x212] sm:$0xff]
    %v812 = vld [vmem:[%s642 + $0x21a] sm:$0xff]
    %v813 = vld [vmem:[%s642 + $0x22a] sm:$0xff]
    %v814 = vld [vmem:[%s642 + $0x232] sm:$0xff]
    %v815 = vld [vmem:[%s642 + $0x242] sm:$0xff]
    %v816 = vld [vmem:[%s642 + $0x24a] sm:$0xff]
    %v817 = vld [vmem:[%s642 + $0x25a] sm:$0xff]
    %v818 = vld [vmem:[%s642 + $0x262] sm:$0xff]
    %v819 = vld [vmem:[%s642 + $0x272] sm:$0xff]
    %v820 = vld [vmem:[%s642 + $0x27a] sm:$0xff]
    %v821 = vld [vmem:[%s642 + $0x28a] sm:$0xff]
    %v822 = vld [vmem:[%s642 + $0x292] sm:$0xff]
    %v823 = vld [vmem:[%s642 + $0x2a2] sm:$0xff]
    %v824 = vld [vmem:[%s642 + $0x2aa] sm:$0xff]
    %v825 = vld [vmem:[%s642 + $0x2ba] sm:$0xff]
    %v826 = vld [vmem:[%s642 + $0x2c2] sm:$0xff]
    %v827 = vld [vmem:[%s642 + $0x2d2] sm:$0xff]
    %v828 = vld [vmem:[%s642 + $0x2da] sm:$0xff]
    %v829 = vld [vmem:[%s642 + $0x2ea] sm:$0xff]
    %v830 = vld [vmem:[%s642 + $0x2f2] sm:$0xff]
    %v831 = vld [vmem:[%s642 + $0x302] sm:$0xff]
    %v832 = vld [vmem:[%s642 + $0x30a] sm:$0xff]
    %v833 = vld [vmem:[%s642 + $0x31a] sm:$0xff]
    %v834 = vld [vmem:[%s642 + $0x322] sm:$0xff]
    %899 = vrot.lane.b32.xlu0 %v322, 4
    %v900 = vpop.permute.xlu0 %899
    %901 = vrot.lane.b32.xlu0 %v323, 4
    %v902 = vpop.permute.xlu0 %901
    %903 = vrot.lane.b32.xlu0 %v324, 4
    %v904 = vpop.permute.xlu0 %903
    %905 = vrot.lane.b32.xlu0 %v325, 4
    %v906 = vpop.permute.xlu0 %905
    %907 = vrot.lane.b32.xlu0 %v326, 4
    %v908 = vpop.permute.xlu0 %907
    %909 = vrot.lane.b32.xlu0 %v327, 4
    %v910 = vpop.permute.xlu0 %909
    %911 = vrot.lane.b32.xlu0 %v328, 4
    %v912 = vpop.permute.xlu0 %911
    %913 = vrot.lane.b32.xlu0 %v329, 4
    %v914 = vpop.permute.xlu0 %913
    %915 = vrot.lane.b32.xlu0 %v330, 4
    %v916 = vpop.permute.xlu0 %915
    %917 = vrot.lane.b32.xlu0 %v331, 4
    %v918 = vpop.permute.xlu0 %917
    %919 = vrot.lane.b32.xlu0 %v332, 4
    %v920 = vpop.permute.xlu0 %919
    %921 = vrot.lane.b32.xlu0 %v333, 4
    %v922 = vpop.permute.xlu0 %921
    %923 = vrot.lane.b32.xlu0 %v334, 4
    %v924 = vpop.permute.xlu0 %923
    %925 = vrot.lane.b32.xlu0 %v335, 4
    %v926 = vpop.permute.xlu0 %925
    %927 = vrot.lane.b32.xlu0 %v336, 4
    %v928 = vpop.permute.xlu0 %927
    %929 = vrot.lane.b32.xlu0 %v337, 4
    %v930 = vpop.permute.xlu0 %929
    %931 = vrot.lane.b32.xlu0 %v338, 4
    %v932 = vpop.permute.xlu0 %931
    %933 = vrot.lane.b32.xlu0 %v339, 4
    %v934 = vpop.permute.xlu0 %933
    %935 = vrot.lane.b32.xlu0 %v340, 4
    %v936 = vpop.permute.xlu0 %935
    %937 = vrot.lane.b32.xlu0 %v341, 4
    %v938 = vpop.permute.xlu0 %937
    %939 = vrot.lane.b32.xlu0 %v342, 4
    %v940 = vpop.permute.xlu0 %939
    %941 = vrot.lane.b32.xlu0 %v343, 4
    %v942 = vpop.permute.xlu0 %941
    %943 = vrot.lane.b32.xlu0 %v344, 4
    %v944 = vpop.permute.xlu0 %943
    %945 = vrot.lane.b32.xlu0 %v345, 4
    %v946 = vpop.permute.xlu0 %945
    %947 = vrot.lane.b32.xlu0 %v346, 4
    %v948 = vpop.permute.xlu0 %947
    %949 = vrot.lane.b32.xlu0 %v347, 4
    %v950 = vpop.permute.xlu0 %949
    %951 = vrot.lane.b32.xlu0 %v348, 4
    %v952 = vpop.permute.xlu0 %951
    %953 = vrot.lane.b32.xlu0 %v349, 4
    %v954 = vpop.permute.xlu0 %953
    %955 = vrot.lane.b32.xlu0 %v350, 4
    %v956 = vpop.permute.xlu0 %955
    %957 = vrot.lane.b32.xlu0 %v351, 4
    %v958 = vpop.permute.xlu0 %957
    %959 = vrot.lane.b32.xlu0 %v352, 4
    %v960 = vpop.permute.xlu0 %959
    %961 = vrot.lane.b32.xlu0 %v353, 4
    %v962 = vpop.permute.xlu0 %961
    %963 = vrot.lane.b32.xlu0 %v354, 4
    %v964 = vpop.permute.xlu0 %963
    %965 = vrot.lane.b32.xlu0 %v355, 4
    %v966 = vpop.permute.xlu0 %965
    %967 = vrot.lane.b32.xlu0 %v356, 4
    %v968 = vpop.permute.xlu0 %967
    %969 = vrot.lane.b32.xlu0 %v357, 4
    %v970 = vpop.permute.xlu0 %969
    %971 = vrot.lane.b32.xlu0 %v358, 4
    %v972 = vpop.permute.xlu0 %971
    %973 = vrot.lane.b32.xlu0 %v359, 4
    %v974 = vpop.permute.xlu0 %973
    %975 = vrot.lane.b32.xlu0 %v360, 4
    %v976 = vpop.permute.xlu0 %975
    %977 = vrot.lane.b32.xlu0 %v361, 4
    %v978 = vpop.permute.xlu0 %977
    %979 = vrot.lane.b32.xlu0 %v362, 4
    %v980 = vpop.permute.xlu0 %979
    %981 = vrot.lane.b32.xlu0 %v363, 4
    %v982 = vpop.permute.xlu0 %981
    %983 = vrot.lane.b32.xlu0 %v364, 4
    %v984 = vpop.permute.xlu0 %983
    %985 = vrot.lane.b32.xlu0 %v365, 4
    %v986 = vpop.permute.xlu0 %985
    %987 = vrot.lane.b32.xlu0 %v366, 4
    %v988 = vpop.permute.xlu0 %987
    %989 = vrot.lane.b32.xlu0 %v367, 4
    %v990 = vpop.permute.xlu0 %989
    %991 = vrot.lane.b32.xlu0 %v368, 4
    %v992 = vpop.permute.xlu0 %991
    %993 = vrot.lane.b32.xlu0 %v369, 4
    %v994 = vpop.permute.xlu0 %993
    %995 = vrot.lane.b32.xlu0 %v370, 4
    %v996 = vpop.permute.xlu0 %995
    %997 = vrot.lane.b32.xlu0 %v371, 4
    %v998 = vpop.permute.xlu0 %997
    %999 = vrot.lane.b32.xlu0 %v372, 4
    %v1000 = vpop.permute.xlu0 %999
    %1001 = vrot.lane.b32.xlu0 %v373, 4
    %v1002 = vpop.permute.xlu0 %1001
    %1003 = vrot.lane.b32.xlu0 %v374, 4
    %v1004 = vpop.permute.xlu0 %1003
    %1005 = vrot.lane.b32.xlu0 %v375, 4
    %v1006 = vpop.permute.xlu0 %1005
    %1007 = vrot.lane.b32.xlu0 %v376, 4
    %v1008 = vpop.permute.xlu0 %1007
    %1009 = vrot.lane.b32.xlu0 %v377, 4
    %v1010 = vpop.permute.xlu0 %1009
    %1011 = vrot.lane.b32.xlu0 %v378, 4
    %v1012 = vpop.permute.xlu0 %1011
    %1013 = vrot.lane.b32.xlu0 %v379, 4
    %v1014 = vpop.permute.xlu0 %1013
    %1015 = vrot.lane.b32.xlu0 %v380, 4
    %v1016 = vpop.permute.xlu0 %1015
    %1017 = vrot.lane.b32.xlu0 %v381, 4
    %v1018 = vpop.permute.xlu0 %1017
    %1019 = vrot.lane.b32.xlu0 %v382, 4
    %v1020 = vpop.permute.xlu0 %1019
    %1021 = vrot.lane.b32.xlu0 %v383, 4
    %v1022 = vpop.permute.xlu0 %1021
    %1023 = vrot.lane.b32.xlu0 %v384, 4
    %v1024 = vpop.permute.xlu0 %1023
    %1025 = vrot.lane.b32.xlu0 %v385, 4
    %v1026 = vpop.permute.xlu0 %1025
    %1155 = vrot.lane.b32.xlu0 %v386, 8
    %v1156 = vpop.permute.xlu0 %1155
    %1157 = vrot.lane.b32.xlu0 %v387, 8
    %v1158 = vpop.permute.xlu0 %1157
    %1159 = vrot.lane.b32.xlu0 %v388, 8
    %v1160 = vpop.permute.xlu0 %1159
    %1161 = vrot.lane.b32.xlu0 %v389, 8
    %v1162 = vpop.permute.xlu0 %1161
    %1163 = vrot.lane.b32.xlu0 %v390, 8
    %v1164 = vpop.permute.xlu0 %1163
    %1165 = vrot.lane.b32.xlu0 %v391, 8
    %v1166 = vpop.permute.xlu0 %1165
    %1167 = vrot.lane.b32.xlu0 %v392, 8
    %v1168 = vpop.permute.xlu0 %1167
    %1169 = vrot.lane.b32.xlu0 %v393, 8
    %v1170 = vpop.permute.xlu0 %1169
    %1171 = vrot.lane.b32.xlu0 %v394, 8
    %v1172 = vpop.permute.xlu0 %1171
    %1173 = vrot.lane.b32.xlu0 %v395, 8
    %v1174 = vpop.permute.xlu0 %1173
    %1175 = vrot.lane.b32.xlu0 %v396, 8
    %v1176 = vpop.permute.xlu0 %1175
    %1177 = vrot.lane.b32.xlu0 %v397, 8
    %v1178 = vpop.permute.xlu0 %1177
    %1179 = vrot.lane.b32.xlu0 %v398, 8
    %v1180 = vpop.permute.xlu0 %1179
    %1181 = vrot.lane.b32.xlu0 %v399, 8
    %v1182 = vpop.permute.xlu0 %1181
    %1183 = vrot.lane.b32.xlu0 %v400, 8
    %v1184 = vpop.permute.xlu0 %1183
    %1185 = vrot.lane.b32.xlu0 %v401, 8
    %v1186 = vpop.permute.xlu0 %1185
    %1187 = vrot.lane.b32.xlu0 %v402, 8
    %v1188 = vpop.permute.xlu0 %1187
    %1189 = vrot.lane.b32.xlu0 %v403, 8
    %v1190 = vpop.permute.xlu0 %1189
    %1191 = vrot.lane.b32.xlu0 %v404, 8
    %v1192 = vpop.permute.xlu0 %1191
    %1193 = vrot.lane.b32.xlu0 %v405, 8
    %v1194 = vpop.permute.xlu0 %1193
    %1195 = vrot.lane.b32.xlu0 %v406, 8
    %v1196 = vpop.permute.xlu0 %1195
    %1197 = vrot.lane.b32.xlu0 %v407, 8
    %v1198 = vpop.permute.xlu0 %1197
    %1199 = vrot.lane.b32.xlu0 %v408, 8
    %v1200 = vpop.permute.xlu0 %1199
    %1201 = vrot.lane.b32.xlu0 %v409, 8
    %v1202 = vpop.permute.xlu0 %1201
    %1203 = vrot.lane.b32.xlu0 %v410, 8
    %v1204 = vpop.permute.xlu0 %1203
    %1205 = vrot.lane.b32.xlu0 %v411, 8
    %v1206 = vpop.permute.xlu0 %1205
    %1207 = vrot.lane.b32.xlu0 %v412, 8
    %v1208 = vpop.permute.xlu0 %1207
    %1209 = vrot.lane.b32.xlu0 %v413, 8
    %v1210 = vpop.permute.xlu0 %1209
    %1211 = vrot.lane.b32.xlu0 %v414, 8
    %v1212 = vpop.permute.xlu0 %1211
    %1213 = vrot.lane.b32.xlu0 %v415, 8
    %v1214 = vpop.permute.xlu0 %1213
    %1215 = vrot.lane.b32.xlu0 %v416, 8
    %v1216 = vpop.permute.xlu0 %1215
    %1217 = vrot.lane.b32.xlu0 %v417, 8
    %v1218 = vpop.permute.xlu0 %1217
    %1219 = vrot.lane.b32.xlu0 %v418, 8
    %v1220 = vpop.permute.xlu0 %1219
    %1221 = vrot.lane.b32.xlu0 %v419, 8
    %v1222 = vpop.permute.xlu0 %1221
    %1223 = vrot.lane.b32.xlu0 %v420, 8
    %v1224 = vpop.permute.xlu0 %1223
    %1225 = vrot.lane.b32.xlu0 %v421, 8
    %v1226 = vpop.permute.xlu0 %1225
    %1227 = vrot.lane.b32.xlu0 %v422, 8
    %v1228 = vpop.permute.xlu0 %1227
    %1229 = vrot.lane.b32.xlu0 %v423, 8
    %v1230 = vpop.permute.xlu0 %1229
    %1231 = vrot.lane.b32.xlu0 %v424, 8
    %v1232 = vpop.permute.xlu0 %1231
    %1233 = vrot.lane.b32.xlu0 %v425, 8
    %v1234 = vpop.permute.xlu0 %1233
    %1235 = vrot.lane.b32.xlu0 %v426, 8
    %v1236 = vpop.permute.xlu0 %1235
    %1237 = vrot.lane.b32.xlu0 %v427, 8
    %v1238 = vpop.permute.xlu0 %1237
    %1239 = vrot.lane.b32.xlu0 %v428, 8
    %v1240 = vpop.permute.xlu0 %1239
    %1241 = vrot.lane.b32.xlu0 %v429, 8
    %v1242 = vpop.permute.xlu0 %1241
    %1243 = vrot.lane.b32.xlu0 %v430, 8
    %v1244 = vpop.permute.xlu0 %1243
    %1245 = vrot.lane.b32.xlu0 %v431, 8
    %v1246 = vpop.permute.xlu0 %1245
    %1247 = vrot.lane.b32.xlu0 %v432, 8
    %v1248 = vpop.permute.xlu0 %1247
    %1249 = vrot.lane.b32.xlu0 %v433, 8
    %v1250 = vpop.permute.xlu0 %1249
    %1251 = vrot.lane.b32.xlu0 %v434, 8
    %v1252 = vpop.permute.xlu0 %1251
    %1253 = vrot.lane.b32.xlu0 %v435, 8
    %v1254 = vpop.permute.xlu0 %1253
    %1255 = vrot.lane.b32.xlu0 %v436, 8
    %v1256 = vpop.permute.xlu0 %1255
    %1257 = vrot.lane.b32.xlu0 %v437, 8
    %v1258 = vpop.permute.xlu0 %1257
    %1259 = vrot.lane.b32.xlu0 %v438, 8
    %v1260 = vpop.permute.xlu0 %1259
    %1261 = vrot.lane.b32.xlu0 %v439, 8
    %v1262 = vpop.permute.xlu0 %1261
    %1263 = vrot.lane.b32.xlu0 %v440, 8
    %v1264 = vpop.permute.xlu0 %1263
    %1265 = vrot.lane.b32.xlu0 %v441, 8
    %v1266 = vpop.permute.xlu0 %1265
    %1267 = vrot.lane.b32.xlu0 %v442, 8
    %v1268 = vpop.permute.xlu0 %1267
    %1269 = vrot.lane.b32.xlu0 %v443, 8
    %v1270 = vpop.permute.xlu0 %1269
    %1271 = vrot.lane.b32.xlu0 %v444, 8
    %v1272 = vpop.permute.xlu0 %1271
    %1273 = vrot.lane.b32.xlu0 %v445, 8
    %v1274 = vpop.permute.xlu0 %1273
    %1275 = vrot.lane.b32.xlu0 %v446, 8
    %v1276 = vpop.permute.xlu0 %1275
    %1277 = vrot.lane.b32.xlu0 %v447, 8
    %v1278 = vpop.permute.xlu0 %1277
    %1279 = vrot.lane.b32.xlu0 %v448, 8
    %v1280 = vpop.permute.xlu0 %1279
    %1281 = vrot.lane.b32.xlu0 %v449, 8
    %v1282 = vpop.permute.xlu0 %1281
    %1411 = vrot.lane.b32.xlu0 %v450, 12
    %v1412 = vpop.permute.xlu0 %1411
    %1413 = vrot.lane.b32.xlu0 %v451, 12
    %v1414 = vpop.permute.xlu0 %1413
    %1415 = vrot.lane.b32.xlu0 %v452, 12
    %v1416 = vpop.permute.xlu0 %1415
    %1417 = vrot.lane.b32.xlu0 %v453, 12
    %v1418 = vpop.permute.xlu0 %1417
    %1419 = vrot.lane.b32.xlu0 %v454, 12
    %v1420 = vpop.permute.xlu0 %1419
    %1421 = vrot.lane.b32.xlu0 %v455, 12
    %v1422 = vpop.permute.xlu0 %1421
    %1423 = vrot.lane.b32.xlu0 %v456, 12
    %v1424 = vpop.permute.xlu0 %1423
    %1425 = vrot.lane.b32.xlu0 %v457, 12
    %v1426 = vpop.permute.xlu0 %1425
    %1427 = vrot.lane.b32.xlu0 %v458, 12
    %v1428 = vpop.permute.xlu0 %1427
    %1429 = vrot.lane.b32.xlu0 %v459, 12
    %v1430 = vpop.permute.xlu0 %1429
    %1431 = vrot.lane.b32.xlu0 %v460, 12
    %v1432 = vpop.permute.xlu0 %1431
    %1433 = vrot.lane.b32.xlu0 %v461, 12
    %v1434 = vpop.permute.xlu0 %1433
    %1435 = vrot.lane.b32.xlu0 %v462, 12
    %v1436 = vpop.permute.xlu0 %1435
    %1437 = vrot.lane.b32.xlu0 %v463, 12
    %v1438 = vpop.permute.xlu0 %1437
    %1439 = vrot.lane.b32.xlu0 %v464, 12
    %v1440 = vpop.permute.xlu0 %1439
    %1441 = vrot.lane.b32.xlu0 %v465, 12
    %v1442 = vpop.permute.xlu0 %1441
    %1443 = vrot.lane.b32.xlu0 %v466, 12
    %v1444 = vpop.permute.xlu0 %1443
    %1445 = vrot.lane.b32.xlu0 %v467, 12
    %v1446 = vpop.permute.xlu0 %1445
    %1447 = vrot.lane.b32.xlu0 %v468, 12
    %v1448 = vpop.permute.xlu0 %1447
    %1449 = vrot.lane.b32.xlu0 %v469, 12
    %v1450 = vpop.permute.xlu0 %1449
    %1451 = vrot.lane.b32.xlu0 %v470, 12
    %v1452 = vpop.permute.xlu0 %1451
    %1453 = vrot.lane.b32.xlu0 %v471, 12
    %v1454 = vpop.permute.xlu0 %1453
    %1455 = vrot.lane.b32.xlu0 %v472, 12
    %v1456 = vpop.permute.xlu0 %1455
    %1457 = vrot.lane.b32.xlu0 %v473, 12
    %v1458 = vpop.permute.xlu0 %1457
    %1459 = vrot.lane.b32.xlu0 %v474, 12
    %v1460 = vpop.permute.xlu0 %1459
    %1461 = vrot.lane.b32.xlu0 %v475, 12
    %v1462 = vpop.permute.xlu0 %1461
    %1463 = vrot.lane.b32.xlu0 %v476, 12
    %v1464 = vpop.permute.xlu0 %1463
    %1465 = vrot.lane.b32.xlu0 %v477, 12
    %v1466 = vpop.permute.xlu0 %1465
    %1467 = vrot.lane.b32.xlu0 %v478, 12
    %v1468 = vpop.permute.xlu0 %1467
    %1469 = vrot.lane.b32.xlu0 %v479, 12
    %v1470 = vpop.permute.xlu0 %1469
    %1471 = vrot.lane.b32.xlu0 %v480, 12
    %v1472 = vpop.permute.xlu0 %1471
    %1473 = vrot.lane.b32.xlu0 %v481, 12
    %v1474 = vpop.permute.xlu0 %1473
    %1475 = vrot.lane.b32.xlu0 %v482, 12
    %v1476 = vpop.permute.xlu0 %1475
    %1477 = vrot.lane.b32.xlu0 %v483, 12
    %v1478 = vpop.permute.xlu0 %1477
    %1479 = vrot.lane.b32.xlu0 %v484, 12
    %v1480 = vpop.permute.xlu0 %1479
    %1481 = vrot.lane.b32.xlu0 %v485, 12
    %v1482 = vpop.permute.xlu0 %1481
    %1483 = vrot.lane.b32.xlu0 %v486, 12
    %v1484 = vpop.permute.xlu0 %1483
    %1485 = vrot.lane.b32.xlu0 %v487, 12
    %v1486 = vpop.permute.xlu0 %1485
    %1487 = vrot.lane.b32.xlu0 %v488, 12
    %v1488 = vpop.permute.xlu0 %1487
    %1489 = vrot.lane.b32.xlu0 %v489, 12
    %v1490 = vpop.permute.xlu0 %1489
    %1491 = vrot.lane.b32.xlu0 %v490, 12
    %v1492 = vpop.permute.xlu0 %1491
    %1493 = vrot.lane.b32.xlu0 %v491, 12
    %v1494 = vpop.permute.xlu0 %1493
    %1495 = vrot.lane.b32.xlu0 %v492, 12
    %v1496 = vpop.permute.xlu0 %1495
    %1497 = vrot.lane.b32.xlu0 %v493, 12
    %v1498 = vpop.permute.xlu0 %1497
    %1499 = vrot.lane.b32.xlu0 %v494, 12
    %v1500 = vpop.permute.xlu0 %1499
    %1501 = vrot.lane.b32.xlu0 %v495, 12
    %v1502 = vpop.permute.xlu0 %1501
    %1503 = vrot.lane.b32.xlu0 %v496, 12
    %v1504 = vpop.permute.xlu0 %1503
    %1505 = vrot.lane.b32.xlu0 %v497, 12
    %v1506 = vpop.permute.xlu0 %1505
    %1507 = vrot.lane.b32.xlu0 %v498, 12
    %v1508 = vpop.permute.xlu0 %1507
    %1509 = vrot.lane.b32.xlu0 %v499, 12
    %v1510 = vpop.permute.xlu0 %1509
    %1511 = vrot.lane.b32.xlu0 %v500, 12
    %v1512 = vpop.permute.xlu0 %1511
    %1513 = vrot.lane.b32.xlu0 %v501, 12
    %v1514 = vpop.permute.xlu0 %1513
    %1515 = vrot.lane.b32.xlu0 %v502, 12
    %v1516 = vpop.permute.xlu0 %1515
    %1517 = vrot.lane.b32.xlu0 %v503, 12
    %v1518 = vpop.permute.xlu0 %1517
    %1519 = vrot.lane.b32.xlu0 %v504, 12
    %v1520 = vpop.permute.xlu0 %1519
    %1521 = vrot.lane.b32.xlu0 %v505, 12
    %v1522 = vpop.permute.xlu0 %1521
    %1523 = vrot.lane.b32.xlu0 %v506, 12
    %v1524 = vpop.permute.xlu0 %1523
    %1525 = vrot.lane.b32.xlu0 %v507, 12
    %v1526 = vpop.permute.xlu0 %1525
    %1527 = vrot.lane.b32.xlu0 %v508, 12
    %v1528 = vpop.permute.xlu0 %1527
    %1529 = vrot.lane.b32.xlu0 %v509, 12
    %v1530 = vpop.permute.xlu0 %1529
    %1531 = vrot.lane.b32.xlu0 %v510, 12
    %v1532 = vpop.permute.xlu0 %1531
    %1533 = vrot.lane.b32.xlu0 %v511, 12
    %v1534 = vpop.permute.xlu0 %1533
    %1535 = vrot.lane.b32.xlu0 %v512, 12
    %v1536 = vpop.permute.xlu0 %1535
    %1537 = vrot.lane.b32.xlu0 %v513, 12
    %v1538 = vpop.permute.xlu0 %1537
    %1667 = vrot.lane.b32.xlu0 %v514, 16
    %v1668 = vpop.permute.xlu0 %1667
    %1669 = vrot.lane.b32.xlu0 %v515, 16
    %v1670 = vpop.permute.xlu0 %1669
    %1671 = vrot.lane.b32.xlu0 %v516, 16
    %v1672 = vpop.permute.xlu0 %1671
    %1673 = vrot.lane.b32.xlu0 %v517, 16
    %v1674 = vpop.permute.xlu0 %1673
    %1675 = vrot.lane.b32.xlu0 %v518, 16
    %v1676 = vpop.permute.xlu0 %1675
    %1677 = vrot.lane.b32.xlu0 %v519, 16
    %v1678 = vpop.permute.xlu0 %1677
    %1679 = vrot.lane.b32.xlu0 %v520, 16
    %v1680 = vpop.permute.xlu0 %1679
    %1681 = vrot.lane.b32.xlu0 %v521, 16
    %v1682 = vpop.permute.xlu0 %1681
    %1683 = vrot.lane.b32.xlu0 %v522, 16
    %v1684 = vpop.permute.xlu0 %1683
    %1685 = vrot.lane.b32.xlu0 %v523, 16
    %v1686 = vpop.permute.xlu0 %1685
    %1687 = vrot.lane.b32.xlu0 %v524, 16
    %v1688 = vpop.permute.xlu0 %1687
    %1689 = vrot.lane.b32.xlu0 %v525, 16
    %v1690 = vpop.permute.xlu0 %1689
    %1691 = vrot.lane.b32.xlu0 %v526, 16
    %v1692 = vpop.permute.xlu0 %1691
    %1693 = vrot.lane.b32.xlu0 %v527, 16
    %v1694 = vpop.permute.xlu0 %1693
    %1695 = vrot.lane.b32.xlu0 %v528, 16
    %v1696 = vpop.permute.xlu0 %1695
    %1697 = vrot.lane.b32.xlu0 %v529, 16
    %v1698 = vpop.permute.xlu0 %1697
    %1699 = vrot.lane.b32.xlu0 %v530, 16
    %v1700 = vpop.permute.xlu0 %1699
    %1701 = vrot.lane.b32.xlu0 %v531, 16
    %v1702 = vpop.permute.xlu0 %1701
    %1703 = vrot.lane.b32.xlu0 %v532, 16
    %v1704 = vpop.permute.xlu0 %1703
    %1705 = vrot.lane.b32.xlu0 %v533, 16
    %v1706 = vpop.permute.xlu0 %1705
    %1707 = vrot.lane.b32.xlu0 %v534, 16
    %v1708 = vpop.permute.xlu0 %1707
    %1709 = vrot.lane.b32.xlu0 %v535, 16
    %v1710 = vpop.permute.xlu0 %1709
    %1711 = vrot.lane.b32.xlu0 %v536, 16
    %v1712 = vpop.permute.xlu0 %1711
    %1713 = vrot.lane.b32.xlu0 %v537, 16
    %v1714 = vpop.permute.xlu0 %1713
    %1715 = vrot.lane.b32.xlu0 %v538, 16
    %v1716 = vpop.permute.xlu0 %1715
    %1717 = vrot.lane.b32.xlu0 %v539, 16
    %v1718 = vpop.permute.xlu0 %1717
    %1719 = vrot.lane.b32.xlu0 %v540, 16
    %v1720 = vpop.permute.xlu0 %1719
    %1721 = vrot.lane.b32.xlu0 %v541, 16
    %v1722 = vpop.permute.xlu0 %1721
    %1723 = vrot.lane.b32.xlu0 %v542, 16
    %v1724 = vpop.permute.xlu0 %1723
    %1725 = vrot.lane.b32.xlu0 %v543, 16
    %v1726 = vpop.permute.xlu0 %1725
    %1727 = vrot.lane.b32.xlu0 %v544, 16
    %v1728 = vpop.permute.xlu0 %1727
    %1729 = vrot.lane.b32.xlu0 %v545, 16
    %v1730 = vpop.permute.xlu0 %1729
    %1731 = vrot.lane.b32.xlu0 %v546, 16
    %v1732 = vpop.permute.xlu0 %1731
    %1733 = vrot.lane.b32.xlu0 %v547, 16
    %v1734 = vpop.permute.xlu0 %1733
    %1735 = vrot.lane.b32.xlu0 %v548, 16
    %v1736 = vpop.permute.xlu0 %1735
    %1737 = vrot.lane.b32.xlu0 %v549, 16
    %v1738 = vpop.permute.xlu0 %1737
    %1739 = vrot.lane.b32.xlu0 %v550, 16
    %v1740 = vpop.permute.xlu0 %1739
    %1741 = vrot.lane.b32.xlu0 %v551, 16
    %v1742 = vpop.permute.xlu0 %1741
    %1743 = vrot.lane.b32.xlu0 %v552, 16
    %v1744 = vpop.permute.xlu0 %1743
    %1745 = vrot.lane.b32.xlu0 %v553, 16
    %v1746 = vpop.permute.xlu0 %1745
    %1747 = vrot.lane.b32.xlu0 %v554, 16
    %v1748 = vpop.permute.xlu0 %1747
    %1749 = vrot.lane.b32.xlu0 %v555, 16
    %v1750 = vpop.permute.xlu0 %1749
    %1751 = vrot.lane.b32.xlu0 %v556, 16
    %v1752 = vpop.permute.xlu0 %1751
    %1753 = vrot.lane.b32.xlu0 %v557, 16
    %v1754 = vpop.permute.xlu0 %1753
    %1755 = vrot.lane.b32.xlu0 %v558, 16
    %v1756 = vpop.permute.xlu0 %1755
    %1757 = vrot.lane.b32.xlu0 %v559, 16
    %v1758 = vpop.permute.xlu0 %1757
    %1759 = vrot.lane.b32.xlu0 %v560, 16
    %v1760 = vpop.permute.xlu0 %1759
    %1761 = vrot.lane.b32.xlu0 %v561, 16
    %v1762 = vpop.permute.xlu0 %1761
    %1763 = vrot.lane.b32.xlu0 %v562, 16
    %v1764 = vpop.permute.xlu0 %1763
    %1765 = vrot.lane.b32.xlu0 %v563, 16
    %v1766 = vpop.permute.xlu0 %1765
    %1767 = vrot.lane.b32.xlu0 %v564, 16
    %v1768 = vpop.permute.xlu0 %1767
    %1769 = vrot.lane.b32.xlu0 %v565, 16
    %v1770 = vpop.permute.xlu0 %1769
    %1771 = vrot.lane.b32.xlu0 %v566, 16
    %v1772 = vpop.permute.xlu0 %1771
    %1773 = vrot.lane.b32.xlu0 %v567, 16
    %v1774 = vpop.permute.xlu0 %1773
    %1775 = vrot.lane.b32.xlu0 %v568, 16
    %v1776 = vpop.permute.xlu0 %1775
    %1777 = vrot.lane.b32.xlu0 %v569, 16
    %v1778 = vpop.permute.xlu0 %1777
    %1779 = vrot.lane.b32.xlu0 %v570, 16
    %v1780 = vpop.permute.xlu0 %1779
    %1781 = vrot.lane.b32.xlu0 %v571, 16
    %v1782 = vpop.permute.xlu0 %1781
    %1783 = vrot.lane.b32.xlu0 %v572, 16
    %v1784 = vpop.permute.xlu0 %1783
    %1785 = vrot.lane.b32.xlu0 %v573, 16
    %v1786 = vpop.permute.xlu0 %1785
    %1787 = vrot.lane.b32.xlu0 %v574, 16
    %v1788 = vpop.permute.xlu0 %1787
    %1789 = vrot.lane.b32.xlu0 %v575, 16
    %v1790 = vpop.permute.xlu0 %1789
    %1791 = vrot.lane.b32.xlu0 %v576, 16
    %v1792 = vpop.permute.xlu0 %1791
    %1793 = vrot.lane.b32.xlu0 %v577, 16
    %v1794 = vpop.permute.xlu0 %1793
    %1923 = vrot.lane.b32.xlu0 %v578, 20
    %v1924 = vpop.permute.xlu0 %1923
    %1925 = vrot.lane.b32.xlu0 %v579, 20
    %v1926 = vpop.permute.xlu0 %1925
    %1927 = vrot.lane.b32.xlu0 %v580, 20
    %v1928 = vpop.permute.xlu0 %1927
    %1929 = vrot.lane.b32.xlu0 %v581, 20
    %v1930 = vpop.permute.xlu0 %1929
    %1931 = vrot.lane.b32.xlu0 %v582, 20
    %v1932 = vpop.permute.xlu0 %1931
    %1933 = vrot.lane.b32.xlu0 %v583, 20
    %v1934 = vpop.permute.xlu0 %1933
    %1935 = vrot.lane.b32.xlu0 %v584, 20
    %v1936 = vpop.permute.xlu0 %1935
    %1937 = vrot.lane.b32.xlu0 %v585, 20
    %v1938 = vpop.permute.xlu0 %1937
    %1939 = vrot.lane.b32.xlu0 %v586, 20
    %v1940 = vpop.permute.xlu0 %1939
    %1941 = vrot.lane.b32.xlu0 %v587, 20
    %v1942 = vpop.permute.xlu0 %1941
    %1943 = vrot.lane.b32.xlu0 %v588, 20
    %v1944 = vpop.permute.xlu0 %1943
    %1945 = vrot.lane.b32.xlu0 %v589, 20
    %v1946 = vpop.permute.xlu0 %1945
    %1947 = vrot.lane.b32.xlu0 %v590, 20
    %v1948 = vpop.permute.xlu0 %1947
    %1949 = vrot.lane.b32.xlu0 %v591, 20
    %v1950 = vpop.permute.xlu0 %1949
    %1951 = vrot.lane.b32.xlu0 %v592, 20
    %v1952 = vpop.permute.xlu0 %1951
    %1953 = vrot.lane.b32.xlu0 %v593, 20
    %v1954 = vpop.permute.xlu0 %1953
    %1955 = vrot.lane.b32.xlu0 %v594, 20
    %v1956 = vpop.permute.xlu0 %1955
    %1957 = vrot.lane.b32.xlu0 %v595, 20
    %v1958 = vpop.permute.xlu0 %1957
    %1959 = vrot.lane.b32.xlu0 %v596, 20
    %v1960 = vpop.permute.xlu0 %1959
    %1961 = vrot.lane.b32.xlu0 %v597, 20
    %v1962 = vpop.permute.xlu0 %1961
    %1963 = vrot.lane.b32.xlu0 %v598, 20
    %v1964 = vpop.permute.xlu0 %1963
    %1965 = vrot.lane.b32.xlu0 %v599, 20
    %v1966 = vpop.permute.xlu0 %1965
    %1967 = vrot.lane.b32.xlu0 %v600, 20
    %v1968 = vpop.permute.xlu0 %1967
    %1969 = vrot.lane.b32.xlu0 %v601, 20
    %v1970 = vpop.permute.xlu0 %1969
    %1971 = vrot.lane.b32.xlu0 %v602, 20
    %v1972 = vpop.permute.xlu0 %1971
    %1973 = vrot.lane.b32.xlu0 %v603, 20
    %v1974 = vpop.permute.xlu0 %1973
    %1975 = vrot.lane.b32.xlu0 %v604, 20
    %v1976 = vpop.permute.xlu0 %1975
    %1977 = vrot.lane.b32.xlu0 %v605, 20
    %v1978 = vpop.permute.xlu0 %1977
    %1979 = vrot.lane.b32.xlu0 %v606, 20
    %v1980 = vpop.permute.xlu0 %1979
    %1981 = vrot.lane.b32.xlu0 %v607, 20
    %v1982 = vpop.permute.xlu0 %1981
    %1983 = vrot.lane.b32.xlu0 %v608, 20
    %v1984 = vpop.permute.xlu0 %1983
    %1985 = vrot.lane.b32.xlu0 %v609, 20
    %v1986 = vpop.permute.xlu0 %1985
    %1987 = vrot.lane.b32.xlu0 %v610, 20
    %v1988 = vpop.permute.xlu0 %1987
    %1989 = vrot.lane.b32.xlu0 %v611, 20
    %v1990 = vpop.permute.xlu0 %1989
    %1991 = vrot.lane.b32.xlu0 %v612, 20
    %v1992 = vpop.permute.xlu0 %1991
    %1993 = vrot.lane.b32.xlu0 %v613, 20
    %v1994 = vpop.permute.xlu0 %1993
    %1995 = vrot.lane.b32.xlu0 %v614, 20
    %v1996 = vpop.permute.xlu0 %1995
    %1997 = vrot.lane.b32.xlu0 %v615, 20
    %v1998 = vpop.permute.xlu0 %1997
    %1999 = vrot.lane.b32.xlu0 %v616, 20
    %v2000 = vpop.permute.xlu0 %1999
    %2001 = vrot.lane.b32.xlu0 %v617, 20
    %v2002 = vpop.permute.xlu0 %2001
    %2003 = vrot.lane.b32.xlu0 %v618, 20
    %v2004 = vpop.permute.xlu0 %2003
    %2005 = vrot.lane.b32.xlu0 %v619, 20
    %v2006 = vpop.permute.xlu0 %2005
    %2007 = vrot.lane.b32.xlu0 %v620, 20
    %v2008 = vpop.permute.xlu0 %2007
    %2009 = vrot.lane.b32.xlu0 %v621, 20
    %v2010 = vpop.permute.xlu0 %2009
    %2011 = vrot.lane.b32.xlu0 %v622, 20
    %v2012 = vpop.permute.xlu0 %2011
    %2013 = vrot.lane.b32.xlu0 %v623, 20
    %v2014 = vpop.permute.xlu0 %2013
    %2015 = vrot.lane.b32.xlu0 %v624, 20
    %v2016 = vpop.permute.xlu0 %2015
    %2017 = vrot.lane.b32.xlu0 %v625, 20
    %v2018 = vpop.permute.xlu0 %2017
    %2019 = vrot.lane.b32.xlu0 %v626, 20
    %v2020 = vpop.permute.xlu0 %2019
    %2021 = vrot.lane.b32.xlu0 %v627, 20
    %v2022 = vpop.permute.xlu0 %2021
    %2023 = vrot.lane.b32.xlu0 %v628, 20
    %v2024 = vpop.permute.xlu0 %2023
    %2025 = vrot.lane.b32.xlu0 %v629, 20
    %v2026 = vpop.permute.xlu0 %2025
    %2027 = vrot.lane.b32.xlu0 %v630, 20
    %v2028 = vpop.permute.xlu0 %2027
    %2029 = vrot.lane.b32.xlu0 %v631, 20
    %v2030 = vpop.permute.xlu0 %2029
    %2031 = vrot.lane.b32.xlu0 %v632, 20
    %v2032 = vpop.permute.xlu0 %2031
    %2033 = vrot.lane.b32.xlu0 %v633, 20
    %v2034 = vpop.permute.xlu0 %2033
    %2035 = vrot.lane.b32.xlu0 %v634, 20
    %v2036 = vpop.permute.xlu0 %2035
    %2037 = vrot.lane.b32.xlu0 %v635, 20
    %v2038 = vpop.permute.xlu0 %2037
    %2039 = vrot.lane.b32.xlu0 %v636, 20
    %v2040 = vpop.permute.xlu0 %2039
    %2041 = vrot.lane.b32.xlu0 %v637, 20
    %v2042 = vpop.permute.xlu0 %2041
    %2043 = vrot.lane.b32.xlu0 %v638, 20
    %v2044 = vpop.permute.xlu0 %2043
    %2045 = vrot.lane.b32.xlu0 %v639, 20
    %v2046 = vpop.permute.xlu0 %2045
    %2047 = vrot.lane.b32.xlu0 %v640, 20
    %v2048 = vpop.permute.xlu0 %2047
    %2049 = vrot.lane.b32.xlu0 %v641, 20
    %v2050 = vpop.permute.xlu0 %2049
    %2179 = vrot.lane.b32.xlu0 %v643, 24
    %v2180 = vpop.permute.xlu0 %2179
    %2181 = vrot.lane.b32.xlu0 %v644, 24
    %v2182 = vpop.permute.xlu0 %2181
    %2183 = vrot.lane.b32.xlu0 %v645, 24
    %v2184 = vpop.permute.xlu0 %2183
    %2185 = vrot.lane.b32.xlu0 %v646, 24
    %v2186 = vpop.permute.xlu0 %2185
    %2187 = vrot.lane.b32.xlu0 %v647, 24
    %v2188 = vpop.permute.xlu0 %2187
    %2189 = vrot.lane.b32.xlu0 %v648, 24
    %v2190 = vpop.permute.xlu0 %2189
    %2191 = vrot.lane.b32.xlu0 %v649, 24
    %v2192 = vpop.permute.xlu0 %2191
    %2193 = vrot.lane.b32.xlu0 %v650, 24
    %v2194 = vpop.permute.xlu0 %2193
    %2195 = vrot.lane.b32.xlu0 %v651, 24
    %v2196 = vpop.permute.xlu0 %2195
    %2197 = vrot.lane.b32.xlu0 %v652, 24
    %v2198 = vpop.permute.xlu0 %2197
    %2199 = vrot.lane.b32.xlu0 %v653, 24
    %v2200 = vpop.permute.xlu0 %2199
    %2201 = vrot.lane.b32.xlu0 %v654, 24
    %v2202 = vpop.permute.xlu0 %2201
    %2203 = vrot.lane.b32.xlu0 %v655, 24
    %v2204 = vpop.permute.xlu0 %2203
    %2205 = vrot.lane.b32.xlu0 %v656, 24
    %v2206 = vpop.permute.xlu0 %2205
    %2207 = vrot.lane.b32.xlu0 %v657, 24
    %v2208 = vpop.permute.xlu0 %2207
    %2209 = vrot.lane.b32.xlu0 %v658, 24
    %v2210 = vpop.permute.xlu0 %2209
    %2211 = vrot.lane.b32.xlu0 %v659, 24
    %v2212 = vpop.permute.xlu0 %2211
    %2213 = vrot.lane.b32.xlu0 %v660, 24
    %v2214 = vpop.permute.xlu0 %2213
    %2215 = vrot.lane.b32.xlu0 %v661, 24
    %v2216 = vpop.permute.xlu0 %2215
    %2217 = vrot.lane.b32.xlu0 %v662, 24
    %v2218 = vpop.permute.xlu0 %2217
    %2219 = vrot.lane.b32.xlu0 %v663, 24
    %v2220 = vpop.permute.xlu0 %2219
    %2221 = vrot.lane.b32.xlu0 %v664, 24
    %v2222 = vpop.permute.xlu0 %2221
    %2223 = vrot.lane.b32.xlu0 %v665, 24
    %v2224 = vpop.permute.xlu0 %2223
    %2225 = vrot.lane.b32.xlu0 %v666, 24
    %v2226 = vpop.permute.xlu0 %2225
    %2227 = vrot.lane.b32.xlu0 %v667, 24
    %v2228 = vpop.permute.xlu0 %2227
    %2229 = vrot.lane.b32.xlu0 %v668, 24
    %v2230 = vpop.permute.xlu0 %2229
    %2231 = vrot.lane.b32.xlu0 %v669, 24
    %v2232 = vpop.permute.xlu0 %2231
    %2233 = vrot.lane.b32.xlu0 %v670, 24
    %v2234 = vpop.permute.xlu0 %2233
    %2235 = vrot.lane.b32.xlu0 %v671, 24
    %v2236 = vpop.permute.xlu0 %2235
    %2237 = vrot.lane.b32.xlu0 %v672, 24
    %v2238 = vpop.permute.xlu0 %2237
    %2239 = vrot.lane.b32.xlu0 %v673, 24
    %v2240 = vpop.permute.xlu0 %2239
    %2241 = vrot.lane.b32.xlu0 %v674, 24
    %v2242 = vpop.permute.xlu0 %2241
    %2243 = vrot.lane.b32.xlu0 %v675, 24
    %v2244 = vpop.permute.xlu0 %2243
    %2245 = vrot.lane.b32.xlu0 %v676, 24
    %v2246 = vpop.permute.xlu0 %2245
    %2247 = vrot.lane.b32.xlu0 %v677, 24
    %v2248 = vpop.permute.xlu0 %2247
    %2249 = vrot.lane.b32.xlu0 %v678, 24
    %v2250 = vpop.permute.xlu0 %2249
    %2251 = vrot.lane.b32.xlu0 %v679, 24
    %v2252 = vpop.permute.xlu0 %2251
    %2253 = vrot.lane.b32.xlu0 %v680, 24
    %v2254 = vpop.permute.xlu0 %2253
    %2255 = vrot.lane.b32.xlu0 %v681, 24
    %v2256 = vpop.permute.xlu0 %2255
    %2257 = vrot.lane.b32.xlu0 %v682, 24
    %v2258 = vpop.permute.xlu0 %2257
    %2259 = vrot.lane.b32.xlu0 %v683, 24
    %v2260 = vpop.permute.xlu0 %2259
    %2261 = vrot.lane.b32.xlu0 %v684, 24
    %v2262 = vpop.permute.xlu0 %2261
    %2263 = vrot.lane.b32.xlu0 %v685, 24
    %v2264 = vpop.permute.xlu0 %2263
    %2265 = vrot.lane.b32.xlu0 %v686, 24
    %v2266 = vpop.permute.xlu0 %2265
    %2267 = vrot.lane.b32.xlu0 %v687, 24
    %v2268 = vpop.permute.xlu0 %2267
    %2269 = vrot.lane.b32.xlu0 %v688, 24
    %v2270 = vpop.permute.xlu0 %2269
    %2271 = vrot.lane.b32.xlu0 %v689, 24
    %v2272 = vpop.permute.xlu0 %2271
    %2273 = vrot.lane.b32.xlu0 %v690, 24
    %v2274 = vpop.permute.xlu0 %2273
    %2275 = vrot.lane.b32.xlu0 %v691, 24
    %v2276 = vpop.permute.xlu0 %2275
    %2277 = vrot.lane.b32.xlu0 %v692, 24
    %v2278 = vpop.permute.xlu0 %2277
    %2279 = vrot.lane.b32.xlu0 %v693, 24
    %v2280 = vpop.permute.xlu0 %2279
    %2281 = vrot.lane.b32.xlu0 %v694, 24
    %v2282 = vpop.permute.xlu0 %2281
    %2283 = vrot.lane.b32.xlu0 %v695, 24
    %v2284 = vpop.permute.xlu0 %2283
    %2285 = vrot.lane.b32.xlu0 %v696, 24
    %v2286 = vpop.permute.xlu0 %2285
    %2287 = vrot.lane.b32.xlu0 %v697, 24
    %v2288 = vpop.permute.xlu0 %2287
    %2289 = vrot.lane.b32.xlu0 %v698, 24
    %v2290 = vpop.permute.xlu0 %2289
    %2291 = vrot.lane.b32.xlu0 %v699, 24
    %v2292 = vpop.permute.xlu0 %2291
    %2293 = vrot.lane.b32.xlu0 %v700, 24
    %v2294 = vpop.permute.xlu0 %2293
    %2295 = vrot.lane.b32.xlu0 %v701, 24
    %v2296 = vpop.permute.xlu0 %2295
    %2297 = vrot.lane.b32.xlu0 %v702, 24
    %v2298 = vpop.permute.xlu0 %2297
    %2299 = vrot.lane.b32.xlu0 %v703, 24
    %v2300 = vpop.permute.xlu0 %2299
    %2301 = vrot.lane.b32.xlu0 %v704, 24
    %v2302 = vpop.permute.xlu0 %2301
    %2303 = vrot.lane.b32.xlu0 %v705, 24
    %v2304 = vpop.permute.xlu0 %2303
    %2305 = vrot.lane.b32.xlu0 %v706, 24
    %v2306 = vpop.permute.xlu0 %2305
    %2435 = vrot.lane.b32.xlu0 %v707, 28
    %v2436 = vpop.permute.xlu0 %2435
    %2437 = vrot.lane.b32.xlu0 %v708, 28
    %v2438 = vpop.permute.xlu0 %2437
    %2439 = vrot.lane.b32.xlu0 %v709, 28
    %v2440 = vpop.permute.xlu0 %2439
    %2441 = vrot.lane.b32.xlu0 %v710, 28
    %v2442 = vpop.permute.xlu0 %2441
    %2443 = vrot.lane.b32.xlu0 %v711, 28
    %v2444 = vpop.permute.xlu0 %2443
    %2445 = vrot.lane.b32.xlu0 %v712, 28
    %v2446 = vpop.permute.xlu0 %2445
    %2447 = vrot.lane.b32.xlu0 %v713, 28
    %v2448 = vpop.permute.xlu0 %2447
    %2449 = vrot.lane.b32.xlu0 %v714, 28
    %v2450 = vpop.permute.xlu0 %2449
    %2451 = vrot.lane.b32.xlu0 %v715, 28
    %v2452 = vpop.permute.xlu0 %2451
    %2453 = vrot.lane.b32.xlu0 %v716, 28
    %v2454 = vpop.permute.xlu0 %2453
    %2455 = vrot.lane.b32.xlu0 %v717, 28
    %v2456 = vpop.permute.xlu0 %2455
    %2457 = vrot.lane.b32.xlu0 %v718, 28
    %v2458 = vpop.permute.xlu0 %2457
    %2459 = vrot.lane.b32.xlu0 %v719, 28
    %v2460 = vpop.permute.xlu0 %2459
    %2461 = vrot.lane.b32.xlu0 %v720, 28
    %v2462 = vpop.permute.xlu0 %2461
    %2463 = vrot.lane.b32.xlu0 %v721, 28
    %v2464 = vpop.permute.xlu0 %2463
    %2465 = vrot.lane.b32.xlu0 %v722, 28
    %v2466 = vpop.permute.xlu0 %2465
    %2467 = vrot.lane.b32.xlu0 %v723, 28
    %v2468 = vpop.permute.xlu0 %2467
    %2469 = vrot.lane.b32.xlu0 %v724, 28
    %v2470 = vpop.permute.xlu0 %2469
    %2471 = vrot.lane.b32.xlu0 %v725, 28
    %v2472 = vpop.permute.xlu0 %2471
    %2473 = vrot.lane.b32.xlu0 %v726, 28
    %v2474 = vpop.permute.xlu0 %2473
    %2475 = vrot.lane.b32.xlu0 %v727, 28
    %v2476 = vpop.permute.xlu0 %2475
    %2477 = vrot.lane.b32.xlu0 %v728, 28
    %v2478 = vpop.permute.xlu0 %2477
    %2479 = vrot.lane.b32.xlu0 %v729, 28
    %v2480 = vpop.permute.xlu0 %2479
    %2481 = vrot.lane.b32.xlu0 %v730, 28
    %v2482 = vpop.permute.xlu0 %2481
    %2483 = vrot.lane.b32.xlu0 %v731, 28
    %v2484 = vpop.permute.xlu0 %2483
    %2485 = vrot.lane.b32.xlu0 %v732, 28
    %v2486 = vpop.permute.xlu0 %2485
    %2487 = vrot.lane.b32.xlu0 %v733, 28
    %v2488 = vpop.permute.xlu0 %2487
    %2489 = vrot.lane.b32.xlu0 %v734, 28
    %v2490 = vpop.permute.xlu0 %2489
    %2491 = vrot.lane.b32.xlu0 %v735, 28
    %v2492 = vpop.permute.xlu0 %2491
    %2493 = vrot.lane.b32.xlu0 %v736, 28
    %v2494 = vpop.permute.xlu0 %2493
    %2495 = vrot.lane.b32.xlu0 %v737, 28
    %v2496 = vpop.permute.xlu0 %2495
    %2497 = vrot.lane.b32.xlu0 %v738, 28
    %v2498 = vpop.permute.xlu0 %2497
    %2499 = vrot.lane.b32.xlu0 %v739, 28
    %v2500 = vpop.permute.xlu0 %2499
    %2501 = vrot.lane.b32.xlu0 %v740, 28
    %v2502 = vpop.permute.xlu0 %2501
    %2503 = vrot.lane.b32.xlu0 %v741, 28
    %v2504 = vpop.permute.xlu0 %2503
    %2505 = vrot.lane.b32.xlu0 %v742, 28
    %v2506 = vpop.permute.xlu0 %2505
    %2507 = vrot.lane.b32.xlu0 %v743, 28
    %v2508 = vpop.permute.xlu0 %2507
    %2509 = vrot.lane.b32.xlu0 %v744, 28
    %v2510 = vpop.permute.xlu0 %2509
    %2511 = vrot.lane.b32.xlu0 %v745, 28
    %v2512 = vpop.permute.xlu0 %2511
    %2513 = vrot.lane.b32.xlu0 %v746, 28
    %v2514 = vpop.permute.xlu0 %2513
    %2515 = vrot.lane.b32.xlu0 %v747, 28
    %v2516 = vpop.permute.xlu0 %2515
    %2517 = vrot.lane.b32.xlu0 %v748, 28
    %v2518 = vpop.permute.xlu0 %2517
    %2519 = vrot.lane.b32.xlu0 %v749, 28
    %v2520 = vpop.permute.xlu0 %2519
    %2521 = vrot.lane.b32.xlu0 %v750, 28
    %v2522 = vpop.permute.xlu0 %2521
    %2523 = vrot.lane.b32.xlu0 %v751, 28
    %v2524 = vpop.permute.xlu0 %2523
    %2525 = vrot.lane.b32.xlu0 %v752, 28
    %v2526 = vpop.permute.xlu0 %2525
    %2527 = vrot.lane.b32.xlu0 %v753, 28
    %v2528 = vpop.permute.xlu0 %2527
    %2529 = vrot.lane.b32.xlu0 %v754, 28
    %v2530 = vpop.permute.xlu0 %2529
    %2531 = vrot.lane.b32.xlu0 %v755, 28
    %v2532 = vpop.permute.xlu0 %2531
    %2533 = vrot.lane.b32.xlu0 %v756, 28
    %v2534 = vpop.permute.xlu0 %2533
    %2535 = vrot.lane.b32.xlu0 %v757, 28
    %v2536 = vpop.permute.xlu0 %2535
    %2537 = vrot.lane.b32.xlu0 %v758, 28
    %v2538 = vpop.permute.xlu0 %2537
    %2539 = vrot.lane.b32.xlu0 %v759, 28
    %v2540 = vpop.permute.xlu0 %2539
    %2541 = vrot.lane.b32.xlu0 %v760, 28
    %v2542 = vpop.permute.xlu0 %2541
    %2543 = vrot.lane.b32.xlu0 %v761, 28
    %v2544 = vpop.permute.xlu0 %2543
    %2545 = vrot.lane.b32.xlu0 %v762, 28
    %v2546 = vpop.permute.xlu0 %2545
    %2547 = vrot.lane.b32.xlu0 %v763, 28
    %v2548 = vpop.permute.xlu0 %2547
    %2549 = vrot.lane.b32.xlu0 %v764, 28
    %v2550 = vpop.permute.xlu0 %2549
    %2551 = vrot.lane.b32.xlu0 %v765, 28
    %v2552 = vpop.permute.xlu0 %2551
    %2553 = vrot.lane.b32.xlu0 %v766, 28
    %v2554 = vpop.permute.xlu0 %2553
    %2555 = vrot.lane.b32.xlu0 %v767, 28
    %v2556 = vpop.permute.xlu0 %2555
    %2557 = vrot.lane.b32.xlu0 %v768, 28
    %v2558 = vpop.permute.xlu0 %2557
    %2559 = vrot.lane.b32.xlu0 %v769, 28
    %v2560 = vpop.permute.xlu0 %2559
    %2561 = vrot.lane.b32.xlu0 %v770, 28
    %v2562 = vpop.permute.xlu0 %2561
    %2691 = vrot.lane.b32.xlu0 %v771, 32
    %v2692 = vpop.permute.xlu0 %2691
    %2693 = vrot.lane.b32.xlu0 %v772, 32
    %v2694 = vpop.permute.xlu0 %2693
    %2695 = vrot.lane.b32.xlu0 %v773, 32
    %v2696 = vpop.permute.xlu0 %2695
    %2697 = vrot.lane.b32.xlu0 %v774, 32
    %v2698 = vpop.permute.xlu0 %2697
    %2699 = vrot.lane.b32.xlu0 %v775, 32
    %v2700 = vpop.permute.xlu0 %2699
    %2701 = vrot.lane.b32.xlu0 %v776, 32
    %v2702 = vpop.permute.xlu0 %2701
    %2703 = vrot.lane.b32.xlu0 %v777, 32
    %v2704 = vpop.permute.xlu0 %2703
    %2705 = vrot.lane.b32.xlu0 %v778, 32
    %v2706 = vpop.permute.xlu0 %2705
    %2707 = vrot.lane.b32.xlu0 %v779, 32
    %v2708 = vpop.permute.xlu0 %2707
    %2709 = vrot.lane.b32.xlu0 %v780, 32
    %v2710 = vpop.permute.xlu0 %2709
    %2711 = vrot.lane.b32.xlu0 %v781, 32
    %v2712 = vpop.permute.xlu0 %2711
    %2713 = vrot.lane.b32.xlu0 %v782, 32
    %v2714 = vpop.permute.xlu0 %2713
    %2715 = vrot.lane.b32.xlu0 %v783, 32
    %v2716 = vpop.permute.xlu0 %2715
    %2717 = vrot.lane.b32.xlu0 %v784, 32
    %v2718 = vpop.permute.xlu0 %2717
    %2719 = vrot.lane.b32.xlu0 %v785, 32
    %v2720 = vpop.permute.xlu0 %2719
    %2721 = vrot.lane.b32.xlu0 %v786, 32
    %v2722 = vpop.permute.xlu0 %2721
    %2723 = vrot.lane.b32.xlu0 %v787, 32
    %v2724 = vpop.permute.xlu0 %2723
    %2725 = vrot.lane.b32.xlu0 %v788, 32
    %v2726 = vpop.permute.xlu0 %2725
    %2727 = vrot.lane.b32.xlu0 %v789, 32
    %v2728 = vpop.permute.xlu0 %2727
    %2729 = vrot.lane.b32.xlu0 %v790, 32
    %v2730 = vpop.permute.xlu0 %2729
    %2731 = vrot.lane.b32.xlu0 %v791, 32
    %v2732 = vpop.permute.xlu0 %2731
    %2733 = vrot.lane.b32.xlu0 %v792, 32
    %v2734 = vpop.permute.xlu0 %2733
    %2735 = vrot.lane.b32.xlu0 %v793, 32
    %v2736 = vpop.permute.xlu0 %2735
    %2737 = vrot.lane.b32.xlu0 %v794, 32
    %v2738 = vpop.permute.xlu0 %2737
    %2739 = vrot.lane.b32.xlu0 %v795, 32
    %v2740 = vpop.permute.xlu0 %2739
    %2741 = vrot.lane.b32.xlu0 %v796, 32
    %v2742 = vpop.permute.xlu0 %2741
    %2743 = vrot.lane.b32.xlu0 %v797, 32
    %v2744 = vpop.permute.xlu0 %2743
    %2745 = vrot.lane.b32.xlu0 %v798, 32
    %v2746 = vpop.permute.xlu0 %2745
    %2747 = vrot.lane.b32.xlu0 %v799, 32
    %v2748 = vpop.permute.xlu0 %2747
    %2749 = vrot.lane.b32.xlu0 %v800, 32
    %v2750 = vpop.permute.xlu0 %2749
    %2751 = vrot.lane.b32.xlu0 %v801, 32
    %v2752 = vpop.permute.xlu0 %2751
    %2753 = vrot.lane.b32.xlu0 %v802, 32
    %v2754 = vpop.permute.xlu0 %2753
    %2755 = vrot.lane.b32.xlu0 %v803, 32
    %v2756 = vpop.permute.xlu0 %2755
    %2757 = vrot.lane.b32.xlu0 %v804, 32
    %v2758 = vpop.permute.xlu0 %2757
    %2759 = vrot.lane.b32.xlu0 %v805, 32
    %v2760 = vpop.permute.xlu0 %2759
    %2761 = vrot.lane.b32.xlu0 %v806, 32
    %v2762 = vpop.permute.xlu0 %2761
    %2763 = vrot.lane.b32.xlu0 %v807, 32
    %v2764 = vpop.permute.xlu0 %2763
    %2765 = vrot.lane.b32.xlu0 %v808, 32
    %v2766 = vpop.permute.xlu0 %2765
    %2767 = vrot.lane.b32.xlu0 %v809, 32
    %v2768 = vpop.permute.xlu0 %2767
    %2769 = vrot.lane.b32.xlu0 %v810, 32
    %v2770 = vpop.permute.xlu0 %2769
    %2771 = vrot.lane.b32.xlu0 %v811, 32
    %v2772 = vpop.permute.xlu0 %2771
    %2773 = vrot.lane.b32.xlu0 %v812, 32
    %v2774 = vpop.permute.xlu0 %2773
    %2775 = vrot.lane.b32.xlu0 %v813, 32
    %v2776 = vpop.permute.xlu0 %2775
    %2777 = vrot.lane.b32.xlu0 %v814, 32
    %v2778 = vpop.permute.xlu0 %2777
    %2779 = vrot.lane.b32.xlu0 %v815, 32
    %v2780 = vpop.permute.xlu0 %2779
    %2781 = vrot.lane.b32.xlu0 %v816, 32
    %v2782 = vpop.permute.xlu0 %2781
    %2783 = vrot.lane.b32.xlu0 %v817, 32
    %v2784 = vpop.permute.xlu0 %2783
    %2785 = vrot.lane.b32.xlu0 %v818, 32
    %v2786 = vpop.permute.xlu0 %2785
    %2787 = vrot.lane.b32.xlu0 %v819, 32
    %v2788 = vpop.permute.xlu0 %2787
    %2789 = vrot.lane.b32.xlu0 %v820, 32
    %v2790 = vpop.permute.xlu0 %2789
    %2791 = vrot.lane.b32.xlu0 %v821, 32
    %v2792 = vpop.permute.xlu0 %2791
    %2793 = vrot.lane.b32.xlu0 %v822, 32
    %v2794 = vpop.permute.xlu0 %2793
    %2795 = vrot.lane.b32.xlu0 %v823, 32
    %v2796 = vpop.permute.xlu0 %2795
    %2797 = vrot.lane.b32.xlu0 %v824, 32
    %v2798 = vpop.permute.xlu0 %2797
    %2799 = vrot.lane.b32.xlu0 %v825, 32
    %v2800 = vpop.permute.xlu0 %2799
    %2801 = vrot.lane.b32.xlu0 %v826, 32
    %v2802 = vpop.permute.xlu0 %2801
    %2803 = vrot.lane.b32.xlu0 %v827, 32
    %v2804 = vpop.permute.xlu0 %2803
    %2805 = vrot.lane.b32.xlu0 %v828, 32
    %v2806 = vpop.permute.xlu0 %2805
    %2807 = vrot.lane.b32.xlu0 %v829, 32
    %v2808 = vpop.permute.xlu0 %2807
    %2809 = vrot.lane.b32.xlu0 %v830, 32
    %v2810 = vpop.permute.xlu0 %2809
    %2811 = vrot.lane.b32.xlu0 %v831, 32
    %v2812 = vpop.permute.xlu0 %2811
    %2813 = vrot.lane.b32.xlu0 %v832, 32
    %v2814 = vpop.permute.xlu0 %2813
    %2815 = vrot.lane.b32.xlu0 %v833, 32
    %v2816 = vpop.permute.xlu0 %2815
    %2817 = vrot.lane.b32.xlu0 %v834, 32
    %v2818 = vpop.permute.xlu0 %2817
    %v2883 = vsel %vm19, %v258, %v900
    %v2884 = vsel %vm19, %v259, %v902
    %v2885 = vsel %vm19, %v260, %v904
    %v2886 = vsel %vm19, %v261, %v906
    %v2887 = vsel %vm19, %v262, %v908
    %v2888 = vsel %vm19, %v263, %v910
    %v2889 = vsel %vm19, %v264, %v912
    %v2890 = vsel %vm19, %v265, %v914
    %v2891 = vsel %vm19, %v266, %v916
    %v2892 = vsel %vm19, %v267, %v918
    %v2893 = vsel %vm19, %v268, %v920
    %v2894 = vsel %vm19, %v269, %v922
    %v2895 = vsel %vm19, %v270, %v924
    %v2896 = vsel %vm19, %v271, %v926
    %v2897 = vsel %vm19, %v272, %v928
    %v2898 = vsel %vm19, %v273, %v930
    %v2899 = vsel %vm19, %v274, %v932
    %v2900 = vsel %vm19, %v275, %v934
    %v2901 = vsel %vm19, %v276, %v936
    %v2902 = vsel %vm19, %v277, %v938
    %v2903 = vsel %vm19, %v278, %v940
    %v2904 = vsel %vm19, %v279, %v942
    %v2905 = vsel %vm19, %v280, %v944
    %v2906 = vsel %vm19, %v281, %v946
    %v2907 = vsel %vm19, %v282, %v948
    %v2908 = vsel %vm19, %v283, %v950
    %v2909 = vsel %vm19, %v284, %v952
    %v2910 = vsel %vm19, %v285, %v954
    %v2911 = vsel %vm19, %v286, %v956
    %v2912 = vsel %vm19, %v287, %v958
    %v2913 = vsel %vm19, %v288, %v960
    %v2914 = vsel %vm19, %v289, %v962
    %v2915 = vsel %vm19, %v290, %v964
    %v2916 = vsel %vm19, %v291, %v966
    %v2917 = vsel %vm19, %v292, %v968
    %v2918 = vsel %vm19, %v293, %v970
    %v2919 = vsel %vm19, %v294, %v972
    %v2920 = vsel %vm19, %v295, %v974
    %v2921 = vsel %vm19, %v296, %v976
    %v2922 = vsel %vm19, %v297, %v978
    %v2923 = vsel %vm19, %v298, %v980
    %v2924 = vsel %vm19, %v299, %v982
    %v2925 = vsel %vm19, %v300, %v984
    %v2926 = vsel %vm19, %v301, %v986
    %v2927 = vsel %vm19, %v302, %v988
    %v2928 = vsel %vm19, %v303, %v990
    %v2929 = vsel %vm19, %v304, %v992
    %v2930 = vsel %vm19, %v305, %v994
    %v2931 = vsel %vm19, %v306, %v996
    %v2932 = vsel %vm19, %v307, %v998
    %v2933 = vsel %vm19, %v308, %v1000
    %v2934 = vsel %vm19, %v309, %v1002
    %v2935 = vsel %vm19, %v310, %v1004
    %v2936 = vsel %vm19, %v311, %v1006
    %v2937 = vsel %vm19, %v312, %v1008
    %v2938 = vsel %vm19, %v313, %v1010
    %v2939 = vsel %vm19, %v314, %v1012
    %v2940 = vsel %vm19, %v315, %v1014
    %v2941 = vsel %vm19, %v316, %v1016
    %v2942 = vsel %vm19, %v317, %v1018
    %v2943 = vsel %vm19, %v318, %v1020
    %v2944 = vsel %vm19, %v319, %v1022
    %v2945 = vsel %vm19, %v320, %v1024
    %v2946 = vsel %vm19, %v321, %v1026
    %vm2947 = vcmask 64512
    %v2948 = vsel %vm2947, %v2883, %v1156
    %v2949 = vsel %vm2947, %v2884, %v1158
    %v2950 = vsel %vm2947, %v2885, %v1160
    %v2951 = vsel %vm2947, %v2886, %v1162
    %v2952 = vsel %vm2947, %v2887, %v1164
    %v2953 = vsel %vm2947, %v2888, %v1166
    %v2954 = vsel %vm2947, %v2889, %v1168
    %v2955 = vsel %vm2947, %v2890, %v1170
    %v2956 = vsel %vm2947, %v2891, %v1172
    %v2957 = vsel %vm2947, %v2892, %v1174
    %v2958 = vsel %vm2947, %v2893, %v1176
    %v2959 = vsel %vm2947, %v2894, %v1178
    %v2960 = vsel %vm2947, %v2895, %v1180
    %v2961 = vsel %vm2947, %v2896, %v1182
    %v2962 = vsel %vm2947, %v2897, %v1184
    %v2963 = vsel %vm2947, %v2898, %v1186
    %v2964 = vsel %vm2947, %v2899, %v1188
    %v2965 = vsel %vm2947, %v2900, %v1190
    %v2966 = vsel %vm2947, %v2901, %v1192
    %v2967 = vsel %vm2947, %v2902, %v1194
    %v2968 = vsel %vm2947, %v2903, %v1196
    %v2969 = vsel %vm2947, %v2904, %v1198
    %v2970 = vsel %vm2947, %v2905, %v1200
    %v2971 = vsel %vm2947, %v2906, %v1202
    %v2972 = vsel %vm2947, %v2907, %v1204
    %v2973 = vsel %vm2947, %v2908, %v1206
    %v2974 = vsel %vm2947, %v2909, %v1208
    %v2975 = vsel %vm2947, %v2910, %v1210
    %v2976 = vsel %vm2947, %v2911, %v1212
    %v2977 = vsel %vm2947, %v2912, %v1214
    %v2978 = vsel %vm2947, %v2913, %v1216
    %v2979 = vsel %vm2947, %v2914, %v1218
    %v2980 = vsel %vm2947, %v2915, %v1220
    %v2981 = vsel %vm2947, %v2916, %v1222
    %v2982 = vsel %vm2947, %v2917, %v1224
    %v2983 = vsel %vm2947, %v2918, %v1226
    %v2984 = vsel %vm2947, %v2919, %v1228
    %v2985 = vsel %vm2947, %v2920, %v1230
    %v2986 = vsel %vm2947, %v2921, %v1232
    %v2987 = vsel %vm2947, %v2922, %v1234
    %v2988 = vsel %vm2947, %v2923, %v1236
    %v2989 = vsel %vm2947, %v2924, %v1238
    %v2990 = vsel %vm2947, %v2925, %v1240
    %v2991 = vsel %vm2947, %v2926, %v1242
    %v2992 = vsel %vm2947, %v2927, %v1244
    %v2993 = vsel %vm2947, %v2928, %v1246
    %v2994 = vsel %vm2947, %v2929, %v1248
    %v2995 = vsel %vm2947, %v2930, %v1250
    %v2996 = vsel %vm2947, %v2931, %v1252
    %v2997 = vsel %vm2947, %v2932, %v1254
    %v2998 = vsel %vm2947, %v2933, %v1256
    %v2999 = vsel %vm2947, %v2934, %v1258
    %v3000 = vsel %vm2947, %v2935, %v1260
    %v3001 = vsel %vm2947, %v2936, %v1262
    %v3002 = vsel %vm2947, %v2937, %v1264
    %v3003 = vsel %vm2947, %v2938, %v1266
    %v3004 = vsel %vm2947, %v2939, %v1268
    %v3005 = vsel %vm2947, %v2940, %v1270
    %v3006 = vsel %vm2947, %v2941, %v1272
    %v3007 = vsel %vm2947, %v2942, %v1274
    %v3008 = vsel %vm2947, %v2943, %v1276
    %v3009 = vsel %vm2947, %v2944, %v1278
    %v3010 = vsel %vm2947, %v2945, %v1280
    %v3011 = vsel %vm2947, %v2946, %v1282
    %vm3012 = vcmask 97280
    %v3013 = vsel %vm3012, %v2948, %v1412
    %v3014 = vsel %vm3012, %v2949, %v1414
    %v3015 = vsel %vm3012, %v2950, %v1416
    %v3016 = vsel %vm3012, %v2951, %v1418
    %v3017 = vsel %vm3012, %v2952, %v1420
    %v3018 = vsel %vm3012, %v2953, %v1422
    %v3019 = vsel %vm3012, %v2954, %v1424
    %v3020 = vsel %vm3012, %v2955, %v1426
    %v3021 = vsel %vm3012, %v2956, %v1428
    %v3022 = vsel %vm3012, %v2957, %v1430
    %v3023 = vsel %vm3012, %v2958, %v1432
    %v3024 = vsel %vm3012, %v2959, %v1434
    %v3025 = vsel %vm3012, %v2960, %v1436
    %v3026 = vsel %vm3012, %v2961, %v1438
    %v3027 = vsel %vm3012, %v2962, %v1440
    %v3028 = vsel %vm3012, %v2963, %v1442
    %v3029 = vsel %vm3012, %v2964, %v1444
    %v3030 = vsel %vm3012, %v2965, %v1446
    %v3031 = vsel %vm3012, %v2966, %v1448
    %v3032 = vsel %vm3012, %v2967, %v1450
    %v3033 = vsel %vm3012, %v2968, %v1452
    %v3034 = vsel %vm3012, %v2969, %v1454
    %v3035 = vsel %vm3012, %v2970, %v1456
    %v3036 = vsel %vm3012, %v2971, %v1458
    %v3037 = vsel %vm3012, %v2972, %v1460
    %v3038 = vsel %vm3012, %v2973, %v1462
    %v3039 = vsel %vm3012, %v2974, %v1464
    %v3040 = vsel %vm3012, %v2975, %v1466
    %v3041 = vsel %vm3012, %v2976, %v1468
    %v3042 = vsel %vm3012, %v2977, %v1470
    %v3043 = vsel %vm3012, %v2978, %v1472
    %v3044 = vsel %vm3012, %v2979, %v1474
    %v3045 = vsel %vm3012, %v2980, %v1476
    %v3046 = vsel %vm3012, %v2981, %v1478
    %v3047 = vsel %vm3012, %v2982, %v1480
    %v3048 = vsel %vm3012, %v2983, %v1482
    %v3049 = vsel %vm3012, %v2984, %v1484
    %v3050 = vsel %vm3012, %v2985, %v1486
    %v3051 = vsel %vm3012, %v2986, %v1488
    %v3052 = vsel %vm3012, %v2987, %v1490
    %v3053 = vsel %vm3012, %v2988, %v1492
    %v3054 = vsel %vm3012, %v2989, %v1494
    %v3055 = vsel %vm3012, %v2990, %v1496
    %v3056 = vsel %vm3012, %v2991, %v1498
    %v3057 = vsel %vm3012, %v2992, %v1500
    %v3058 = vsel %vm3012, %v2993, %v1502
    %v3059 = vsel %vm3012, %v2994, %v1504
    %v3060 = vsel %vm3012, %v2995, %v1506
    %v3061 = vsel %vm3012, %v2996, %v1508
    %v3062 = vsel %vm3012, %v2997, %v1510
    %v3063 = vsel %vm3012, %v2998, %v1512
    %v3064 = vsel %vm3012, %v2999, %v1514
    %v3065 = vsel %vm3012, %v3000, %v1516
    %v3066 = vsel %vm3012, %v3001, %v1518
    %v3067 = vsel %vm3012, %v3002, %v1520
    %v3068 = vsel %vm3012, %v3003, %v1522
    %v3069 = vsel %vm3012, %v3004, %v1524
    %v3070 = vsel %vm3012, %v3005, %v1526
    %v3071 = vsel %vm3012, %v3006, %v1528
    %v3072 = vsel %vm3012, %v3007, %v1530
    %v3073 = vsel %vm3012, %v3008, %v1532
    %v3074 = vsel %vm3012, %v3009, %v1534
    %v3075 = vsel %vm3012, %v3010, %v1536
    %v3076 = vsel %vm3012, %v3011, %v1538
    %vm3077 = vcmask 130048
    %v3078 = vsel %vm3077, %v3013, %v1668
    %v3079 = vsel %vm3077, %v3014, %v1670
    %v3080 = vsel %vm3077, %v3015, %v1672
    %v3081 = vsel %vm3077, %v3016, %v1674
    %v3082 = vsel %vm3077, %v3017, %v1676
    %v3083 = vsel %vm3077, %v3018, %v1678
    %v3084 = vsel %vm3077, %v3019, %v1680
    %v3085 = vsel %vm3077, %v3020, %v1682
    %v3086 = vsel %vm3077, %v3021, %v1684
    %v3087 = vsel %vm3077, %v3022, %v1686
    %v3088 = vsel %vm3077, %v3023, %v1688
    %v3089 = vsel %vm3077, %v3024, %v1690
    %v3090 = vsel %vm3077, %v3025, %v1692
    %v3091 = vsel %vm3077, %v3026, %v1694
    %v3092 = vsel %vm3077, %v3027, %v1696
    %v3093 = vsel %vm3077, %v3028, %v1698
    %v3094 = vsel %vm3077, %v3029, %v1700
    %v3095 = vsel %vm3077, %v3030, %v1702
    %v3096 = vsel %vm3077, %v3031, %v1704
    %v3097 = vsel %vm3077, %v3032, %v1706
    %v3098 = vsel %vm3077, %v3033, %v1708
    %v3099 = vsel %vm3077, %v3034, %v1710
    %v3100 = vsel %vm3077, %v3035, %v1712
    %v3101 = vsel %vm3077, %v3036, %v1714
    %v3102 = vsel %vm3077, %v3037, %v1716
    %v3103 = vsel %vm3077, %v3038, %v1718
    %v3104 = vsel %vm3077, %v3039, %v1720
    %v3105 = vsel %vm3077, %v3040, %v1722
    %v3106 = vsel %vm3077, %v3041, %v1724
    %v3107 = vsel %vm3077, %v3042, %v1726
    %v3108 = vsel %vm3077, %v3043, %v1728
    %v3109 = vsel %vm3077, %v3044, %v1730
    %v3110 = vsel %vm3077, %v3045, %v1732
    %v3111 = vsel %vm3077, %v3046, %v1734
    %v3112 = vsel %vm3077, %v3047, %v1736
    %v3113 = vsel %vm3077, %v3048, %v1738
    %v3114 = vsel %vm3077, %v3049, %v1740
    %v3115 = vsel %vm3077, %v3050, %v1742
    %v3116 = vsel %vm3077, %v3051, %v1744
    %v3117 = vsel %vm3077, %v3052, %v1746
    %v3118 = vsel %vm3077, %v3053, %v1748
    %v3119 = vsel %vm3077, %v3054, %v1750
    %v3120 = vsel %vm3077, %v3055, %v1752
    %v3121 = vsel %vm3077, %v3056, %v1754
    %v3122 = vsel %vm3077, %v3057, %v1756
    %v3123 = vsel %vm3077, %v3058, %v1758
    %v3124 = vsel %vm3077, %v3059, %v1760
    %v3125 = vsel %vm3077, %v3060, %v1762
    %v3126 = vsel %vm3077, %v3061, %v1764
    %v3127 = vsel %vm3077, %v3062, %v1766
    %v3128 = vsel %vm3077, %v3063, %v1768
    %v3129 = vsel %vm3077, %v3064, %v1770
    %v3130 = vsel %vm3077, %v3065, %v1772
    %v3131 = vsel %vm3077, %v3066, %v1774
    %v3132 = vsel %vm3077, %v3067, %v1776
    %v3133 = vsel %vm3077, %v3068, %v1778
    %v3134 = vsel %vm3077, %v3069, %v1780
    %v3135 = vsel %vm3077, %v3070, %v1782
    %v3136 = vsel %vm3077, %v3071, %v1784
    %v3137 = vsel %vm3077, %v3072, %v1786
    %v3138 = vsel %vm3077, %v3073, %v1788
    %v3139 = vsel %vm3077, %v3074, %v1790
    %v3140 = vsel %vm3077, %v3075, %v1792
    %v3141 = vsel %vm3077, %v3076, %v1794
    %vm3142 = vcmask 162816
    %v3143 = vsel %vm3142, %v3078, %v1924
    %v3144 = vsel %vm3142, %v3079, %v1926
    %v3145 = vsel %vm3142, %v3080, %v1928
    %v3146 = vsel %vm3142, %v3081, %v1930
    %v3147 = vsel %vm3142, %v3082, %v1932
    %v3148 = vsel %vm3142, %v3083, %v1934
    %v3149 = vsel %vm3142, %v3084, %v1936
    %v3150 = vsel %vm3142, %v3085, %v1938
    %v3151 = vsel %vm3142, %v3086, %v1940
    %v3152 = vsel %vm3142, %v3087, %v1942
    %v3153 = vsel %vm3142, %v3088, %v1944
    %v3154 = vsel %vm3142, %v3089, %v1946
    %v3155 = vsel %vm3142, %v3090, %v1948
    %v3156 = vsel %vm3142, %v3091, %v1950
    %v3157 = vsel %vm3142, %v3092, %v1952
    %v3158 = vsel %vm3142, %v3093, %v1954
    %v3159 = vsel %vm3142, %v3094, %v1956
    %v3160 = vsel %vm3142, %v3095, %v1958
    %v3161 = vsel %vm3142, %v3096, %v1960
    %v3162 = vsel %vm3142, %v3097, %v1962
    %v3163 = vsel %vm3142, %v3098, %v1964
    %v3164 = vsel %vm3142, %v3099, %v1966
    %v3165 = vsel %vm3142, %v3100, %v1968
    %v3166 = vsel %vm3142, %v3101, %v1970
    %v3167 = vsel %vm3142, %v3102, %v1972
    %v3168 = vsel %vm3142, %v3103, %v1974
    %v3169 = vsel %vm3142, %v3104, %v1976
    %v3170 = vsel %vm3142, %v3105, %v1978
    %v3171 = vsel %vm3142, %v3106, %v1980
    %v3172 = vsel %vm3142, %v3107, %v1982
    %v3173 = vsel %vm3142, %v3108, %v1984
    %v3174 = vsel %vm3142, %v3109, %v1986
    %v3175 = vsel %vm3142, %v3110, %v1988
    %v3176 = vsel %vm3142, %v3111, %v1990
    %v3177 = vsel %vm3142, %v3112, %v1992
    %v3178 = vsel %vm3142, %v3113, %v1994
    %v3179 = vsel %vm3142, %v3114, %v1996
    %v3180 = vsel %vm3142, %v3115, %v1998
    %v3181 = vsel %vm3142, %v3116, %v2000
    %v3182 = vsel %vm3142, %v3117, %v2002
    %v3183 = vsel %vm3142, %v3118, %v2004
    %v3184 = vsel %vm3142, %v3119, %v2006
    %v3185 = vsel %vm3142, %v3120, %v2008
    %v3186 = vsel %vm3142, %v3121, %v2010
    %v3187 = vsel %vm3142, %v3122, %v2012
    %v3188 = vsel %vm3142, %v3123, %v2014
    %v3189 = vsel %vm3142, %v3124, %v2016
    %v3190 = vsel %vm3142, %v3125, %v2018
    %v3191 = vsel %vm3142, %v3126, %v2020
    %v3192 = vsel %vm3142, %v3127, %v2022
    %v3193 = vsel %vm3142, %v3128, %v2024
    %v3194 = vsel %vm3142, %v3129, %v2026
    %v3195 = vsel %vm3142, %v3130, %v2028
    %v3196 = vsel %vm3142, %v3131, %v2030
    %v3197 = vsel %vm3142, %v3132, %v2032
    %v3198 = vsel %vm3142, %v3133, %v2034
    %v3199 = vsel %vm3142, %v3134, %v2036
    %v3200 = vsel %vm3142, %v3135, %v2038
    %v3201 = vsel %vm3142, %v3136, %v2040
    %v3202 = vsel %vm3142, %v3137, %v2042
    %v3203 = vsel %vm3142, %v3138, %v2044
    %v3204 = vsel %vm3142, %v3139, %v2046
    %v3205 = vsel %vm3142, %v3140, %v2048
    %v3206 = vsel %vm3142, %v3141, %v2050
    %vm3207 = vcmask 195584
    %v3208 = vsel %vm3207, %v3143, %v2180
    %v3209 = vsel %vm3207, %v3144, %v2182
    %v3210 = vsel %vm3207, %v3145, %v2184
    %v3211 = vsel %vm3207, %v3146, %v2186
    %v3212 = vsel %vm3207, %v3147, %v2188
    %v3213 = vsel %vm3207, %v3148, %v2190
    %v3214 = vsel %vm3207, %v3149, %v2192
    %v3215 = vsel %vm3207, %v3150, %v2194
    %v3216 = vsel %vm3207, %v3151, %v2196
    %v3217 = vsel %vm3207, %v3152, %v2198
    %v3218 = vsel %vm3207, %v3153, %v2200
    %v3219 = vsel %vm3207, %v3154, %v2202
    %v3220 = vsel %vm3207, %v3155, %v2204
    %v3221 = vsel %vm3207, %v3156, %v2206
    %v3222 = vsel %vm3207, %v3157, %v2208
    %v3223 = vsel %vm3207, %v3158, %v2210
    %v3224 = vsel %vm3207, %v3159, %v2212
    %v3225 = vsel %vm3207, %v3160, %v2214
    %v3226 = vsel %vm3207, %v3161, %v2216
    %v3227 = vsel %vm3207, %v3162, %v2218
    %v3228 = vsel %vm3207, %v3163, %v2220
    %v3229 = vsel %vm3207, %v3164, %v2222
    %v3230 = vsel %vm3207, %v3165, %v2224
    %v3231 = vsel %vm3207, %v3166, %v2226
    %v3232 = vsel %vm3207, %v3167, %v2228
    %v3233 = vsel %vm3207, %v3168, %v2230
    %v3234 = vsel %vm3207, %v3169, %v2232
    %v3235 = vsel %vm3207, %v3170, %v2234
    %v3236 = vsel %vm3207, %v3171, %v2236
    %v3237 = vsel %vm3207, %v3172, %v2238
    %v3238 = vsel %vm3207, %v3173, %v2240
    %v3239 = vsel %vm3207, %v3174, %v2242
    %v3240 = vsel %vm3207, %v3175, %v2244
    %v3241 = vsel %vm3207, %v3176, %v2246
    %v3242 = vsel %vm3207, %v3177, %v2248
    %v3243 = vsel %vm3207, %v3178, %v2250
    %v3244 = vsel %vm3207, %v3179, %v2252
    %v3245 = vsel %vm3207, %v3180, %v2254
    %v3246 = vsel %vm3207, %v3181, %v2256
    %v3247 = vsel %vm3207, %v3182, %v2258
    %v3248 = vsel %vm3207, %v3183, %v2260
    %v3249 = vsel %vm3207, %v3184, %v2262
    %v3250 = vsel %vm3207, %v3185, %v2264
    %v3251 = vsel %vm3207, %v3186, %v2266
    %v3252 = vsel %vm3207, %v3187, %v2268
    %v3253 = vsel %vm3207, %v3188, %v2270
    %v3254 = vsel %vm3207, %v3189, %v2272
    %v3255 = vsel %vm3207, %v3190, %v2274
    %v3256 = vsel %vm3207, %v3191, %v2276
    %v3257 = vsel %vm3207, %v3192, %v2278
    %v3258 = vsel %vm3207, %v3193, %v2280
    %v3259 = vsel %vm3207, %v3194, %v2282
    %v3260 = vsel %vm3207, %v3195, %v2284
    %v3261 = vsel %vm3207, %v3196, %v2286
    %v3262 = vsel %vm3207, %v3197, %v2288
    %v3263 = vsel %vm3207, %v3198, %v2290
    %v3264 = vsel %vm3207, %v3199, %v2292
    %v3265 = vsel %vm3207, %v3200, %v2294
    %v3266 = vsel %vm3207, %v3201, %v2296
    %v3267 = vsel %vm3207, %v3202, %v2298
    %v3268 = vsel %vm3207, %v3203, %v2300
    %v3269 = vsel %vm3207, %v3204, %v2302
    %v3270 = vsel %vm3207, %v3205, %v2304
    %v3271 = vsel %vm3207, %v3206, %v2306
    %vm3272 = vcmask 228352
    %v3273 = vsel %vm3272, %v3208, %v2436
    %v3274 = vsel %vm3272, %v3209, %v2438
    %v3275 = vsel %vm3272, %v3210, %v2440
    %v3276 = vsel %vm3272, %v3211, %v2442
    %v3277 = vsel %vm3272, %v3212, %v2444
    %v3278 = vsel %vm3272, %v3213, %v2446
    %v3279 = vsel %vm3272, %v3214, %v2448
    %v3280 = vsel %vm3272, %v3215, %v2450
    %v3281 = vsel %vm3272, %v3216, %v2452
    %v3282 = vsel %vm3272, %v3217, %v2454
    %v3283 = vsel %vm3272, %v3218, %v2456
    %v3284 = vsel %vm3272, %v3219, %v2458
    %v3285 = vsel %vm3272, %v3220, %v2460
    %v3286 = vsel %vm3272, %v3221, %v2462
    %v3287 = vsel %vm3272, %v3222, %v2464
    %v3288 = vsel %vm3272, %v3223, %v2466
    %v3289 = vsel %vm3272, %v3224, %v2468
    %v3290 = vsel %vm3272, %v3225, %v2470
    %v3291 = vsel %vm3272, %v3226, %v2472
    %v3292 = vsel %vm3272, %v3227, %v2474
    %v3293 = vsel %vm3272, %v3228, %v2476
    %v3294 = vsel %vm3272, %v3229, %v2478
    %v3295 = vsel %vm3272, %v3230, %v2480
    %v3296 = vsel %vm3272, %v3231, %v2482
    %v3297 = vsel %vm3272, %v3232, %v2484
    %v3298 = vsel %vm3272, %v3233, %v2486
    %v3299 = vsel %vm3272, %v3234, %v2488
    %v3300 = vsel %vm3272, %v3235, %v2490
    %v3301 = vsel %vm3272, %v3236, %v2492
    %v3302 = vsel %vm3272, %v3237, %v2494
    %v3303 = vsel %vm3272, %v3238, %v2496
    %v3304 = vsel %vm3272, %v3239, %v2498
    %v3305 = vsel %vm3272, %v3240, %v2500
    %v3306 = vsel %vm3272, %v3241, %v2502
    %v3307 = vsel %vm3272, %v3242, %v2504
    %v3308 = vsel %vm3272, %v3243, %v2506
    %v3309 = vsel %vm3272, %v3244, %v2508
    %v3310 = vsel %vm3272, %v3245, %v2510
    %v3311 = vsel %vm3272, %v3246, %v2512
    %v3312 = vsel %vm3272, %v3247, %v2514
    %v3313 = vsel %vm3272, %v3248, %v2516
    %v3314 = vsel %vm3272, %v3249, %v2518
    %v3315 = vsel %vm3272, %v3250, %v2520
    %v3316 = vsel %vm3272, %v3251, %v2522
    %v3317 = vsel %vm3272, %v3252, %v2524
    %v3318 = vsel %vm3272, %v3253, %v2526
    %v3319 = vsel %vm3272, %v3254, %v2528
    %v3320 = vsel %vm3272, %v3255, %v2530
    %v3321 = vsel %vm3272, %v3256, %v2532
    %v3322 = vsel %vm3272, %v3257, %v2534
    %v3323 = vsel %vm3272, %v3258, %v2536
    %v3324 = vsel %vm3272, %v3259, %v2538
    %v3325 = vsel %vm3272, %v3260, %v2540
    %v3326 = vsel %vm3272, %v3261, %v2542
    %v3327 = vsel %vm3272, %v3262, %v2544
    %v3328 = vsel %vm3272, %v3263, %v2546
    %v3329 = vsel %vm3272, %v3264, %v2548
    %v3330 = vsel %vm3272, %v3265, %v2550
    %v3331 = vsel %vm3272, %v3266, %v2552
    %v3332 = vsel %vm3272, %v3267, %v2554
    %v3333 = vsel %vm3272, %v3268, %v2556
    %v3334 = vsel %vm3272, %v3269, %v2558
    %v3335 = vsel %vm3272, %v3270, %v2560
    %v3336 = vsel %vm3272, %v3271, %v2562
    %vm3337 = vcmask 261120
    %v3338 = vsel %vm3337, %v3273, %v2692
    %v3339 = vsel %vm3337, %v3274, %v2694
    %v3340 = vsel %vm3337, %v3275, %v2696
    %v3341 = vsel %vm3337, %v3276, %v2698
    %v3342 = vsel %vm3337, %v3277, %v2700
    %v3343 = vsel %vm3337, %v3278, %v2702
    %v3344 = vsel %vm3337, %v3279, %v2704
    %v3345 = vsel %vm3337, %v3280, %v2706
    %v3346 = vsel %vm3337, %v3281, %v2708
    %v3347 = vsel %vm3337, %v3282, %v2710
    %v3348 = vsel %vm3337, %v3283, %v2712
    %v3349 = vsel %vm3337, %v3284, %v2714
    %v3350 = vsel %vm3337, %v3285, %v2716
    %v3351 = vsel %vm3337, %v3286, %v2718
    %v3352 = vsel %vm3337, %v3287, %v2720
    %v3353 = vsel %vm3337, %v3288, %v2722
    %v3354 = vsel %vm3337, %v3289, %v2724
    %v3355 = vsel %vm3337, %v3290, %v2726
    %v3356 = vsel %vm3337, %v3291, %v2728
    %v3357 = vsel %vm3337, %v3292, %v2730
    %v3358 = vsel %vm3337, %v3293, %v2732
    %v3359 = vsel %vm3337, %v3294, %v2734
    %v3360 = vsel %vm3337, %v3295, %v2736
    %v3361 = vsel %vm3337, %v3296, %v2738
    %v3362 = vsel %vm3337, %v3297, %v2740
    %v3363 = vsel %vm3337, %v3298, %v2742
    %v3364 = vsel %vm3337, %v3299, %v2744
    %v3365 = vsel %vm3337, %v3300, %v2746
    %v3366 = vsel %vm3337, %v3301, %v2748
    %v3367 = vsel %vm3337, %v3302, %v2750
    %v3368 = vsel %vm3337, %v3303, %v2752
    %v3369 = vsel %vm3337, %v3304, %v2754
    %v3370 = vsel %vm3337, %v3305, %v2756
    %v3371 = vsel %vm3337, %v3306, %v2758
    %v3372 = vsel %vm3337, %v3307, %v2760
    %v3373 = vsel %vm3337, %v3308, %v2762
    %v3374 = vsel %vm3337, %v3309, %v2764
    %v3375 = vsel %vm3337, %v3310, %v2766
    %v3376 = vsel %vm3337, %v3311, %v2768
    %v3377 = vsel %vm3337, %v3312, %v2770
    %v3378 = vsel %vm3337, %v3313, %v2772
    %v3379 = vsel %vm3337, %v3314, %v2774
    %v3380 = vsel %vm3337, %v3315, %v2776
    %v3381 = vsel %vm3337, %v3316, %v2778
    %v3382 = vsel %vm3337, %v3317, %v2780
    %v3383 = vsel %vm3337, %v3318, %v2782
    %v3384 = vsel %vm3337, %v3319, %v2784
    %v3385 = vsel %vm3337, %v3320, %v2786
    %v3386 = vsel %vm3337, %v3321, %v2788
    %v3387 = vsel %vm3337, %v3322, %v2790
    %v3388 = vsel %vm3337, %v3323, %v2792
    %v3389 = vsel %vm3337, %v3324, %v2794
    %v3390 = vsel %vm3337, %v3325, %v2796
    %v3391 = vsel %vm3337, %v3326, %v2798
    %v3392 = vsel %vm3337, %v3327, %v2800
    %v3393 = vsel %vm3337, %v3328, %v2802
    %v3394 = vsel %vm3337, %v3329, %v2804
    %v3395 = vsel %vm3337, %v3330, %v2806
    %v3396 = vsel %vm3337, %v3331, %v2808
    %v3397 = vsel %vm3337, %v3332, %v2810
    %v3398 = vsel %vm3337, %v3333, %v2812
    %v3399 = vsel %vm3337, %v3334, %v2814
    %v3400 = vsel %vm3337, %v3335, %v2816
    %v3401 = vsel %vm3337, %v3336, %v2818
    %v3402 = vpack.c.bf16 %v3339, %v3338
    %v3403 = vpack.c.bf16 %v3341, %v3340
    %v3404 = vpack.c.bf16 %v3343, %v3342
    %v3405 = vpack.c.bf16 %v3345, %v3344
    %v3406 = vpack.c.bf16 %v3347, %v3346
    %v3407 = vpack.c.bf16 %v3349, %v3348
    %v3408 = vpack.c.bf16 %v3351, %v3350
    %v3409 = vpack.c.bf16 %v3353, %v3352
    %v3410 = vpack.c.bf16 %v3355, %v3354
    %v3411 = vpack.c.bf16 %v3357, %v3356
    %v3412 = vpack.c.bf16 %v3359, %v3358
    %v3413 = vpack.c.bf16 %v3361, %v3360
    %v3414 = vpack.c.bf16 %v3363, %v3362
    %v3415 = vpack.c.bf16 %v3365, %v3364
    %v3416 = vpack.c.bf16 %v3367, %v3366
    %v3417 = vpack.c.bf16 %v3369, %v3368
    %v3418 = vpack.c.bf16 %v3371, %v3370
    %v3419 = vpack.c.bf16 %v3373, %v3372
    %v3420 = vpack.c.bf16 %v3375, %v3374
    %v3421 = vpack.c.bf16 %v3377, %v3376
    %v3422 = vpack.c.bf16 %v3379, %v3378
    %v3423 = vpack.c.bf16 %v3381, %v3380
    %v3424 = vpack.c.bf16 %v3383, %v3382
    %v3425 = vpack.c.bf16 %v3385, %v3384
    %v3426 = vpack.c.bf16 %v3387, %v3386
    %v3427 = vpack.c.bf16 %v3389, %v3388
    %v3428 = vpack.c.bf16 %v3391, %v3390
    %v3429 = vpack.c.bf16 %v3393, %v3392
    %v3430 = vpack.c.bf16 %v3395, %v3394
    %v3431 = vpack.c.bf16 %v3397, %v3396
    %v3432 = vpack.c.bf16 %v3399, %v3398
    %v3433 = vpack.c.bf16 %v3401, %v3400
    %v3434 = vld [vmem:[%s1] sm:$0xf]
    %v3435 = vld [vmem:[%s1 + $0x4] sm:$0xf]
    %v3436 = vld [vmem:[%s1 + $0x8] sm:$0xf]
    %v3437 = vld [vmem:[%s1 + $0xc] sm:$0xf]
    %v3438 = vld [vmem:[%s1 + $0x10] sm:$0x3]
    %v3444 = vunpack.c.l.b16 %v3434
    %v3445 = vunpack.c.l.b16 %v3435
    %v3446 = vunpack.c.l.b16 %v3436
    %v3447 = vunpack.c.l.b16 %v3437
    %v3448 = vunpack.c.l.b16 %v3438
    %v3449 = vpack.c.b16 %v3445, %v3444
    %v3450 = vpack.c.b16 %v3447, %v3446
    %v3451 = vpack.c.b16 %v3448, %v3448
    %vm3454 = vcmask 293888
    %v3456 = vsel %vm3454, %v3402, 0
    %v3459 = vsel %vm3454, %v3403, 0
    %v3462 = vsel %vm3454, %v3404, 0
    %v3465 = vsel %vm3454, %v3405, 0
    %v3468 = vsel %vm3454, %v3406, 0
    %v3471 = vsel %vm3454, %v3407, 0
    %v3474 = vsel %vm3454, %v3408, 0
    %v3477 = vsel %vm3454, %v3409, 0
    %v3480 = vsel %vm3454, %v3410, 0
    %v3483 = vsel %vm3454, %v3411, 0
    %v3486 = vsel %vm3454, %v3412, 0
    %v3489 = vsel %vm3454, %v3413, 0
    %v3492 = vsel %vm3454, %v3414, 0
    %v3495 = vsel %vm3454, %v3415, 0
    %v3498 = vsel %vm3454, %v3416, 0
    %v3501 = vsel %vm3454, %v3417, 0
    %v3504 = vsel %vm3454, %v3418, 0
    %v3507 = vsel %vm3454, %v3419, 0
    %v3510 = vsel %vm3454, %v3420, 0
    %v3513 = vsel %vm3454, %v3421, 0
    %v3516 = vsel %vm3454, %v3422, 0
    %v3519 = vsel %vm3454, %v3423, 0
    %v3522 = vsel %vm3454, %v3424, 0
    %v3525 = vsel %vm3454, %v3425, 0
    %v3528 = vsel %vm3454, %v3426, 0
    %v3531 = vsel %vm3454, %v3427, 0
    %v3534 = vsel %vm3454, %v3428, 0
    %v3537 = vsel %vm3454, %v3429, 0
    %v3540 = vsel %vm3454, %v3430, 0
    %v3543 = vsel %vm3454, %v3431, 0
    %v3546 = vsel %vm3454, %v3432, 0
    %v3549 = vsel %vm3454, %v3433, 0
    %vm3551 = vcmask 1041408
    %v3553 = vsel %vm3551, %v3451, 0
    %3555 = vmatpush.bf16.msra.mxu0 0
    %3556 = vmatpush.bf16.msra.mxu0 0
    %3557 = vmatpush.bf16.msra.mxu0 0
    %3558 = vmatpush.bf16.msra.mxu0 0
    %3559 = vmatpush.bf16.msra.mxu0 0
    %3560 = vmatpush.bf16.msra.mxu0 %v3553
    %3561 = vmatpush.bf16.msra.mxu0 %v3450
    %3562 = vmatpush.bf16.msra.mxu0 %v3449
    %3563 = vmatmul.bf16.gmra.mxu0 %v3456
    %v3564 = vpop.f32.mrf.mxu0
    %v3565 = vadd.f32 0.0, %v3564
    %v3566 = vpop.f32.mrf.mxu0
    %v3567 = vadd.f32 0.0, %v3566
    %3568 = vmatmul.bf16.gmra.mxu0 %v3459
    %v3569 = vpop.f32.mrf.mxu0
    %v3570 = vadd.f32 0.0, %v3569
    %v3571 = vpop.f32.mrf.mxu0
    %v3572 = vadd.f32 0.0, %v3571
    %3573 = vmatmul.bf16.gmra.mxu0 %v3462
    %v3574 = vpop.f32.mrf.mxu0
    %v3575 = vadd.f32 0.0, %v3574
    %v3576 = vpop.f32.mrf.mxu0
    %v3577 = vadd.f32 0.0, %v3576
    %3578 = vmatmul.bf16.gmra.mxu0 %v3465
    %v3579 = vpop.f32.mrf.mxu0
    %v3580 = vadd.f32 0.0, %v3579
    %v3581 = vpop.f32.mrf.mxu0
    %v3582 = vadd.f32 0.0, %v3581
    %3583 = vmatmul.bf16.gmra.mxu0 %v3468
    %v3584 = vpop.f32.mrf.mxu0
    %v3585 = vadd.f32 0.0, %v3584
    %v3586 = vpop.f32.mrf.mxu0
    %v3587 = vadd.f32 0.0, %v3586
    %3588 = vmatmul.bf16.gmra.mxu0 %v3471
    %v3589 = vpop.f32.mrf.mxu0
    %v3590 = vadd.f32 0.0, %v3589
    %v3591 = vpop.f32.mrf.mxu0
    %v3592 = vadd.f32 0.0, %v3591
    %3593 = vmatmul.bf16.gmra.mxu0 %v3474
    %v3594 = vpop.f32.mrf.mxu0
    %v3595 = vadd.f32 0.0, %v3594
    %v3596 = vpop.f32.mrf.mxu0
    %v3597 = vadd.f32 0.0, %v3596
    %3598 = vmatmul.bf16.gmra.mxu0 %v3477
    %v3599 = vpop.f32.mrf.mxu0
    %v3600 = vadd.f32 0.0, %v3599
    %v3601 = vpop.f32.mrf.mxu0
    %v3602 = vadd.f32 0.0, %v3601
    %3603 = vmatmul.bf16.gmra.mxu0 %v3480
    %v3604 = vpop.f32.mrf.mxu0
    %v3605 = vadd.f32 0.0, %v3604
    %v3606 = vpop.f32.mrf.mxu0
    %v3607 = vadd.f32 0.0, %v3606
    %3608 = vmatmul.bf16.gmra.mxu0 %v3483
    %v3609 = vpop.f32.mrf.mxu0
    %v3610 = vadd.f32 0.0, %v3609
    %v3611 = vpop.f32.mrf.mxu0
    %v3612 = vadd.f32 0.0, %v3611
    %3613 = vmatmul.bf16.gmra.mxu0 %v3486
    %v3614 = vpop.f32.mrf.mxu0
    %v3615 = vadd.f32 0.0, %v3614
    %v3616 = vpop.f32.mrf.mxu0
    %v3617 = vadd.f32 0.0, %v3616
    %3618 = vmatmul.bf16.gmra.mxu0 %v3489
    %v3619 = vpop.f32.mrf.mxu0
    %v3620 = vadd.f32 0.0, %v3619
    %v3621 = vpop.f32.mrf.mxu0
    %v3622 = vadd.f32 0.0, %v3621
    %3623 = vmatmul.bf16.gmra.mxu0 %v3492
    %v3624 = vpop.f32.mrf.mxu0
    %v3625 = vadd.f32 0.0, %v3624
    %v3626 = vpop.f32.mrf.mxu0
    %v3627 = vadd.f32 0.0, %v3626
    %3628 = vmatmul.bf16.gmra.mxu0 %v3495
    %v3629 = vpop.f32.mrf.mxu0
    %v3630 = vadd.f32 0.0, %v3629
    %v3631 = vpop.f32.mrf.mxu0
    %v3632 = vadd.f32 0.0, %v3631
    %3633 = vmatmul.bf16.gmra.mxu0 %v3498
    %v3634 = vpop.f32.mrf.mxu0
    %v3635 = vadd.f32 0.0, %v3634
    %v3636 = vpop.f32.mrf.mxu0
    %v3637 = vadd.f32 0.0, %v3636
    %3638 = vmatmul.bf16.gmra.mxu0 %v3501
    %v3639 = vpop.f32.mrf.mxu0
    %v3640 = vadd.f32 0.0, %v3639
    %v3641 = vpop.f32.mrf.mxu0
    %v3642 = vadd.f32 0.0, %v3641
    %3643 = vmatmul.bf16.gmra.mxu0 %v3504
    %v3644 = vpop.f32.mrf.mxu0
    %v3645 = vadd.f32 0.0, %v3644
    %v3646 = vpop.f32.mrf.mxu0
    %v3647 = vadd.f32 0.0, %v3646
    %3648 = vmatmul.bf16.gmra.mxu0 %v3507
    %v3649 = vpop.f32.mrf.mxu0
    %v3650 = vadd.f32 0.0, %v3649
    %v3651 = vpop.f32.mrf.mxu0
    %v3652 = vadd.f32 0.0, %v3651
    %3653 = vmatmul.bf16.gmra.mxu0 %v3510
    %v3654 = vpop.f32.mrf.mxu0
    %v3655 = vadd.f32 0.0, %v3654
    %v3656 = vpop.f32.mrf.mxu0
    %v3657 = vadd.f32 0.0, %v3656
    %3658 = vmatmul.bf16.gmra.mxu0 %v3513
    %v3659 = vpop.f32.mrf.mxu0
    %v3660 = vadd.f32 0.0, %v3659
    %v3661 = vpop.f32.mrf.mxu0
    %v3662 = vadd.f32 0.0, %v3661
    %3663 = vmatmul.bf16.gmra.mxu0 %v3516
    %v3664 = vpop.f32.mrf.mxu0
    %v3665 = vadd.f32 0.0, %v3664
    %v3666 = vpop.f32.mrf.mxu0
    %v3667 = vadd.f32 0.0, %v3666
    %3668 = vmatmul.bf16.gmra.mxu0 %v3519
    %v3669 = vpop.f32.mrf.mxu0
    %v3670 = vadd.f32 0.0, %v3669
    %v3671 = vpop.f32.mrf.mxu0
    %v3672 = vadd.f32 0.0, %v3671
    %3673 = vmatmul.bf16.gmra.mxu0 %v3522
    %v3674 = vpop.f32.mrf.mxu0
    %v3675 = vadd.f32 0.0, %v3674
    %v3676 = vpop.f32.mrf.mxu0
    %v3677 = vadd.f32 0.0, %v3676
    %3678 = vmatmul.bf16.gmra.mxu0 %v3525
    %v3679 = vpop.f32.mrf.mxu0
    %v3680 = vadd.f32 0.0, %v3679
    %v3681 = vpop.f32.mrf.mxu0
    %v3682 = vadd.f32 0.0, %v3681
    %3683 = vmatmul.bf16.gmra.mxu0 %v3528
    %v3684 = vpop.f32.mrf.mxu0
    %v3685 = vadd.f32 0.0, %v3684
    %v3686 = vpop.f32.mrf.mxu0
    %v3687 = vadd.f32 0.0, %v3686
    %3688 = vmatmul.bf16.gmra.mxu0 %v3531
    %v3689 = vpop.f32.mrf.mxu0
    %v3690 = vadd.f32 0.0, %v3689
    %v3691 = vpop.f32.mrf.mxu0
    %v3692 = vadd.f32 0.0, %v3691
    %3693 = vmatmul.bf16.gmra.mxu0 %v3534
    %v3694 = vpop.f32.mrf.mxu0
    %v3695 = vadd.f32 0.0, %v3694
    %v3696 = vpop.f32.mrf.mxu0
    %v3697 = vadd.f32 0.0, %v3696
    %3698 = vmatmul.bf16.gmra.mxu0 %v3537
    %v3699 = vpop.f32.mrf.mxu0
    %v3700 = vadd.f32 0.0, %v3699
    %v3701 = vpop.f32.mrf.mxu0
    %v3702 = vadd.f32 0.0, %v3701
    %3703 = vmatmul.bf16.gmra.mxu0 %v3540
    %v3704 = vpop.f32.mrf.mxu0
    %v3705 = vadd.f32 0.0, %v3704
    %v3706 = vpop.f32.mrf.mxu0
    %v3707 = vadd.f32 0.0, %v3706
    %3708 = vmatmul.bf16.gmra.mxu0 %v3543
    %v3709 = vpop.f32.mrf.mxu0
    %v3710 = vadd.f32 0.0, %v3709
    %v3711 = vpop.f32.mrf.mxu0
    %v3712 = vadd.f32 0.0, %v3711
    %3713 = vmatmul.bf16.gmra.mxu0 %v3546
    %v3714 = vpop.f32.mrf.mxu0
    %v3715 = vadd.f32 0.0, %v3714
    %v3716 = vpop.f32.mrf.mxu0
    %v3717 = vadd.f32 0.0, %v3716
    %3718 = vmatmul.bf16.gmra.mxu0 %v3549
    %v3719 = vpop.f32.mrf.mxu0
    %v3720 = vadd.f32 0.0, %v3719
    %v3721 = vpop.f32.mrf.mxu0
    %v3722 = vadd.f32 0.0, %v3721
    %3723 = vdwg.mxu0
    %v3724 = vld [vmem:[%s2] sm:$0x1]
    %v3726 = vperm.slane %v3724, 0
    %v3728 = vmul.f32 %v3565, %v3726
    %v3729 = vmul.f32 %v3567, %v3726
    %v3730 = vmul.f32 %v3570, %v3726
    %v3731 = vmul.f32 %v3572, %v3726
    %v3732 = vmul.f32 %v3575, %v3726
    %v3733 = vmul.f32 %v3577, %v3726
    %v3734 = vmul.f32 %v3580, %v3726
    %v3735 = vmul.f32 %v3582, %v3726
    %v3736 = vmul.f32 %v3585, %v3726
    %v3737 = vmul.f32 %v3587, %v3726
    %v3738 = vmul.f32 %v3590, %v3726
    %v3739 = vmul.f32 %v3592, %v3726
    %v3740 = vmul.f32 %v3595, %v3726
    %v3741 = vmul.f32 %v3597, %v3726
    %v3742 = vmul.f32 %v3600, %v3726
    %v3743 = vmul.f32 %v3602, %v3726
    %v3744 = vmul.f32 %v3605, %v3726
    %v3745 = vmul.f32 %v3607, %v3726
    %v3746 = vmul.f32 %v3610, %v3726
    %v3747 = vmul.f32 %v3612, %v3726
    %v3748 = vmul.f32 %v3615, %v3726
    %v3749 = vmul.f32 %v3617, %v3726
    %v3750 = vmul.f32 %v3620, %v3726
    %v3751 = vmul.f32 %v3622, %v3726
    %v3752 = vmul.f32 %v3625, %v3726
    %v3753 = vmul.f32 %v3627, %v3726
    %v3754 = vmul.f32 %v3630, %v3726
    %v3755 = vmul.f32 %v3632, %v3726
    %v3756 = vmul.f32 %v3635, %v3726
    %v3757 = vmul.f32 %v3637, %v3726
    %v3758 = vmul.f32 %v3640, %v3726
    %v3759 = vmul.f32 %v3642, %v3726
    %v3760 = vmul.f32 %v3645, %v3726
    %v3761 = vmul.f32 %v3647, %v3726
    %v3762 = vmul.f32 %v3650, %v3726
    %v3763 = vmul.f32 %v3652, %v3726
    %v3764 = vmul.f32 %v3655, %v3726
    %v3765 = vmul.f32 %v3657, %v3726
    %v3766 = vmul.f32 %v3660, %v3726
    %v3767 = vmul.f32 %v3662, %v3726
    %v3768 = vmul.f32 %v3665, %v3726
    %v3769 = vmul.f32 %v3667, %v3726
    %v3770 = vmul.f32 %v3670, %v3726
    %v3771 = vmul.f32 %v3672, %v3726
    %v3772 = vmul.f32 %v3675, %v3726
    %v3773 = vmul.f32 %v3677, %v3726
    %v3774 = vmul.f32 %v3680, %v3726
    %v3775 = vmul.f32 %v3682, %v3726
    %v3776 = vmul.f32 %v3685, %v3726
    %v3777 = vmul.f32 %v3687, %v3726
    %v3778 = vmul.f32 %v3690, %v3726
    %v3779 = vmul.f32 %v3692, %v3726
    %v3780 = vmul.f32 %v3695, %v3726
    %v3781 = vmul.f32 %v3697, %v3726
    %v3782 = vmul.f32 %v3700, %v3726
    %v3783 = vmul.f32 %v3702, %v3726
    %v3784 = vmul.f32 %v3705, %v3726
    %v3785 = vmul.f32 %v3707, %v3726
    %v3786 = vmul.f32 %v3710, %v3726
    %v3787 = vmul.f32 %v3712, %v3726
    %v3788 = vmul.f32 %v3715, %v3726
    %v3789 = vmul.f32 %v3717, %v3726
    %v3790 = vmul.f32 %v3720, %v3726
    %v3791 = vmul.f32 %v3722, %v3726
    %v3792 = vld [vmem:[%s3] sm:$0x1]
    %v3794 = vperm.slane %v3792, 0
    %v3796 = vadd.f32 %v3728, %v3794
    %v3797 = vadd.f32 %v3729, %v3794
    %v3798 = vadd.f32 %v3730, %v3794
    %v3799 = vadd.f32 %v3731, %v3794
    %v3800 = vadd.f32 %v3732, %v3794
    %v3801 = vadd.f32 %v3733, %v3794
    %v3802 = vadd.f32 %v3734, %v3794
    %v3803 = vadd.f32 %v3735, %v3794
    %v3804 = vadd.f32 %v3736, %v3794
    %v3805 = vadd.f32 %v3737, %v3794
    %v3806 = vadd.f32 %v3738, %v3794
    %v3807 = vadd.f32 %v3739, %v3794
    %v3808 = vadd.f32 %v3740, %v3794
    %v3809 = vadd.f32 %v3741, %v3794
    %v3810 = vadd.f32 %v3742, %v3794
    %v3811 = vadd.f32 %v3743, %v3794
    %v3812 = vadd.f32 %v3744, %v3794
    %v3813 = vadd.f32 %v3745, %v3794
    %v3814 = vadd.f32 %v3746, %v3794
    %v3815 = vadd.f32 %v3747, %v3794
    %v3816 = vadd.f32 %v3748, %v3794
    %v3817 = vadd.f32 %v3749, %v3794
    %v3818 = vadd.f32 %v3750, %v3794
    %v3819 = vadd.f32 %v3751, %v3794
    %v3820 = vadd.f32 %v3752, %v3794
    %v3821 = vadd.f32 %v3753, %v3794
    %v3822 = vadd.f32 %v3754, %v3794
    %v3823 = vadd.f32 %v3755, %v3794
    %v3824 = vadd.f32 %v3756, %v3794
    %v3825 = vadd.f32 %v3757, %v3794
    %v3826 = vadd.f32 %v3758, %v3794
    %v3827 = vadd.f32 %v3759, %v3794
    %v3828 = vadd.f32 %v3760, %v3794
    %v3829 = vadd.f32 %v3761, %v3794
    %v3830 = vadd.f32 %v3762, %v3794
    %v3831 = vadd.f32 %v3763, %v3794
    %v3832 = vadd.f32 %v3764, %v3794
    %v3833 = vadd.f32 %v3765, %v3794
    %v3834 = vadd.f32 %v3766, %v3794
    %v3835 = vadd.f32 %v3767, %v3794
    %v3836 = vadd.f32 %v3768, %v3794
    %v3837 = vadd.f32 %v3769, %v3794
    %v3838 = vadd.f32 %v3770, %v3794
    %v3839 = vadd.f32 %v3771, %v3794
    %v3840 = vadd.f32 %v3772, %v3794
    %v3841 = vadd.f32 %v3773, %v3794
    %v3842 = vadd.f32 %v3774, %v3794
    %v3843 = vadd.f32 %v3775, %v3794
    %v3844 = vadd.f32 %v3776, %v3794
    %v3845 = vadd.f32 %v3777, %v3794
    %v3846 = vadd.f32 %v3778, %v3794
    %v3847 = vadd.f32 %v3779, %v3794
    %v3848 = vadd.f32 %v3780, %v3794
    %v3849 = vadd.f32 %v3781, %v3794
    %v3850 = vadd.f32 %v3782, %v3794
    %v3851 = vadd.f32 %v3783, %v3794
    %v3852 = vadd.f32 %v3784, %v3794
    %v3853 = vadd.f32 %v3785, %v3794
    %v3854 = vadd.f32 %v3786, %v3794
    %v3855 = vadd.f32 %v3787, %v3794
    %v3856 = vadd.f32 %v3788, %v3794
    %v3857 = vadd.f32 %v3789, %v3794
    %v3858 = vadd.f32 %v3790, %v3794
    %v3859 = vadd.f32 %v3791, %v3794
    %v3860 = vxor.u32 %v3796, 2147483648
    %v3861 = vxor.u32 %v3797, 2147483648
    %v3862 = vxor.u32 %v3798, 2147483648
    %v3863 = vxor.u32 %v3799, 2147483648
    %v3864 = vxor.u32 %v3800, 2147483648
    %v3865 = vxor.u32 %v3801, 2147483648
    %v3866 = vxor.u32 %v3802, 2147483648
    %v3867 = vxor.u32 %v3803, 2147483648
    %v3868 = vxor.u32 %v3804, 2147483648
    %v3869 = vxor.u32 %v3805, 2147483648
    %v3870 = vxor.u32 %v3806, 2147483648
    %v3871 = vxor.u32 %v3807, 2147483648
    %v3872 = vxor.u32 %v3808, 2147483648
    %v3873 = vxor.u32 %v3809, 2147483648
    %v3874 = vxor.u32 %v3810, 2147483648
    %v3875 = vxor.u32 %v3811, 2147483648
    %v3876 = vxor.u32 %v3812, 2147483648
    %v3877 = vxor.u32 %v3813, 2147483648
    %v3878 = vxor.u32 %v3814, 2147483648
    %v3879 = vxor.u32 %v3815, 2147483648
    %v3880 = vxor.u32 %v3816, 2147483648
    %v3881 = vxor.u32 %v3817, 2147483648
    %v3882 = vxor.u32 %v3818, 2147483648
    %v3883 = vxor.u32 %v3819, 2147483648
    %v3884 = vxor.u32 %v3820, 2147483648
    %v3885 = vxor.u32 %v3821, 2147483648
    %v3886 = vxor.u32 %v3822, 2147483648
    %v3887 = vxor.u32 %v3823, 2147483648
    %v3888 = vxor.u32 %v3824, 2147483648
    %v3889 = vxor.u32 %v3825, 2147483648
    %v3890 = vxor.u32 %v3826, 2147483648
    %v3891 = vxor.u32 %v3827, 2147483648
    %v3892 = vxor.u32 %v3828, 2147483648
    %v3893 = vxor.u32 %v3829, 2147483648
    %v3894 = vxor.u32 %v3830, 2147483648
    %v3895 = vxor.u32 %v3831, 2147483648
    %v3896 = vxor.u32 %v3832, 2147483648
    %v3897 = vxor.u32 %v3833, 2147483648
    %v3898 = vxor.u32 %v3834, 2147483648
    %v3899 = vxor.u32 %v3835, 2147483648
    %v3900 = vxor.u32 %v3836, 2147483648
    %v3901 = vxor.u32 %v3837, 2147483648
    %v3902 = vxor.u32 %v3838, 2147483648
    %v3903 = vxor.u32 %v3839, 2147483648
    %v3904 = vxor.u32 %v3840, 2147483648
    %v3905 = vxor.u32 %v3841, 2147483648
    %v3906 = vxor.u32 %v3842, 2147483648
    %v3907 = vxor.u32 %v3843, 2147483648
    %v3908 = vxor.u32 %v3844, 2147483648
    %v3909 = vxor.u32 %v3845, 2147483648
    %v3910 = vxor.u32 %v3846, 2147483648
    %v3911 = vxor.u32 %v3847, 2147483648
    %v3912 = vxor.u32 %v3848, 2147483648
    %v3913 = vxor.u32 %v3849, 2147483648
    %v3914 = vxor.u32 %v3850, 2147483648
    %v3915 = vxor.u32 %v3851, 2147483648
    %v3916 = vxor.u32 %v3852, 2147483648
    %v3917 = vxor.u32 %v3853, 2147483648
    %v3918 = vxor.u32 %v3854, 2147483648
    %v3919 = vxor.u32 %v3855, 2147483648
    %v3920 = vxor.u32 %v3856, 2147483648
    %v3921 = vxor.u32 %v3857, 2147483648
    %v3922 = vxor.u32 %v3858, 2147483648
    %v3923 = vxor.u32 %v3859, 2147483648
    %v3924 = vmul.f32 %v3860, 1.442695
    %v3925 = vpow.pop %v3924
    %v3926 = vmul.f32 %v3861, 1.442695
    %v3927 = vpow.pop %v3926
    %v3928 = vmul.f32 %v3862, 1.442695
    %v3929 = vpow.pop %v3928
    %v3930 = vmul.f32 %v3863, 1.442695
    %v3931 = vpow.pop %v3930
    %v3932 = vmul.f32 %v3864, 1.442695
    %v3933 = vpow.pop %v3932
    %v3934 = vmul.f32 %v3865, 1.442695
    %v3935 = vpow.pop %v3934
    %v3936 = vmul.f32 %v3866, 1.442695
    %v3937 = vpow.pop %v3936
    %v3938 = vmul.f32 %v3867, 1.442695
    %v3939 = vpow.pop %v3938
    %v3940 = vmul.f32 %v3868, 1.442695
    %v3941 = vpow.pop %v3940
    %v3942 = vmul.f32 %v3869, 1.442695
    %v3943 = vpow.pop %v3942
    %v3944 = vmul.f32 %v3870, 1.442695
    %v3945 = vpow.pop %v3944
    %v3946 = vmul.f32 %v3871, 1.442695
    %v3947 = vpow.pop %v3946
    %v3948 = vmul.f32 %v3872, 1.442695
    %v3949 = vpow.pop %v3948
    %v3950 = vmul.f32 %v3873, 1.442695
    %v3951 = vpow.pop %v3950
    %v3952 = vmul.f32 %v3874, 1.442695
    %v3953 = vpow.pop %v3952
    %v3954 = vmul.f32 %v3875, 1.442695
    %v3955 = vpow.pop %v3954
    %v3956 = vmul.f32 %v3876, 1.442695
    %v3957 = vpow.pop %v3956
    %v3958 = vmul.f32 %v3877, 1.442695
    %v3959 = vpow.pop %v3958
    %v3960 = vmul.f32 %v3878, 1.442695
    %v3961 = vpow.pop %v3960
    %v3962 = vmul.f32 %v3879, 1.442695
    %v3963 = vpow.pop %v3962
    %v3964 = vmul.f32 %v3880, 1.442695
    %v3965 = vpow.pop %v3964
    %v3966 = vmul.f32 %v3881, 1.442695
    %v3967 = vpow.pop %v3966
    %v3968 = vmul.f32 %v3882, 1.442695
    %v3969 = vpow.pop %v3968
    %v3970 = vmul.f32 %v3883, 1.442695
    %v3971 = vpow.pop %v3970
    %v3972 = vmul.f32 %v3884, 1.442695
    %v3973 = vpow.pop %v3972
    %v3974 = vmul.f32 %v3885, 1.442695
    %v3975 = vpow.pop %v3974
    %v3976 = vmul.f32 %v3886, 1.442695
    %v3977 = vpow.pop %v3976
    %v3978 = vmul.f32 %v3887, 1.442695
    %v3979 = vpow.pop %v3978
    %v3980 = vmul.f32 %v3888, 1.442695
    %v3981 = vpow.pop %v3980
    %v3982 = vmul.f32 %v3889, 1.442695
    %v3983 = vpow.pop %v3982
    %v3984 = vmul.f32 %v3890, 1.442695
    %v3985 = vpow.pop %v3984
    %v3986 = vmul.f32 %v3891, 1.442695
    %v3987 = vpow.pop %v3986
    %v3988 = vmul.f32 %v3892, 1.442695
    %v3989 = vpow.pop %v3988
    %v3990 = vmul.f32 %v3893, 1.442695
    %v3991 = vpow.pop %v3990
    %v3992 = vmul.f32 %v3894, 1.442695
    %v3993 = vpow.pop %v3992
    %v3994 = vmul.f32 %v3895, 1.442695
    %v3995 = vpow.pop %v3994
    %v3996 = vmul.f32 %v3896, 1.442695
    %v3997 = vpow.pop %v3996
    %v3998 = vmul.f32 %v3897, 1.442695
    %v3999 = vpow.pop %v3998
    %v4000 = vmul.f32 %v3898, 1.442695
    %v4001 = vpow.pop %v4000
    %v4002 = vmul.f32 %v3899, 1.442695
    %v4003 = vpow.pop %v4002
    %v4004 = vmul.f32 %v3900, 1.442695
    %v4005 = vpow.pop %v4004
    %v4006 = vmul.f32 %v3901, 1.442695
    %v4007 = vpow.pop %v4006
    %v4008 = vmul.f32 %v3902, 1.442695
    %v4009 = vpow.pop %v4008
    %v4010 = vmul.f32 %v3903, 1.442695
    %v4011 = vpow.pop %v4010
    %v4012 = vmul.f32 %v3904, 1.442695
    %v4013 = vpow.pop %v4012
    %v4014 = vmul.f32 %v3905, 1.442695
    %v4015 = vpow.pop %v4014
    %v4016 = vmul.f32 %v3906, 1.442695
    %v4017 = vpow.pop %v4016
    %v4018 = vmul.f32 %v3907, 1.442695
    %v4019 = vpow.pop %v4018
    %v4020 = vmul.f32 %v3908, 1.442695
    %v4021 = vpow.pop %v4020
    %v4022 = vmul.f32 %v3909, 1.442695
    %v4023 = vpow.pop %v4022
    %v4024 = vmul.f32 %v3910, 1.442695
    %v4025 = vpow.pop %v4024
    %v4026 = vmul.f32 %v3911, 1.442695
    %v4027 = vpow.pop %v4026
    %v4028 = vmul.f32 %v3912, 1.442695
    %v4029 = vpow.pop %v4028
    %v4030 = vmul.f32 %v3913, 1.442695
    %v4031 = vpow.pop %v4030
    %v4032 = vmul.f32 %v3914, 1.442695
    %v4033 = vpow.pop %v4032
    %v4034 = vmul.f32 %v3915, 1.442695
    %v4035 = vpow.pop %v4034
    %v4036 = vmul.f32 %v3916, 1.442695
    %v4037 = vpow.pop %v4036
    %v4038 = vmul.f32 %v3917, 1.442695
    %v4039 = vpow.pop %v4038
    %v4040 = vmul.f32 %v3918, 1.442695
    %v4041 = vpow.pop %v4040
    %v4042 = vmul.f32 %v3919, 1.442695
    %v4043 = vpow.pop %v4042
    %v4044 = vmul.f32 %v3920, 1.442695
    %v4045 = vpow.pop %v4044
    %v4046 = vmul.f32 %v3921, 1.442695
    %v4047 = vpow.pop %v4046
    %v4048 = vmul.f32 %v3922, 1.442695
    %v4049 = vpow.pop %v4048
    %v4050 = vmul.f32 %v3923, 1.442695
    %v4051 = vpow.pop %v4050
    %v4052 = vadd.f32 %v3925, 1.0
    %v4053 = vadd.f32 %v3927, 1.0
    %v4054 = vadd.f32 %v3929, 1.0
    %v4055 = vadd.f32 %v3931, 1.0
    %v4056 = vadd.f32 %v3933, 1.0
    %v4057 = vadd.f32 %v3935, 1.0
    %v4058 = vadd.f32 %v3937, 1.0
    %v4059 = vadd.f32 %v3939, 1.0
    %v4060 = vadd.f32 %v3941, 1.0
    %v4061 = vadd.f32 %v3943, 1.0
    %v4062 = vadd.f32 %v3945, 1.0
    %v4063 = vadd.f32 %v3947, 1.0
    %v4064 = vadd.f32 %v3949, 1.0
    %v4065 = vadd.f32 %v3951, 1.0
    %v4066 = vadd.f32 %v3953, 1.0
    %v4067 = vadd.f32 %v3955, 1.0
    %v4068 = vadd.f32 %v3957, 1.0
    %v4069 = vadd.f32 %v3959, 1.0
    %v4070 = vadd.f32 %v3961, 1.0
    %v4071 = vadd.f32 %v3963, 1.0
    %v4072 = vadd.f32 %v3965, 1.0
    %v4073 = vadd.f32 %v3967, 1.0
    %v4074 = vadd.f32 %v3969, 1.0
    %v4075 = vadd.f32 %v3971, 1.0
    %v4076 = vadd.f32 %v3973, 1.0
    %v4077 = vadd.f32 %v3975, 1.0
    %v4078 = vadd.f32 %v3977, 1.0
    %v4079 = vadd.f32 %v3979, 1.0
    %v4080 = vadd.f32 %v3981, 1.0
    %v4081 = vadd.f32 %v3983, 1.0
    %v4082 = vadd.f32 %v3985, 1.0
    %v4083 = vadd.f32 %v3987, 1.0
    %v4084 = vadd.f32 %v3989, 1.0
    %v4085 = vadd.f32 %v3991, 1.0
    %v4086 = vadd.f32 %v3993, 1.0
    %v4087 = vadd.f32 %v3995, 1.0
    %v4088 = vadd.f32 %v3997, 1.0
    %v4089 = vadd.f32 %v3999, 1.0
    %v4090 = vadd.f32 %v4001, 1.0
    %v4091 = vadd.f32 %v4003, 1.0
    %v4092 = vadd.f32 %v4005, 1.0
    %v4093 = vadd.f32 %v4007, 1.0
    %v4094 = vadd.f32 %v4009, 1.0
    %v4095 = vadd.f32 %v4011, 1.0
    %v4096 = vadd.f32 %v4013, 1.0
    %v4097 = vadd.f32 %v4015, 1.0
    %v4098 = vadd.f32 %v4017, 1.0
    %v4099 = vadd.f32 %v4019, 1.0
    %v4100 = vadd.f32 %v4021, 1.0
    %v4101 = vadd.f32 %v4023, 1.0
    %v4102 = vadd.f32 %v4025, 1.0
    %v4103 = vadd.f32 %v4027, 1.0
    %v4104 = vadd.f32 %v4029, 1.0
    %v4105 = vadd.f32 %v4031, 1.0
    %v4106 = vadd.f32 %v4033, 1.0
    %v4107 = vadd.f32 %v4035, 1.0
    %v4108 = vadd.f32 %v4037, 1.0
    %v4109 = vadd.f32 %v4039, 1.0
    %v4110 = vadd.f32 %v4041, 1.0
    %v4111 = vadd.f32 %v4043, 1.0
    %v4112 = vadd.f32 %v4045, 1.0
    %v4113 = vadd.f32 %v4047, 1.0
    %v4114 = vadd.f32 %v4049, 1.0
    %v4115 = vadd.f32 %v4051, 1.0
    %v4116 = vrcp.pop %v4052
    %v4117 = vmul.f32 %v4052, %v4116
    %v4118 = vsub.f32 1.0, %v4117
    %v4119 = vmul.f32 %v4116, %v4118
    %v4120 = vadd.f32 %v4116, %v4119
    %vm4121 = vweird.f32 %v4052
    %vm4122 = vweird.f32 %v4116
    %vm4123 = vmor %vm4121, %vm4122
    %v4124 = vsel %vm4123, %v4116, %v4120
    %v4125 = vand.u32 2147483647, %v4052
    %vm4126 = vcmp.eq.f32.partialorder %v4125, 8.507059e+37
    %v4127 = vand.u32 %v4052, 2147483648
    %v4128 = vor.u32 1.1754944e-38, %v4127
    %v4129 = vsel %vm4126, %v4128, %v4124
    %v4130 = vmul.f32 1.0, %v4129
    %v4131 = vrcp.pop %v4053
    %v4132 = vmul.f32 %v4053, %v4131
    %v4133 = vsub.f32 1.0, %v4132
    %v4134 = vmul.f32 %v4131, %v4133
    %v4135 = vadd.f32 %v4131, %v4134
    %vm4136 = vweird.f32 %v4053
    %vm4137 = vweird.f32 %v4131
    %vm4138 = vmor %vm4136, %vm4137
    %v4139 = vsel %vm4138, %v4131, %v4135
    %v4140 = vand.u32 2147483647, %v4053
    %vm4141 = vcmp.eq.f32.partialorder %v4140, 8.507059e+37
    %v4142 = vand.u32 %v4053, 2147483648
    %v4143 = vor.u32 1.1754944e-38, %v4142
    %v4144 = vsel %vm4141, %v4143, %v4139
    %v4145 = vmul.f32 1.0, %v4144
    %v4146 = vrcp.pop %v4054
    %v4147 = vmul.f32 %v4054, %v4146
    %v4148 = vsub.f32 1.0, %v4147
    %v4149 = vmul.f32 %v4146, %v4148
    %v4150 = vadd.f32 %v4146, %v4149
    %vm4151 = vweird.f32 %v4054
    %vm4152 = vweird.f32 %v4146
    %vm4153 = vmor %vm4151, %vm4152
    %v4154 = vsel %vm4153, %v4146, %v4150
    %v4155 = vand.u32 2147483647, %v4054
    %vm4156 = vcmp.eq.f32.partialorder %v4155, 8.507059e+37
    %v4157 = vand.u32 %v4054, 2147483648
    %v4158 = vor.u32 1.1754944e-38, %v4157
    %v4159 = vsel %vm4156, %v4158, %v4154
    %v4160 = vmul.f32 1.0, %v4159
    %v4161 = vrcp.pop %v4055
    %v4162 = vmul.f32 %v4055, %v4161
    %v4163 = vsub.f32 1.0, %v4162
    %v4164 = vmul.f32 %v4161, %v4163
    %v4165 = vadd.f32 %v4161, %v4164
    %vm4166 = vweird.f32 %v4055
    %vm4167 = vweird.f32 %v4161
    %vm4168 = vmor %vm4166, %vm4167
    %v4169 = vsel %vm4168, %v4161, %v4165
    %v4170 = vand.u32 2147483647, %v4055
    %vm4171 = vcmp.eq.f32.partialorder %v4170, 8.507059e+37
    %v4172 = vand.u32 %v4055, 2147483648
    %v4173 = vor.u32 1.1754944e-38, %v4172
    %v4174 = vsel %vm4171, %v4173, %v4169
    %v4175 = vmul.f32 1.0, %v4174
    %v4176 = vrcp.pop %v4056
    %v4177 = vmul.f32 %v4056, %v4176
    %v4178 = vsub.f32 1.0, %v4177
    %v4179 = vmul.f32 %v4176, %v4178
    %v4180 = vadd.f32 %v4176, %v4179
    %vm4181 = vweird.f32 %v4056
    %vm4182 = vweird.f32 %v4176
    %vm4183 = vmor %vm4181, %vm4182
    %v4184 = vsel %vm4183, %v4176, %v4180
    %v4185 = vand.u32 2147483647, %v4056
    %vm4186 = vcmp.eq.f32.partialorder %v4185, 8.507059e+37
    %v4187 = vand.u32 %v4056, 2147483648
    %v4188 = vor.u32 1.1754944e-38, %v4187
    %v4189 = vsel %vm4186, %v4188, %v4184
    %v4190 = vmul.f32 1.0, %v4189
    %v4191 = vrcp.pop %v4057
    %v4192 = vmul.f32 %v4057, %v4191
    %v4193 = vsub.f32 1.0, %v4192
    %v4194 = vmul.f32 %v4191, %v4193
    %v4195 = vadd.f32 %v4191, %v4194
    %vm4196 = vweird.f32 %v4057
    %vm4197 = vweird.f32 %v4191
    %vm4198 = vmor %vm4196, %vm4197
    %v4199 = vsel %vm4198, %v4191, %v4195
    %v4200 = vand.u32 2147483647, %v4057
    %vm4201 = vcmp.eq.f32.partialorder %v4200, 8.507059e+37
    %v4202 = vand.u32 %v4057, 2147483648
    %v4203 = vor.u32 1.1754944e-38, %v4202
    %v4204 = vsel %vm4201, %v4203, %v4199
    %v4205 = vmul.f32 1.0, %v4204
    %v4206 = vrcp.pop %v4058
    %v4207 = vmul.f32 %v4058, %v4206
    %v4208 = vsub.f32 1.0, %v4207
    %v4209 = vmul.f32 %v4206, %v4208
    %v4210 = vadd.f32 %v4206, %v4209
    %vm4211 = vweird.f32 %v4058
    %vm4212 = vweird.f32 %v4206
    %vm4213 = vmor %vm4211, %vm4212
    %v4214 = vsel %vm4213, %v4206, %v4210
    %v4215 = vand.u32 2147483647, %v4058
    %vm4216 = vcmp.eq.f32.partialorder %v4215, 8.507059e+37
    %v4217 = vand.u32 %v4058, 2147483648
    %v4218 = vor.u32 1.1754944e-38, %v4217
    %v4219 = vsel %vm4216, %v4218, %v4214
    %v4220 = vmul.f32 1.0, %v4219
    %v4221 = vrcp.pop %v4059
    %v4222 = vmul.f32 %v4059, %v4221
    %v4223 = vsub.f32 1.0, %v4222
    %v4224 = vmul.f32 %v4221, %v4223
    %v4225 = vadd.f32 %v4221, %v4224
    %vm4226 = vweird.f32 %v4059
    %vm4227 = vweird.f32 %v4221
    %vm4228 = vmor %vm4226, %vm4227
    %v4229 = vsel %vm4228, %v4221, %v4225
    %v4230 = vand.u32 2147483647, %v4059
    %vm4231 = vcmp.eq.f32.partialorder %v4230, 8.507059e+37
    %v4232 = vand.u32 %v4059, 2147483648
    %v4233 = vor.u32 1.1754944e-38, %v4232
    %v4234 = vsel %vm4231, %v4233, %v4229
    %v4235 = vmul.f32 1.0, %v4234
    %v4236 = vrcp.pop %v4060
    %v4237 = vmul.f32 %v4060, %v4236
    %v4238 = vsub.f32 1.0, %v4237
    %v4239 = vmul.f32 %v4236, %v4238
    %v4240 = vadd.f32 %v4236, %v4239
    %vm4241 = vweird.f32 %v4060
    %vm4242 = vweird.f32 %v4236
    %vm4243 = vmor %vm4241, %vm4242
    %v4244 = vsel %vm4243, %v4236, %v4240
    %v4245 = vand.u32 2147483647, %v4060
    %vm4246 = vcmp.eq.f32.partialorder %v4245, 8.507059e+37
    %v4247 = vand.u32 %v4060, 2147483648
    %v4248 = vor.u32 1.1754944e-38, %v4247
    %v4249 = vsel %vm4246, %v4248, %v4244
    %v4250 = vmul.f32 1.0, %v4249
    %v4251 = vrcp.pop %v4061
    %v4252 = vmul.f32 %v4061, %v4251
    %v4253 = vsub.f32 1.0, %v4252
    %v4254 = vmul.f32 %v4251, %v4253
    %v4255 = vadd.f32 %v4251, %v4254
    %vm4256 = vweird.f32 %v4061
    %vm4257 = vweird.f32 %v4251
    %vm4258 = vmor %vm4256, %vm4257
    %v4259 = vsel %vm4258, %v4251, %v4255
    %v4260 = vand.u32 2147483647, %v4061
    %vm4261 = vcmp.eq.f32.partialorder %v4260, 8.507059e+37
    %v4262 = vand.u32 %v4061, 2147483648
    %v4263 = vor.u32 1.1754944e-38, %v4262
    %v4264 = vsel %vm4261, %v4263, %v4259
    %v4265 = vmul.f32 1.0, %v4264
    %v4266 = vrcp.pop %v4062
    %v4267 = vmul.f32 %v4062, %v4266
    %v4268 = vsub.f32 1.0, %v4267
    %v4269 = vmul.f32 %v4266, %v4268
    %v4270 = vadd.f32 %v4266, %v4269
    %vm4271 = vweird.f32 %v4062
    %vm4272 = vweird.f32 %v4266
    %vm4273 = vmor %vm4271, %vm4272
    %v4274 = vsel %vm4273, %v4266, %v4270
    %v4275 = vand.u32 2147483647, %v4062
    %vm4276 = vcmp.eq.f32.partialorder %v4275, 8.507059e+37
    %v4277 = vand.u32 %v4062, 2147483648
    %v4278 = vor.u32 1.1754944e-38, %v4277
    %v4279 = vsel %vm4276, %v4278, %v4274
    %v4280 = vmul.f32 1.0, %v4279
    %v4281 = vrcp.pop %v4063
    %v4282 = vmul.f32 %v4063, %v4281
    %v4283 = vsub.f32 1.0, %v4282
    %v4284 = vmul.f32 %v4281, %v4283
    %v4285 = vadd.f32 %v4281, %v4284
    %vm4286 = vweird.f32 %v4063
    %vm4287 = vweird.f32 %v4281
    %vm4288 = vmor %vm4286, %vm4287
    %v4289 = vsel %vm4288, %v4281, %v4285
    %v4290 = vand.u32 2147483647, %v4063
    %vm4291 = vcmp.eq.f32.partialorder %v4290, 8.507059e+37
    %v4292 = vand.u32 %v4063, 2147483648
    %v4293 = vor.u32 1.1754944e-38, %v4292
    %v4294 = vsel %vm4291, %v4293, %v4289
    %v4295 = vmul.f32 1.0, %v4294
    %v4296 = vrcp.pop %v4064
    %v4297 = vmul.f32 %v4064, %v4296
    %v4298 = vsub.f32 1.0, %v4297
    %v4299 = vmul.f32 %v4296, %v4298
    %v4300 = vadd.f32 %v4296, %v4299
    %vm4301 = vweird.f32 %v4064
    %vm4302 = vweird.f32 %v4296
    %vm4303 = vmor %vm4301, %vm4302
    %v4304 = vsel %vm4303, %v4296, %v4300
    %v4305 = vand.u32 2147483647, %v4064
    %vm4306 = vcmp.eq.f32.partialorder %v4305, 8.507059e+37
    %v4307 = vand.u32 %v4064, 2147483648
    %v4308 = vor.u32 1.1754944e-38, %v4307
    %v4309 = vsel %vm4306, %v4308, %v4304
    %v4310 = vmul.f32 1.0, %v4309
    %v4311 = vrcp.pop %v4065
    %v4312 = vmul.f32 %v4065, %v4311
    %v4313 = vsub.f32 1.0, %v4312
    %v4314 = vmul.f32 %v4311, %v4313
    %v4315 = vadd.f32 %v4311, %v4314
    %vm4316 = vweird.f32 %v4065
    %vm4317 = vweird.f32 %v4311
    %vm4318 = vmor %vm4316, %vm4317
    %v4319 = vsel %vm4318, %v4311, %v4315
    %v4320 = vand.u32 2147483647, %v4065
    %vm4321 = vcmp.eq.f32.partialorder %v4320, 8.507059e+37
    %v4322 = vand.u32 %v4065, 2147483648
    %v4323 = vor.u32 1.1754944e-38, %v4322
    %v4324 = vsel %vm4321, %v4323, %v4319
    %v4325 = vmul.f32 1.0, %v4324
    %v4326 = vrcp.pop %v4066
    %v4327 = vmul.f32 %v4066, %v4326
    %v4328 = vsub.f32 1.0, %v4327
    %v4329 = vmul.f32 %v4326, %v4328
    %v4330 = vadd.f32 %v4326, %v4329
    %vm4331 = vweird.f32 %v4066
    %vm4332 = vweird.f32 %v4326
    %vm4333 = vmor %vm4331, %vm4332
    %v4334 = vsel %vm4333, %v4326, %v4330
    %v4335 = vand.u32 2147483647, %v4066
    %vm4336 = vcmp.eq.f32.partialorder %v4335, 8.507059e+37
    %v4337 = vand.u32 %v4066, 2147483648
    %v4338 = vor.u32 1.1754944e-38, %v4337
    %v4339 = vsel %vm4336, %v4338, %v4334
    %v4340 = vmul.f32 1.0, %v4339
    %v4341 = vrcp.pop %v4067
    %v4342 = vmul.f32 %v4067, %v4341
    %v4343 = vsub.f32 1.0, %v4342
    %v4344 = vmul.f32 %v4341, %v4343
    %v4345 = vadd.f32 %v4341, %v4344
    %vm4346 = vweird.f32 %v4067
    %vm4347 = vweird.f32 %v4341
    %vm4348 = vmor %vm4346, %vm4347
    %v4349 = vsel %vm4348, %v4341, %v4345
    %v4350 = vand.u32 2147483647, %v4067
    %vm4351 = vcmp.eq.f32.partialorder %v4350, 8.507059e+37
    %v4352 = vand.u32 %v4067, 2147483648
    %v4353 = vor.u32 1.1754944e-38, %v4352
    %v4354 = vsel %vm4351, %v4353, %v4349
    %v4355 = vmul.f32 1.0, %v4354
    %v4356 = vrcp.pop %v4068
    %v4357 = vmul.f32 %v4068, %v4356
    %v4358 = vsub.f32 1.0, %v4357
    %v4359 = vmul.f32 %v4356, %v4358
    %v4360 = vadd.f32 %v4356, %v4359
    %vm4361 = vweird.f32 %v4068
    %vm4362 = vweird.f32 %v4356
    %vm4363 = vmor %vm4361, %vm4362
    %v4364 = vsel %vm4363, %v4356, %v4360
    %v4365 = vand.u32 2147483647, %v4068
    %vm4366 = vcmp.eq.f32.partialorder %v4365, 8.507059e+37
    %v4367 = vand.u32 %v4068, 2147483648
    %v4368 = vor.u32 1.1754944e-38, %v4367
    %v4369 = vsel %vm4366, %v4368, %v4364
    %v4370 = vmul.f32 1.0, %v4369
    %v4371 = vrcp.pop %v4069
    %v4372 = vmul.f32 %v4069, %v4371
    %v4373 = vsub.f32 1.0, %v4372
    %v4374 = vmul.f32 %v4371, %v4373
    %v4375 = vadd.f32 %v4371, %v4374
    %vm4376 = vweird.f32 %v4069
    %vm4377 = vweird.f32 %v4371
    %vm4378 = vmor %vm4376, %vm4377
    %v4379 = vsel %vm4378, %v4371, %v4375
    %v4380 = vand.u32 2147483647, %v4069
    %vm4381 = vcmp.eq.f32.partialorder %v4380, 8.507059e+37
    %v4382 = vand.u32 %v4069, 2147483648
    %v4383 = vor.u32 1.1754944e-38, %v4382
    %v4384 = vsel %vm4381, %v4383, %v4379
    %v4385 = vmul.f32 1.0, %v4384
    %v4386 = vrcp.pop %v4070
    %v4387 = vmul.f32 %v4070, %v4386
    %v4388 = vsub.f32 1.0, %v4387
    %v4389 = vmul.f32 %v4386, %v4388
    %v4390 = vadd.f32 %v4386, %v4389
    %vm4391 = vweird.f32 %v4070
    %vm4392 = vweird.f32 %v4386
    %vm4393 = vmor %vm4391, %vm4392
    %v4394 = vsel %vm4393, %v4386, %v4390
    %v4395 = vand.u32 2147483647, %v4070
    %vm4396 = vcmp.eq.f32.partialorder %v4395, 8.507059e+37
    %v4397 = vand.u32 %v4070, 2147483648
    %v4398 = vor.u32 1.1754944e-38, %v4397
    %v4399 = vsel %vm4396, %v4398, %v4394
    %v4400 = vmul.f32 1.0, %v4399
    %v4401 = vrcp.pop %v4071
    %v4402 = vmul.f32 %v4071, %v4401
    %v4403 = vsub.f32 1.0, %v4402
    %v4404 = vmul.f32 %v4401, %v4403
    %v4405 = vadd.f32 %v4401, %v4404
    %vm4406 = vweird.f32 %v4071
    %vm4407 = vweird.f32 %v4401
    %vm4408 = vmor %vm4406, %vm4407
    %v4409 = vsel %vm4408, %v4401, %v4405
    %v4410 = vand.u32 2147483647, %v4071
    %vm4411 = vcmp.eq.f32.partialorder %v4410, 8.507059e+37
    %v4412 = vand.u32 %v4071, 2147483648
    %v4413 = vor.u32 1.1754944e-38, %v4412
    %v4414 = vsel %vm4411, %v4413, %v4409
    %v4415 = vmul.f32 1.0, %v4414
    %v4416 = vrcp.pop %v4072
    %v4417 = vmul.f32 %v4072, %v4416
    %v4418 = vsub.f32 1.0, %v4417
    %v4419 = vmul.f32 %v4416, %v4418
    %v4420 = vadd.f32 %v4416, %v4419
    %vm4421 = vweird.f32 %v4072
    %vm4422 = vweird.f32 %v4416
    %vm4423 = vmor %vm4421, %vm4422
    %v4424 = vsel %vm4423, %v4416, %v4420
    %v4425 = vand.u32 2147483647, %v4072
    %vm4426 = vcmp.eq.f32.partialorder %v4425, 8.507059e+37
    %v4427 = vand.u32 %v4072, 2147483648
    %v4428 = vor.u32 1.1754944e-38, %v4427
    %v4429 = vsel %vm4426, %v4428, %v4424
    %v4430 = vmul.f32 1.0, %v4429
    %v4431 = vrcp.pop %v4073
    %v4432 = vmul.f32 %v4073, %v4431
    %v4433 = vsub.f32 1.0, %v4432
    %v4434 = vmul.f32 %v4431, %v4433
    %v4435 = vadd.f32 %v4431, %v4434
    %vm4436 = vweird.f32 %v4073
    %vm4437 = vweird.f32 %v4431
    %vm4438 = vmor %vm4436, %vm4437
    %v4439 = vsel %vm4438, %v4431, %v4435
    %v4440 = vand.u32 2147483647, %v4073
    %vm4441 = vcmp.eq.f32.partialorder %v4440, 8.507059e+37
    %v4442 = vand.u32 %v4073, 2147483648
    %v4443 = vor.u32 1.1754944e-38, %v4442
    %v4444 = vsel %vm4441, %v4443, %v4439
    %v4445 = vmul.f32 1.0, %v4444
    %v4446 = vrcp.pop %v4074
    %v4447 = vmul.f32 %v4074, %v4446
    %v4448 = vsub.f32 1.0, %v4447
    %v4449 = vmul.f32 %v4446, %v4448
    %v4450 = vadd.f32 %v4446, %v4449
    %vm4451 = vweird.f32 %v4074
    %vm4452 = vweird.f32 %v4446
    %vm4453 = vmor %vm4451, %vm4452
    %v4454 = vsel %vm4453, %v4446, %v4450
    %v4455 = vand.u32 2147483647, %v4074
    %vm4456 = vcmp.eq.f32.partialorder %v4455, 8.507059e+37
    %v4457 = vand.u32 %v4074, 2147483648
    %v4458 = vor.u32 1.1754944e-38, %v4457
    %v4459 = vsel %vm4456, %v4458, %v4454
    %v4460 = vmul.f32 1.0, %v4459
    %v4461 = vrcp.pop %v4075
    %v4462 = vmul.f32 %v4075, %v4461
    %v4463 = vsub.f32 1.0, %v4462
    %v4464 = vmul.f32 %v4461, %v4463
    %v4465 = vadd.f32 %v4461, %v4464
    %vm4466 = vweird.f32 %v4075
    %vm4467 = vweird.f32 %v4461
    %vm4468 = vmor %vm4466, %vm4467
    %v4469 = vsel %vm4468, %v4461, %v4465
    %v4470 = vand.u32 2147483647, %v4075
    %vm4471 = vcmp.eq.f32.partialorder %v4470, 8.507059e+37
    %v4472 = vand.u32 %v4075, 2147483648
    %v4473 = vor.u32 1.1754944e-38, %v4472
    %v4474 = vsel %vm4471, %v4473, %v4469
    %v4475 = vmul.f32 1.0, %v4474
    %v4476 = vrcp.pop %v4076
    %v4477 = vmul.f32 %v4076, %v4476
    %v4478 = vsub.f32 1.0, %v4477
    %v4479 = vmul.f32 %v4476, %v4478
    %v4480 = vadd.f32 %v4476, %v4479
    %vm4481 = vweird.f32 %v4076
    %vm4482 = vweird.f32 %v4476
    %vm4483 = vmor %vm4481, %vm4482
    %v4484 = vsel %vm4483, %v4476, %v4480
    %v4485 = vand.u32 2147483647, %v4076
    %vm4486 = vcmp.eq.f32.partialorder %v4485, 8.507059e+37
    %v4487 = vand.u32 %v4076, 2147483648
    %v4488 = vor.u32 1.1754944e-38, %v4487
    %v4489 = vsel %vm4486, %v4488, %v4484
    %v4490 = vmul.f32 1.0, %v4489
    %v4491 = vrcp.pop %v4077
    %v4492 = vmul.f32 %v4077, %v4491
    %v4493 = vsub.f32 1.0, %v4492
    %v4494 = vmul.f32 %v4491, %v4493
    %v4495 = vadd.f32 %v4491, %v4494
    %vm4496 = vweird.f32 %v4077
    %vm4497 = vweird.f32 %v4491
    %vm4498 = vmor %vm4496, %vm4497
    %v4499 = vsel %vm4498, %v4491, %v4495
    %v4500 = vand.u32 2147483647, %v4077
    %vm4501 = vcmp.eq.f32.partialorder %v4500, 8.507059e+37
    %v4502 = vand.u32 %v4077, 2147483648
    %v4503 = vor.u32 1.1754944e-38, %v4502
    %v4504 = vsel %vm4501, %v4503, %v4499
    %v4505 = vmul.f32 1.0, %v4504
    %v4506 = vrcp.pop %v4078
    %v4507 = vmul.f32 %v4078, %v4506
    %v4508 = vsub.f32 1.0, %v4507
    %v4509 = vmul.f32 %v4506, %v4508
    %v4510 = vadd.f32 %v4506, %v4509
    %vm4511 = vweird.f32 %v4078
    %vm4512 = vweird.f32 %v4506
    %vm4513 = vmor %vm4511, %vm4512
    %v4514 = vsel %vm4513, %v4506, %v4510
    %v4515 = vand.u32 2147483647, %v4078
    %vm4516 = vcmp.eq.f32.partialorder %v4515, 8.507059e+37
    %v4517 = vand.u32 %v4078, 2147483648
    %v4518 = vor.u32 1.1754944e-38, %v4517
    %v4519 = vsel %vm4516, %v4518, %v4514
    %v4520 = vmul.f32 1.0, %v4519
    %v4521 = vrcp.pop %v4079
    %v4522 = vmul.f32 %v4079, %v4521
    %v4523 = vsub.f32 1.0, %v4522
    %v4524 = vmul.f32 %v4521, %v4523
    %v4525 = vadd.f32 %v4521, %v4524
    %vm4526 = vweird.f32 %v4079
    %vm4527 = vweird.f32 %v4521
    %vm4528 = vmor %vm4526, %vm4527
    %v4529 = vsel %vm4528, %v4521, %v4525
    %v4530 = vand.u32 2147483647, %v4079
    %vm4531 = vcmp.eq.f32.partialorder %v4530, 8.507059e+37
    %v4532 = vand.u32 %v4079, 2147483648
    %v4533 = vor.u32 1.1754944e-38, %v4532
    %v4534 = vsel %vm4531, %v4533, %v4529
    %v4535 = vmul.f32 1.0, %v4534
    %v4536 = vrcp.pop %v4080
    %v4537 = vmul.f32 %v4080, %v4536
    %v4538 = vsub.f32 1.0, %v4537
    %v4539 = vmul.f32 %v4536, %v4538
    %v4540 = vadd.f32 %v4536, %v4539
    %vm4541 = vweird.f32 %v4080
    %vm4542 = vweird.f32 %v4536
    %vm4543 = vmor %vm4541, %vm4542
    %v4544 = vsel %vm4543, %v4536, %v4540
    %v4545 = vand.u32 2147483647, %v4080
    %vm4546 = vcmp.eq.f32.partialorder %v4545, 8.507059e+37
    %v4547 = vand.u32 %v4080, 2147483648
    %v4548 = vor.u32 1.1754944e-38, %v4547
    %v4549 = vsel %vm4546, %v4548, %v4544
    %v4550 = vmul.f32 1.0, %v4549
    %v4551 = vrcp.pop %v4081
    %v4552 = vmul.f32 %v4081, %v4551
    %v4553 = vsub.f32 1.0, %v4552
    %v4554 = vmul.f32 %v4551, %v4553
    %v4555 = vadd.f32 %v4551, %v4554
    %vm4556 = vweird.f32 %v4081
    %vm4557 = vweird.f32 %v4551
    %vm4558 = vmor %vm4556, %vm4557
    %v4559 = vsel %vm4558, %v4551, %v4555
    %v4560 = vand.u32 2147483647, %v4081
    %vm4561 = vcmp.eq.f32.partialorder %v4560, 8.507059e+37
    %v4562 = vand.u32 %v4081, 2147483648
    %v4563 = vor.u32 1.1754944e-38, %v4562
    %v4564 = vsel %vm4561, %v4563, %v4559
    %v4565 = vmul.f32 1.0, %v4564
    %v4566 = vrcp.pop %v4082
    %v4567 = vmul.f32 %v4082, %v4566
    %v4568 = vsub.f32 1.0, %v4567
    %v4569 = vmul.f32 %v4566, %v4568
    %v4570 = vadd.f32 %v4566, %v4569
    %vm4571 = vweird.f32 %v4082
    %vm4572 = vweird.f32 %v4566
    %vm4573 = vmor %vm4571, %vm4572
    %v4574 = vsel %vm4573, %v4566, %v4570
    %v4575 = vand.u32 2147483647, %v4082
    %vm4576 = vcmp.eq.f32.partialorder %v4575, 8.507059e+37
    %v4577 = vand.u32 %v4082, 2147483648
    %v4578 = vor.u32 1.1754944e-38, %v4577
    %v4579 = vsel %vm4576, %v4578, %v4574
    %v4580 = vmul.f32 1.0, %v4579
    %v4581 = vrcp.pop %v4083
    %v4582 = vmul.f32 %v4083, %v4581
    %v4583 = vsub.f32 1.0, %v4582
    %v4584 = vmul.f32 %v4581, %v4583
    %v4585 = vadd.f32 %v4581, %v4584
    %vm4586 = vweird.f32 %v4083
    %vm4587 = vweird.f32 %v4581
    %vm4588 = vmor %vm4586, %vm4587
    %v4589 = vsel %vm4588, %v4581, %v4585
    %v4590 = vand.u32 2147483647, %v4083
    %vm4591 = vcmp.eq.f32.partialorder %v4590, 8.507059e+37
    %v4592 = vand.u32 %v4083, 2147483648
    %v4593 = vor.u32 1.1754944e-38, %v4592
    %v4594 = vsel %vm4591, %v4593, %v4589
    %v4595 = vmul.f32 1.0, %v4594
    %v4596 = vrcp.pop %v4084
    %v4597 = vmul.f32 %v4084, %v4596
    %v4598 = vsub.f32 1.0, %v4597
    %v4599 = vmul.f32 %v4596, %v4598
    %v4600 = vadd.f32 %v4596, %v4599
    %vm4601 = vweird.f32 %v4084
    %vm4602 = vweird.f32 %v4596
    %vm4603 = vmor %vm4601, %vm4602
    %v4604 = vsel %vm4603, %v4596, %v4600
    %v4605 = vand.u32 2147483647, %v4084
    %vm4606 = vcmp.eq.f32.partialorder %v4605, 8.507059e+37
    %v4607 = vand.u32 %v4084, 2147483648
    %v4608 = vor.u32 1.1754944e-38, %v4607
    %v4609 = vsel %vm4606, %v4608, %v4604
    %v4610 = vmul.f32 1.0, %v4609
    %v4611 = vrcp.pop %v4085
    %v4612 = vmul.f32 %v4085, %v4611
    %v4613 = vsub.f32 1.0, %v4612
    %v4614 = vmul.f32 %v4611, %v4613
    %v4615 = vadd.f32 %v4611, %v4614
    %vm4616 = vweird.f32 %v4085
    %vm4617 = vweird.f32 %v4611
    %vm4618 = vmor %vm4616, %vm4617
    %v4619 = vsel %vm4618, %v4611, %v4615
    %v4620 = vand.u32 2147483647, %v4085
    %vm4621 = vcmp.eq.f32.partialorder %v4620, 8.507059e+37
    %v4622 = vand.u32 %v4085, 2147483648
    %v4623 = vor.u32 1.1754944e-38, %v4622
    %v4624 = vsel %vm4621, %v4623, %v4619
    %v4625 = vmul.f32 1.0, %v4624
    %v4626 = vrcp.pop %v4086
    %v4627 = vmul.f32 %v4086, %v4626
    %v4628 = vsub.f32 1.0, %v4627
    %v4629 = vmul.f32 %v4626, %v4628
    %v4630 = vadd.f32 %v4626, %v4629
    %vm4631 = vweird.f32 %v4086
    %vm4632 = vweird.f32 %v4626
    %vm4633 = vmor %vm4631, %vm4632
    %v4634 = vsel %vm4633, %v4626, %v4630
    %v4635 = vand.u32 2147483647, %v4086
    %vm4636 = vcmp.eq.f32.partialorder %v4635, 8.507059e+37
    %v4637 = vand.u32 %v4086, 2147483648
    %v4638 = vor.u32 1.1754944e-38, %v4637
    %v4639 = vsel %vm4636, %v4638, %v4634
    %v4640 = vmul.f32 1.0, %v4639
    %v4641 = vrcp.pop %v4087
    %v4642 = vmul.f32 %v4087, %v4641
    %v4643 = vsub.f32 1.0, %v4642
    %v4644 = vmul.f32 %v4641, %v4643
    %v4645 = vadd.f32 %v4641, %v4644
    %vm4646 = vweird.f32 %v4087
    %vm4647 = vweird.f32 %v4641
    %vm4648 = vmor %vm4646, %vm4647
    %v4649 = vsel %vm4648, %v4641, %v4645
    %v4650 = vand.u32 2147483647, %v4087
    %vm4651 = vcmp.eq.f32.partialorder %v4650, 8.507059e+37
    %v4652 = vand.u32 %v4087, 2147483648
    %v4653 = vor.u32 1.1754944e-38, %v4652
    %v4654 = vsel %vm4651, %v4653, %v4649
    %v4655 = vmul.f32 1.0, %v4654
    %v4656 = vrcp.pop %v4088
    %v4657 = vmul.f32 %v4088, %v4656
    %v4658 = vsub.f32 1.0, %v4657
    %v4659 = vmul.f32 %v4656, %v4658
    %v4660 = vadd.f32 %v4656, %v4659
    %vm4661 = vweird.f32 %v4088
    %vm4662 = vweird.f32 %v4656
    %vm4663 = vmor %vm4661, %vm4662
    %v4664 = vsel %vm4663, %v4656, %v4660
    %v4665 = vand.u32 2147483647, %v4088
    %vm4666 = vcmp.eq.f32.partialorder %v4665, 8.507059e+37
    %v4667 = vand.u32 %v4088, 2147483648
    %v4668 = vor.u32 1.1754944e-38, %v4667
    %v4669 = vsel %vm4666, %v4668, %v4664
    %v4670 = vmul.f32 1.0, %v4669
    %v4671 = vrcp.pop %v4089
    %v4672 = vmul.f32 %v4089, %v4671
    %v4673 = vsub.f32 1.0, %v4672
    %v4674 = vmul.f32 %v4671, %v4673
    %v4675 = vadd.f32 %v4671, %v4674
    %vm4676 = vweird.f32 %v4089
    %vm4677 = vweird.f32 %v4671
    %vm4678 = vmor %vm4676, %vm4677
    %v4679 = vsel %vm4678, %v4671, %v4675
    %v4680 = vand.u32 2147483647, %v4089
    %vm4681 = vcmp.eq.f32.partialorder %v4680, 8.507059e+37
    %v4682 = vand.u32 %v4089, 2147483648
    %v4683 = vor.u32 1.1754944e-38, %v4682
    %v4684 = vsel %vm4681, %v4683, %v4679
    %v4685 = vmul.f32 1.0, %v4684
    %v4686 = vrcp.pop %v4090
    %v4687 = vmul.f32 %v4090, %v4686
    %v4688 = vsub.f32 1.0, %v4687
    %v4689 = vmul.f32 %v4686, %v4688
    %v4690 = vadd.f32 %v4686, %v4689
    %vm4691 = vweird.f32 %v4090
    %vm4692 = vweird.f32 %v4686
    %vm4693 = vmor %vm4691, %vm4692
    %v4694 = vsel %vm4693, %v4686, %v4690
    %v4695 = vand.u32 2147483647, %v4090
    %vm4696 = vcmp.eq.f32.partialorder %v4695, 8.507059e+37
    %v4697 = vand.u32 %v4090, 2147483648
    %v4698 = vor.u32 1.1754944e-38, %v4697
    %v4699 = vsel %vm4696, %v4698, %v4694
    %v4700 = vmul.f32 1.0, %v4699
    %v4701 = vrcp.pop %v4091
    %v4702 = vmul.f32 %v4091, %v4701
    %v4703 = vsub.f32 1.0, %v4702
    %v4704 = vmul.f32 %v4701, %v4703
    %v4705 = vadd.f32 %v4701, %v4704
    %vm4706 = vweird.f32 %v4091
    %vm4707 = vweird.f32 %v4701
    %vm4708 = vmor %vm4706, %vm4707
    %v4709 = vsel %vm4708, %v4701, %v4705
    %v4710 = vand.u32 2147483647, %v4091
    %vm4711 = vcmp.eq.f32.partialorder %v4710, 8.507059e+37
    %v4712 = vand.u32 %v4091, 2147483648
    %v4713 = vor.u32 1.1754944e-38, %v4712
    %v4714 = vsel %vm4711, %v4713, %v4709
    %v4715 = vmul.f32 1.0, %v4714
    %v4716 = vrcp.pop %v4092
    %v4717 = vmul.f32 %v4092, %v4716
    %v4718 = vsub.f32 1.0, %v4717
    %v4719 = vmul.f32 %v4716, %v4718
    %v4720 = vadd.f32 %v4716, %v4719
    %vm4721 = vweird.f32 %v4092
    %vm4722 = vweird.f32 %v4716
    %vm4723 = vmor %vm4721, %vm4722
    %v4724 = vsel %vm4723, %v4716, %v4720
    %v4725 = vand.u32 2147483647, %v4092
    %vm4726 = vcmp.eq.f32.partialorder %v4725, 8.507059e+37
    %v4727 = vand.u32 %v4092, 2147483648
    %v4728 = vor.u32 1.1754944e-38, %v4727
    %v4729 = vsel %vm4726, %v4728, %v4724
    %v4730 = vmul.f32 1.0, %v4729
    %v4731 = vrcp.pop %v4093
    %v4732 = vmul.f32 %v4093, %v4731
    %v4733 = vsub.f32 1.0, %v4732
    %v4734 = vmul.f32 %v4731, %v4733
    %v4735 = vadd.f32 %v4731, %v4734
    %vm4736 = vweird.f32 %v4093
    %vm4737 = vweird.f32 %v4731
    %vm4738 = vmor %vm4736, %vm4737
    %v4739 = vsel %vm4738, %v4731, %v4735
    %v4740 = vand.u32 2147483647, %v4093
    %vm4741 = vcmp.eq.f32.partialorder %v4740, 8.507059e+37
    %v4742 = vand.u32 %v4093, 2147483648
    %v4743 = vor.u32 1.1754944e-38, %v4742
    %v4744 = vsel %vm4741, %v4743, %v4739
    %v4745 = vmul.f32 1.0, %v4744
    %v4746 = vrcp.pop %v4094
    %v4747 = vmul.f32 %v4094, %v4746
    %v4748 = vsub.f32 1.0, %v4747
    %v4749 = vmul.f32 %v4746, %v4748
    %v4750 = vadd.f32 %v4746, %v4749
    %vm4751 = vweird.f32 %v4094
    %vm4752 = vweird.f32 %v4746
    %vm4753 = vmor %vm4751, %vm4752
    %v4754 = vsel %vm4753, %v4746, %v4750
    %v4755 = vand.u32 2147483647, %v4094
    %vm4756 = vcmp.eq.f32.partialorder %v4755, 8.507059e+37
    %v4757 = vand.u32 %v4094, 2147483648
    %v4758 = vor.u32 1.1754944e-38, %v4757
    %v4759 = vsel %vm4756, %v4758, %v4754
    %v4760 = vmul.f32 1.0, %v4759
    %v4761 = vrcp.pop %v4095
    %v4762 = vmul.f32 %v4095, %v4761
    %v4763 = vsub.f32 1.0, %v4762
    %v4764 = vmul.f32 %v4761, %v4763
    %v4765 = vadd.f32 %v4761, %v4764
    %vm4766 = vweird.f32 %v4095
    %vm4767 = vweird.f32 %v4761
    %vm4768 = vmor %vm4766, %vm4767
    %v4769 = vsel %vm4768, %v4761, %v4765
    %v4770 = vand.u32 2147483647, %v4095
    %vm4771 = vcmp.eq.f32.partialorder %v4770, 8.507059e+37
    %v4772 = vand.u32 %v4095, 2147483648
    %v4773 = vor.u32 1.1754944e-38, %v4772
    %v4774 = vsel %vm4771, %v4773, %v4769
    %v4775 = vmul.f32 1.0, %v4774
    %v4776 = vrcp.pop %v4096
    %v4777 = vmul.f32 %v4096, %v4776
    %v4778 = vsub.f32 1.0, %v4777
    %v4779 = vmul.f32 %v4776, %v4778
    %v4780 = vadd.f32 %v4776, %v4779
    %vm4781 = vweird.f32 %v4096
    %vm4782 = vweird.f32 %v4776
    %vm4783 = vmor %vm4781, %vm4782
    %v4784 = vsel %vm4783, %v4776, %v4780
    %v4785 = vand.u32 2147483647, %v4096
    %vm4786 = vcmp.eq.f32.partialorder %v4785, 8.507059e+37
    %v4787 = vand.u32 %v4096, 2147483648
    %v4788 = vor.u32 1.1754944e-38, %v4787
    %v4789 = vsel %vm4786, %v4788, %v4784
    %v4790 = vmul.f32 1.0, %v4789
    %v4791 = vrcp.pop %v4097
    %v4792 = vmul.f32 %v4097, %v4791
    %v4793 = vsub.f32 1.0, %v4792
    %v4794 = vmul.f32 %v4791, %v4793
    %v4795 = vadd.f32 %v4791, %v4794
    %vm4796 = vweird.f32 %v4097
    %vm4797 = vweird.f32 %v4791
    %vm4798 = vmor %vm4796, %vm4797
    %v4799 = vsel %vm4798, %v4791, %v4795
    %v4800 = vand.u32 2147483647, %v4097
    %vm4801 = vcmp.eq.f32.partialorder %v4800, 8.507059e+37
    %v4802 = vand.u32 %v4097, 2147483648
    %v4803 = vor.u32 1.1754944e-38, %v4802
    %v4804 = vsel %vm4801, %v4803, %v4799
    %v4805 = vmul.f32 1.0, %v4804
    %v4806 = vrcp.pop %v4098
    %v4807 = vmul.f32 %v4098, %v4806
    %v4808 = vsub.f32 1.0, %v4807
    %v4809 = vmul.f32 %v4806, %v4808
    %v4810 = vadd.f32 %v4806, %v4809
    %vm4811 = vweird.f32 %v4098
    %vm4812 = vweird.f32 %v4806
    %vm4813 = vmor %vm4811, %vm4812
    %v4814 = vsel %vm4813, %v4806, %v4810
    %v4815 = vand.u32 2147483647, %v4098
    %vm4816 = vcmp.eq.f32.partialorder %v4815, 8.507059e+37
    %v4817 = vand.u32 %v4098, 2147483648
    %v4818 = vor.u32 1.1754944e-38, %v4817
    %v4819 = vsel %vm4816, %v4818, %v4814
    %v4820 = vmul.f32 1.0, %v4819
    %v4821 = vrcp.pop %v4099
    %v4822 = vmul.f32 %v4099, %v4821
    %v4823 = vsub.f32 1.0, %v4822
    %v4824 = vmul.f32 %v4821, %v4823
    %v4825 = vadd.f32 %v4821, %v4824
    %vm4826 = vweird.f32 %v4099
    %vm4827 = vweird.f32 %v4821
    %vm4828 = vmor %vm4826, %vm4827
    %v4829 = vsel %vm4828, %v4821, %v4825
    %v4830 = vand.u32 2147483647, %v4099
    %vm4831 = vcmp.eq.f32.partialorder %v4830, 8.507059e+37
    %v4832 = vand.u32 %v4099, 2147483648
    %v4833 = vor.u32 1.1754944e-38, %v4832
    %v4834 = vsel %vm4831, %v4833, %v4829
    %v4835 = vmul.f32 1.0, %v4834
    %v4836 = vrcp.pop %v4100
    %v4837 = vmul.f32 %v4100, %v4836
    %v4838 = vsub.f32 1.0, %v4837
    %v4839 = vmul.f32 %v4836, %v4838
    %v4840 = vadd.f32 %v4836, %v4839
    %vm4841 = vweird.f32 %v4100
    %vm4842 = vweird.f32 %v4836
    %vm4843 = vmor %vm4841, %vm4842
    %v4844 = vsel %vm4843, %v4836, %v4840
    %v4845 = vand.u32 2147483647, %v4100
    %vm4846 = vcmp.eq.f32.partialorder %v4845, 8.507059e+37
    %v4847 = vand.u32 %v4100, 2147483648
    %v4848 = vor.u32 1.1754944e-38, %v4847
    %v4849 = vsel %vm4846, %v4848, %v4844
    %v4850 = vmul.f32 1.0, %v4849
    %v4851 = vrcp.pop %v4101
    %v4852 = vmul.f32 %v4101, %v4851
    %v4853 = vsub.f32 1.0, %v4852
    %v4854 = vmul.f32 %v4851, %v4853
    %v4855 = vadd.f32 %v4851, %v4854
    %vm4856 = vweird.f32 %v4101
    %vm4857 = vweird.f32 %v4851
    %vm4858 = vmor %vm4856, %vm4857
    %v4859 = vsel %vm4858, %v4851, %v4855
    %v4860 = vand.u32 2147483647, %v4101
    %vm4861 = vcmp.eq.f32.partialorder %v4860, 8.507059e+37
    %v4862 = vand.u32 %v4101, 2147483648
    %v4863 = vor.u32 1.1754944e-38, %v4862
    %v4864 = vsel %vm4861, %v4863, %v4859
    %v4865 = vmul.f32 1.0, %v4864
    %v4866 = vrcp.pop %v4102
    %v4867 = vmul.f32 %v4102, %v4866
    %v4868 = vsub.f32 1.0, %v4867
    %v4869 = vmul.f32 %v4866, %v4868
    %v4870 = vadd.f32 %v4866, %v4869
    %vm4871 = vweird.f32 %v4102
    %vm4872 = vweird.f32 %v4866
    %vm4873 = vmor %vm4871, %vm4872
    %v4874 = vsel %vm4873, %v4866, %v4870
    %v4875 = vand.u32 2147483647, %v4102
    %vm4876 = vcmp.eq.f32.partialorder %v4875, 8.507059e+37
    %v4877 = vand.u32 %v4102, 2147483648
    %v4878 = vor.u32 1.1754944e-38, %v4877
    %v4879 = vsel %vm4876, %v4878, %v4874
    %v4880 = vmul.f32 1.0, %v4879
    %v4881 = vrcp.pop %v4103
    %v4882 = vmul.f32 %v4103, %v4881
    %v4883 = vsub.f32 1.0, %v4882
    %v4884 = vmul.f32 %v4881, %v4883
    %v4885 = vadd.f32 %v4881, %v4884
    %vm4886 = vweird.f32 %v4103
    %vm4887 = vweird.f32 %v4881
    %vm4888 = vmor %vm4886, %vm4887
    %v4889 = vsel %vm4888, %v4881, %v4885
    %v4890 = vand.u32 2147483647, %v4103
    %vm4891 = vcmp.eq.f32.partialorder %v4890, 8.507059e+37
    %v4892 = vand.u32 %v4103, 2147483648
    %v4893 = vor.u32 1.1754944e-38, %v4892
    %v4894 = vsel %vm4891, %v4893, %v4889
    %v4895 = vmul.f32 1.0, %v4894
    %v4896 = vrcp.pop %v4104
    %v4897 = vmul.f32 %v4104, %v4896
    %v4898 = vsub.f32 1.0, %v4897
    %v4899 = vmul.f32 %v4896, %v4898
    %v4900 = vadd.f32 %v4896, %v4899
    %vm4901 = vweird.f32 %v4104
    %vm4902 = vweird.f32 %v4896
    %vm4903 = vmor %vm4901, %vm4902
    %v4904 = vsel %vm4903, %v4896, %v4900
    %v4905 = vand.u32 2147483647, %v4104
    %vm4906 = vcmp.eq.f32.partialorder %v4905, 8.507059e+37
    %v4907 = vand.u32 %v4104, 2147483648
    %v4908 = vor.u32 1.1754944e-38, %v4907
    %v4909 = vsel %vm4906, %v4908, %v4904
    %v4910 = vmul.f32 1.0, %v4909
    %v4911 = vrcp.pop %v4105
    %v4912 = vmul.f32 %v4105, %v4911
    %v4913 = vsub.f32 1.0, %v4912
    %v4914 = vmul.f32 %v4911, %v4913
    %v4915 = vadd.f32 %v4911, %v4914
    %vm4916 = vweird.f32 %v4105
    %vm4917 = vweird.f32 %v4911
    %vm4918 = vmor %vm4916, %vm4917
    %v4919 = vsel %vm4918, %v4911, %v4915
    %v4920 = vand.u32 2147483647, %v4105
    %vm4921 = vcmp.eq.f32.partialorder %v4920, 8.507059e+37
    %v4922 = vand.u32 %v4105, 2147483648
    %v4923 = vor.u32 1.1754944e-38, %v4922
    %v4924 = vsel %vm4921, %v4923, %v4919
    %v4925 = vmul.f32 1.0, %v4924
    %v4926 = vrcp.pop %v4106
    %v4927 = vmul.f32 %v4106, %v4926
    %v4928 = vsub.f32 1.0, %v4927
    %v4929 = vmul.f32 %v4926, %v4928
    %v4930 = vadd.f32 %v4926, %v4929
    %vm4931 = vweird.f32 %v4106
    %vm4932 = vweird.f32 %v4926
    %vm4933 = vmor %vm4931, %vm4932
    %v4934 = vsel %vm4933, %v4926, %v4930
    %v4935 = vand.u32 2147483647, %v4106
    %vm4936 = vcmp.eq.f32.partialorder %v4935, 8.507059e+37
    %v4937 = vand.u32 %v4106, 2147483648
    %v4938 = vor.u32 1.1754944e-38, %v4937
    %v4939 = vsel %vm4936, %v4938, %v4934
    %v4940 = vmul.f32 1.0, %v4939
    %v4941 = vrcp.pop %v4107
    %v4942 = vmul.f32 %v4107, %v4941
    %v4943 = vsub.f32 1.0, %v4942
    %v4944 = vmul.f32 %v4941, %v4943
    %v4945 = vadd.f32 %v4941, %v4944
    %vm4946 = vweird.f32 %v4107
    %vm4947 = vweird.f32 %v4941
    %vm4948 = vmor %vm4946, %vm4947
    %v4949 = vsel %vm4948, %v4941, %v4945
    %v4950 = vand.u32 2147483647, %v4107
    %vm4951 = vcmp.eq.f32.partialorder %v4950, 8.507059e+37
    %v4952 = vand.u32 %v4107, 2147483648
    %v4953 = vor.u32 1.1754944e-38, %v4952
    %v4954 = vsel %vm4951, %v4953, %v4949
    %v4955 = vmul.f32 1.0, %v4954
    %v4956 = vrcp.pop %v4108
    %v4957 = vmul.f32 %v4108, %v4956
    %v4958 = vsub.f32 1.0, %v4957
    %v4959 = vmul.f32 %v4956, %v4958
    %v4960 = vadd.f32 %v4956, %v4959
    %vm4961 = vweird.f32 %v4108
    %vm4962 = vweird.f32 %v4956
    %vm4963 = vmor %vm4961, %vm4962
    %v4964 = vsel %vm4963, %v4956, %v4960
    %v4965 = vand.u32 2147483647, %v4108
    %vm4966 = vcmp.eq.f32.partialorder %v4965, 8.507059e+37
    %v4967 = vand.u32 %v4108, 2147483648
    %v4968 = vor.u32 1.1754944e-38, %v4967
    %v4969 = vsel %vm4966, %v4968, %v4964
    %v4970 = vmul.f32 1.0, %v4969
    %v4971 = vrcp.pop %v4109
    %v4972 = vmul.f32 %v4109, %v4971
    %v4973 = vsub.f32 1.0, %v4972
    %v4974 = vmul.f32 %v4971, %v4973
    %v4975 = vadd.f32 %v4971, %v4974
    %vm4976 = vweird.f32 %v4109
    %vm4977 = vweird.f32 %v4971
    %vm4978 = vmor %vm4976, %vm4977
    %v4979 = vsel %vm4978, %v4971, %v4975
    %v4980 = vand.u32 2147483647, %v4109
    %vm4981 = vcmp.eq.f32.partialorder %v4980, 8.507059e+37
    %v4982 = vand.u32 %v4109, 2147483648
    %v4983 = vor.u32 1.1754944e-38, %v4982
    %v4984 = vsel %vm4981, %v4983, %v4979
    %v4985 = vmul.f32 1.0, %v4984
    %v4986 = vrcp.pop %v4110
    %v4987 = vmul.f32 %v4110, %v4986
    %v4988 = vsub.f32 1.0, %v4987
    %v4989 = vmul.f32 %v4986, %v4988
    %v4990 = vadd.f32 %v4986, %v4989
    %vm4991 = vweird.f32 %v4110
    %vm4992 = vweird.f32 %v4986
    %vm4993 = vmor %vm4991, %vm4992
    %v4994 = vsel %vm4993, %v4986, %v4990
    %v4995 = vand.u32 2147483647, %v4110
    %vm4996 = vcmp.eq.f32.partialorder %v4995, 8.507059e+37
    %v4997 = vand.u32 %v4110, 2147483648
    %v4998 = vor.u32 1.1754944e-38, %v4997
    %v4999 = vsel %vm4996, %v4998, %v4994
    %v5000 = vmul.f32 1.0, %v4999
    %v5001 = vrcp.pop %v4111
    %v5002 = vmul.f32 %v4111, %v5001
    %v5003 = vsub.f32 1.0, %v5002
    %v5004 = vmul.f32 %v5001, %v5003
    %v5005 = vadd.f32 %v5001, %v5004
    %vm5006 = vweird.f32 %v4111
    %vm5007 = vweird.f32 %v5001
    %vm5008 = vmor %vm5006, %vm5007
    %v5009 = vsel %vm5008, %v5001, %v5005
    %v5010 = vand.u32 2147483647, %v4111
    %vm5011 = vcmp.eq.f32.partialorder %v5010, 8.507059e+37
    %v5012 = vand.u32 %v4111, 2147483648
    %v5013 = vor.u32 1.1754944e-38, %v5012
    %v5014 = vsel %vm5011, %v5013, %v5009
    %v5015 = vmul.f32 1.0, %v5014
    %v5016 = vrcp.pop %v4112
    %v5017 = vmul.f32 %v4112, %v5016
    %v5018 = vsub.f32 1.0, %v5017
    %v5019 = vmul.f32 %v5016, %v5018
    %v5020 = vadd.f32 %v5016, %v5019
    %vm5021 = vweird.f32 %v4112
    %vm5022 = vweird.f32 %v5016
    %vm5023 = vmor %vm5021, %vm5022
    %v5024 = vsel %vm5023, %v5016, %v5020
    %v5025 = vand.u32 2147483647, %v4112
    %vm5026 = vcmp.eq.f32.partialorder %v5025, 8.507059e+37
    %v5027 = vand.u32 %v4112, 2147483648
    %v5028 = vor.u32 1.1754944e-38, %v5027
    %v5029 = vsel %vm5026, %v5028, %v5024
    %v5030 = vmul.f32 1.0, %v5029
    %v5031 = vrcp.pop %v4113
    %v5032 = vmul.f32 %v4113, %v5031
    %v5033 = vsub.f32 1.0, %v5032
    %v5034 = vmul.f32 %v5031, %v5033
    %v5035 = vadd.f32 %v5031, %v5034
    %vm5036 = vweird.f32 %v4113
    %vm5037 = vweird.f32 %v5031
    %vm5038 = vmor %vm5036, %vm5037
    %v5039 = vsel %vm5038, %v5031, %v5035
    %v5040 = vand.u32 2147483647, %v4113
    %vm5041 = vcmp.eq.f32.partialorder %v5040, 8.507059e+37
    %v5042 = vand.u32 %v4113, 2147483648
    %v5043 = vor.u32 1.1754944e-38, %v5042
    %v5044 = vsel %vm5041, %v5043, %v5039
    %v5045 = vmul.f32 1.0, %v5044
    %v5046 = vrcp.pop %v4114
    %v5047 = vmul.f32 %v4114, %v5046
    %v5048 = vsub.f32 1.0, %v5047
    %v5049 = vmul.f32 %v5046, %v5048
    %v5050 = vadd.f32 %v5046, %v5049
    %vm5051 = vweird.f32 %v4114
    %vm5052 = vweird.f32 %v5046
    %vm5053 = vmor %vm5051, %vm5052
    %v5054 = vsel %vm5053, %v5046, %v5050
    %v5055 = vand.u32 2147483647, %v4114
    %vm5056 = vcmp.eq.f32.partialorder %v5055, 8.507059e+37
    %v5057 = vand.u32 %v4114, 2147483648
    %v5058 = vor.u32 1.1754944e-38, %v5057
    %v5059 = vsel %vm5056, %v5058, %v5054
    %v5060 = vmul.f32 1.0, %v5059
    %v5061 = vrcp.pop %v4115
    %v5062 = vmul.f32 %v4115, %v5061
    %v5063 = vsub.f32 1.0, %v5062
    %v5064 = vmul.f32 %v5061, %v5063
    %v5065 = vadd.f32 %v5061, %v5064
    %vm5066 = vweird.f32 %v4115
    %vm5067 = vweird.f32 %v5061
    %vm5068 = vmor %vm5066, %vm5067
    %v5069 = vsel %vm5068, %v5061, %v5065
    %v5070 = vand.u32 2147483647, %v4115
    %vm5071 = vcmp.eq.f32.partialorder %v5070, 8.507059e+37
    %v5072 = vand.u32 %v4115, 2147483648
    %v5073 = vor.u32 1.1754944e-38, %v5072
    %v5074 = vsel %vm5071, %v5073, %v5069
    %v5075 = vmul.f32 1.0, %v5074
    %v5076 = vmul.f32 %v3796, %v4130
    %v5077 = vmul.f32 %v3797, %v4145
    %v5078 = vmul.f32 %v3798, %v4160
    %v5079 = vmul.f32 %v3799, %v4175
    %v5080 = vmul.f32 %v3800, %v4190
    %v5081 = vmul.f32 %v3801, %v4205
    %v5082 = vmul.f32 %v3802, %v4220
    %v5083 = vmul.f32 %v3803, %v4235
    %v5084 = vmul.f32 %v3804, %v4250
    %v5085 = vmul.f32 %v3805, %v4265
    %v5086 = vmul.f32 %v3806, %v4280
    %v5087 = vmul.f32 %v3807, %v4295
    %v5088 = vmul.f32 %v3808, %v4310
    %v5089 = vmul.f32 %v3809, %v4325
    %v5090 = vmul.f32 %v3810, %v4340
    %v5091 = vmul.f32 %v3811, %v4355
    %v5092 = vmul.f32 %v3812, %v4370
    %v5093 = vmul.f32 %v3813, %v4385
    %v5094 = vmul.f32 %v3814, %v4400
    %v5095 = vmul.f32 %v3815, %v4415
    %v5096 = vmul.f32 %v3816, %v4430
    %v5097 = vmul.f32 %v3817, %v4445
    %v5098 = vmul.f32 %v3818, %v4460
    %v5099 = vmul.f32 %v3819, %v4475
    %v5100 = vmul.f32 %v3820, %v4490
    %v5101 = vmul.f32 %v3821, %v4505
    %v5102 = vmul.f32 %v3822, %v4520
    %v5103 = vmul.f32 %v3823, %v4535
    %v5104 = vmul.f32 %v3824, %v4550
    %v5105 = vmul.f32 %v3825, %v4565
    %v5106 = vmul.f32 %v3826, %v4580
    %v5107 = vmul.f32 %v3827, %v4595
    %v5108 = vmul.f32 %v3828, %v4610
    %v5109 = vmul.f32 %v3829, %v4625
    %v5110 = vmul.f32 %v3830, %v4640
    %v5111 = vmul.f32 %v3831, %v4655
    %v5112 = vmul.f32 %v3832, %v4670
    %v5113 = vmul.f32 %v3833, %v4685
    %v5114 = vmul.f32 %v3834, %v4700
    %v5115 = vmul.f32 %v3835, %v4715
    %v5116 = vmul.f32 %v3836, %v4730
    %v5117 = vmul.f32 %v3837, %v4745
    %v5118 = vmul.f32 %v3838, %v4760
    %v5119 = vmul.f32 %v3839, %v4775
    %v5120 = vmul.f32 %v3840, %v4790
    %v5121 = vmul.f32 %v3841, %v4805
    %v5122 = vmul.f32 %v3842, %v4820
    %v5123 = vmul.f32 %v3843, %v4835
    %v5124 = vmul.f32 %v3844, %v4850
    %v5125 = vmul.f32 %v3845, %v4865
    %v5126 = vmul.f32 %v3846, %v4880
    %v5127 = vmul.f32 %v3847, %v4895
    %v5128 = vmul.f32 %v3848, %v4910
    %v5129 = vmul.f32 %v3849, %v4925
    %v5130 = vmul.f32 %v3850, %v4940
    %v5131 = vmul.f32 %v3851, %v4955
    %v5132 = vmul.f32 %v3852, %v4970
    %v5133 = vmul.f32 %v3853, %v4985
    %v5134 = vmul.f32 %v3854, %v5000
    %v5135 = vmul.f32 %v3855, %v5015
    %v5136 = vmul.f32 %v3856, %v5030
    %v5137 = vmul.f32 %v3857, %v5045
    %v5138 = vmul.f32 %v3858, %v5060
    %v5139 = vmul.f32 %v3859, %v5075
    %5140 = vst [vmem:[#allocation3] sm:$0xff] %v5076
    %5141 = vst [vmem:[#allocation3 + $0x8] sm:$0xff] %v5077
    %5142 = vst [vmem:[#allocation3 + $0x10] sm:$0xff] %v5078
    %5143 = vst [vmem:[#allocation3 + $0x18] sm:$0xff] %v5079
    %5144 = vst [vmem:[#allocation3 + $0x20] sm:$0xff] %v5080
    %5145 = vst [vmem:[#allocation3 + $0x28] sm:$0xff] %v5081
    %5146 = vst [vmem:[#allocation3 + $0x30] sm:$0xff] %v5082
    %5147 = vst [vmem:[#allocation3 + $0x38] sm:$0xff] %v5083
    %5148 = vst [vmem:[#allocation3 + $0x40] sm:$0xff] %v5084
    %5149 = vst [vmem:[#allocation3 + $0x48] sm:$0xff] %v5085
    %5150 = vst [vmem:[#allocation3 + $0x50] sm:$0xff] %v5086
    %5151 = vst [vmem:[#allocation3 + $0x58] sm:$0xff] %v5087
    %5152 = vst [vmem:[#allocation3 + $0x60] sm:$0xff] %v5088
    %5153 = vst [vmem:[#allocation3 + $0x68] sm:$0xff] %v5089
    %5154 = vst [vmem:[#allocation3 + $0x70] sm:$0xff] %v5090
    %5155 = vst [vmem:[#allocation3 + $0x78] sm:$0xff] %v5091
    %5156 = vst [vmem:[#allocation3 + $0x80] sm:$0xff] %v5092
    %5157 = vst [vmem:[#allocation3 + $0x88] sm:$0xff] %v5093
    %5158 = vst [vmem:[#allocation3 + $0x90] sm:$0xff] %v5094
    %5159 = vst [vmem:[#allocation3 + $0x98] sm:$0xff] %v5095
    %5160 = vst [vmem:[#allocation3 + $0xa0] sm:$0xff] %v5096
    %5161 = vst [vmem:[#allocation3 + $0xa8] sm:$0xff] %v5097
    %5162 = vst [vmem:[#allocation3 + $0xb0] sm:$0xff] %v5098
    %5163 = vst [vmem:[#allocation3 + $0xb8] sm:$0xff] %v5099
    %5164 = vst [vmem:[#allocation3 + $0xc0] sm:$0xff] %v5100
    %5165 = vst [vmem:[#allocation3 + $0xc8] sm:$0xff] %v5101
    %5166 = vst [vmem:[#allocation3 + $0xd0] sm:$0xff] %v5102
    %5167 = vst [vmem:[#allocation3 + $0xd8] sm:$0xff] %v5103
    %5168 = vst [vmem:[#allocation3 + $0xe0] sm:$0xff] %v5104
    %5169 = vst [vmem:[#allocation3 + $0xe8] sm:$0xff] %v5105
    %5170 = vst [vmem:[#allocation3 + $0xf0] sm:$0xff] %v5106
    %5171 = vst [vmem:[#allocation3 + $0xf8] sm:$0xff] %v5107
    %5172 = vst [vmem:[#allocation3 + $0x100] sm:$0xff] %v5108
    %5173 = vst [vmem:[#allocation3 + $0x108] sm:$0xff] %v5109
    %5174 = vst [vmem:[#allocation3 + $0x110] sm:$0xff] %v5110
    %5175 = vst [vmem:[#allocation3 + $0x118] sm:$0xff] %v5111
    %5176 = vst [vmem:[#allocation3 + $0x120] sm:$0xff] %v5112
    %5177 = vst [vmem:[#allocation3 + $0x128] sm:$0xff] %v5113
    %5178 = vst [vmem:[#allocation3 + $0x130] sm:$0xff] %v5114
    %5179 = vst [vmem:[#allocation3 + $0x138] sm:$0xff] %v5115
    %5180 = vst [vmem:[#allocation3 + $0x140] sm:$0xff] %v5116
    %5181 = vst [vmem:[#allocation3 + $0x148] sm:$0xff] %v5117
    %5182 = vst [vmem:[#allocation3 + $0x150] sm:$0xff] %v5118
    %5183 = vst [vmem:[#allocation3 + $0x158] sm:$0xff] %v5119
    %5184 = vst [vmem:[#allocation3 + $0x160] sm:$0xff] %v5120
    %5185 = vst [vmem:[#allocation3 + $0x168] sm:$0xff] %v5121
    %5186 = vst [vmem:[#allocation3 + $0x170] sm:$0xff] %v5122
    %5187 = vst [vmem:[#allocation3 + $0x178] sm:$0xff] %v5123
    %5188 = vst [vmem:[#allocation3 + $0x180] sm:$0xff] %v5124
    %5189 = vst [vmem:[#allocation3 + $0x188] sm:$0xff] %v5125
    %5190 = vst [vmem:[#allocation3 + $0x190] sm:$0xff] %v5126
    %5191 = vst [vmem:[#allocation3 + $0x198] sm:$0xff] %v5127
    %5192 = vst [vmem:[#allocation3 + $0x1a0] sm:$0xff] %v5128
    %5193 = vst [vmem:[#allocation3 + $0x1a8] sm:$0xff] %v5129
    %5194 = vst [vmem:[#allocation3 + $0x1b0] sm:$0xff] %v5130
    %5195 = vst [vmem:[#allocation3 + $0x1b8] sm:$0xff] %v5131
    %5196 = vst [vmem:[#allocation3 + $0x1c0] sm:$0xff] %v5132
    %5197 = vst [vmem:[#allocation3 + $0x1c8] sm:$0xff] %v5133
    %5198 = vst [vmem:[#allocation3 + $0x1d0] sm:$0xff] %v5134
    %5199 = vst [vmem:[#allocation3 + $0x1d8] sm:$0xff] %v5135
    %5200 = vst [vmem:[#allocation3 + $0x1e0] sm:$0xff] %v5136
    %5201 = vst [vmem:[#allocation3 + $0x1e8] sm:$0xff] %v5137
    %5202 = vst [vmem:[#allocation3 + $0x1f0] sm:$0xff] %v5138
    %5203 = vst [vmem:[#allocation3 + $0x1f8] sm:$0xff] %v5139
    // Predicated region
    $region18: #{tpu_custom_call.1} parent=1 // pred_check
      _
    $region19: #{tpu_custom_call.1} parent=1 // pred_check_branch
      %5205 = sbr.rel (0) target = $region21
    $region20: #{tpu_custom_call.1} parent=1 // pred_region
      %5207 = vsyncadd [#allocation4], 0
      %s5208 = sshll.u32 [#allocation3], 4
      %s5209 = int_to_ptr.vmem [resolvable:$true] %s5208
      %s5210 = sshll.u32 %s4, 4
      %s5211 = int_to_ptr.hbm [resolvable:$true] %s5210
      %5216 = dma.vmem_to_hbm [thread:$0]  %s5209, 8192, %s5211, [#allocation4], 128, 128, 8
    $region21: #{tpu_custom_call.1} parent=1 // pred_fallthru
      _
    // Predicated region
    $region22: #{tpu_custom_call.1} parent=1 // pred_check
      _
    $region23: #{tpu_custom_call.1} parent=1 // pred_check_branch
      %5218 = sbr.rel (0) target = $region25
    $region24: #{tpu_custom_call.1} parent=1 // pred_region
      %5220 = dma.done [#allocation4], 8192
    $region25: #{tpu_custom_call.1} parent=1 // pred_fallthru
      _
    %5221 = vsyncpa [#allocation4], 1

</llo_original>
